<compile_context>
chip_gen: v7x
topology: tpu7x:2x2x1
jax: 0.10.0
libtpu: 0.0.40
codegen_flags: <defaults>
</compile_context>

<pallas_src>
import functools

import jax
import jax.numpy as jnp
from jax.experimental import pallas as pl
from jax.experimental.pallas import tpu as pltpu

INPUT_SIZE = 2
HIDDEN = [4, 8, 16, 8, 4]
OUTPUT_SIZE = 2
NEG_SLOPE = 0.01  # nn.LeakyReLU() default

_DIMS = [INPUT_SIZE] + list(HIDDEN) + [OUTPUT_SIZE]
# PyTorch nn.Linear layout: W is [out_features, in_features]
LAYER_SHAPES = tuple((_DIMS[i + 1], _DIMS[i]) for i in range(len(_DIMS) - 1))
TOTAL_ROWS = sum(o for o, _ in LAYER_SHAPES)        # 42
MAX_IN = max(i for _, i in LAYER_SHAPES)            # 16
PACK_COLS = MAX_IN + 1                              # 16 weight cols + 1 bias col

# vreg-budget cap: widest live set is ~[16,T]+[8,T] activations plus broadcast
# temporaries; beyond ~1024 lanes it spills and loads the vld/vst slots.
MAX_TILE_B = 1024


def _leaky_relu(x, neg_slope=NEG_SLOPE):
    return jnp.where(x >= 0, x, neg_slope * x)


def mlp_kernel(params_ref, x_ref, o_ref):
    """One batch tile: activations are [features, tile_b] (batch on lanes).

    params_ref : [TOTAL_ROWS, PACK_COLS] f32 — all layers packed row-wise,
                 layer l occupies O_l rows; cols [0:I_l] = W_l, col I_l = b_l.
    x_ref      : [INPUT_SIZE,  tile_b]
    o_ref      : [OUTPUT_SIZE, tile_b]

    Ragged last tile: OOB columns hold garbage but are masked on writeback by
    the Pallas pipeline, so no explicit predication is needed here.
    """
    p = params_ref[...]                       # tiny, fully resident in vregs
    h = x_ref[...].astype(jnp.float32)        # [2, T]
    t = h.shape[1]

    row = 0
    n_layers = len(LAYER_SHAPES)
    for l, (out_f, in_f) in enumerate(LAYER_SHAPES):
        wb = p[row:row + out_f, :]            # [O, PACK_COLS] (static slice)
        bias = wb[:, in_f:in_f + 1]           # [O, 1]
        acc = jnp.broadcast_to(bias, (out_f, t))
        # Unrolled VPU broadcast-FMA over the tiny input dim (2..16):
        #   acc[j, :] += W[j, i] * h[i, :]
        for i in range(in_f):
            acc = acc + wb[:, i:i + 1] * h[i:i + 1, :]
        if l < n_layers - 1:                  # no activation after final Linear
            acc = _leaky_relu(acc)
        h = acc
        row += out_f

    o_ref[...] = h.astype(o_ref.dtype)


def init_params(key):
    """PyTorch-style nn.Linear init: U[-1/sqrt(fan_in), 1/sqrt(fan_in)]."""
    weights, biases = [], []
    for out_f, in_f in LAYER_SHAPES:
        key, kw, kb = jax.random.split(key, 3)
        bound = 1.0 / float(in_f) ** 0.5
        weights.append(jax.random.uniform(kw, (out_f, in_f), jnp.float32, -bound, bound))
        biases.append(jax.random.uniform(kb, (out_f,), jnp.float32, -bound, bound))
    return weights, biases


def pack_params(weights, biases):
    """Pack all layers into one [TOTAL_ROWS, PACK_COLS] f32 buffer."""
    packed = jnp.zeros((TOTAL_ROWS, PACK_COLS), jnp.float32)
    row = 0
    for (w, b), (out_f, in_f) in zip(zip(weights, biases), LAYER_SHAPES):
        packed = packed.at[row:row + out_f, :in_f].set(w)
        packed = packed.at[row:row + out_f, in_f].set(b)
        row += out_f
    return packed


def _num_tensorcores():
    """Best-effort TensorCore-per-chip count (v7x/v5p/v4 = 2, v5e/v6e = 1)."""
    try:
        kind = jax.devices()[0].device_kind.lower()
    except Exception:
        return 1
    if "v7" in kind or "v4" in kind or "v5p" in kind or "v5 p" in kind:
        return 2
    return 1


def _pick_tile_b(batch, n_cores):
    """Fewest lane-dense grid steps, rounded to a multiple of the TC count."""
    steps = max(n_cores, pl.cdiv(batch, MAX_TILE_B))
    steps = pl.cdiv(steps, n_cores) * n_cores      # even split across TCs (v7x)
    tile = pl.cdiv(batch, steps)
    tile = pl.cdiv(tile, 128) * 128                # lane-dense (multiple of 128)
    return max(min(tile, MAX_TILE_B), 128)


@functools.partial(jax.jit, static_argnames=("tile_b",))
def _mlp_forward_jit(x, packed_params, tile_b):
    """x: [B, 2] -> [B, 2]. Transposes + pallas_call live in ONE executable."""
    B, F = x.shape
    x_t = x.astype(jnp.float32).T                  # [2, B], batch on lanes

    grid = (pl.cdiv(B, tile_b),)                   # ragged last tile handled in-kernel

    out_t = pl.pallas_call(
        mlp_kernel,
        out_shape=jax.ShapeDtypeStruct((OUTPUT_SIZE, B), jnp.float32),
        grid=grid,
        in_specs=[
            # All parameters in one buffer, constant block -> fetched once.
            pl.BlockSpec((TOTAL_ROWS, PACK_COLS), lambda i: (0, 0)),
            # Batch-on-lanes activations: lane dim = tile_b (multiple of 128).
            pl.BlockSpec((INPUT_SIZE, tile_b), lambda i: (0, i)),
        ],
        out_specs=pl.BlockSpec((OUTPUT_SIZE, tile_b), lambda i: (0, i)),
        compiler_params=pltpu.CompilerParams(
            dimension_semantics=("parallel",)),    # shards steps across TCs on v7x
    )(packed_params, x_t)

    # Callers that keep a [features, B] layout end-to-end can consume out_t
    # directly and skip both transposes; we keep the PyTorch [B, 2] interface.
    return out_t.T


def mlp_forward(x, packed_params, tile_b=None):
    """MLP forward matching the PyTorch module: [B, 2] -> [B, 2]."""
    B, F = x.shape
    assert F == INPUT_SIZE
    if tile_b is None:
        tile_b = _pick_tile_b(B, _num_tensorcores())
    return _mlp_forward_jit(x, packed_params, tile_b)


def mlp_reference(x, weights, biases):
    """Pure-JAX reference (PyTorch semantics: h @ W.T + b)."""
    h = x
    n_layers = len(weights)
    for l, (w, b) in enumerate(zip(weights, biases)):
        h = h @ w.T + b
        if l < n_layers - 1:
            h = _leaky_relu(h)
    return h


if __name__ == "__main__":
    key = jax.random.PRNGKey(0)
    key, kx = jax.random.split(key)

    # Same sample count as the reference script: gen(torch.randn(1000, 2)).
    # 1000 is deliberately NOT a multiple of 128, exercising the in-kernel
    # ragged-tile masking.
    B = 1000
    x = jax.random.normal(kx, (B, INPUT_SIZE), jnp.float32)

    weights, biases = init_params(key)
    packed = pack_params(weights, biases)

    out = jax.block_until_ready(mlp_forward(x, packed))
    ref = mlp_reference(x, weights, biases)

    assert out.shape == (B, OUTPUT_SIZE)
    assert jnp.allclose(out, ref, atol=1e-5, rtol=1e-5), "mismatch vs reference"

    print("KERNEL_OK")
</pallas_src>

<mosaic_0001>
module attributes {stable_mosaic.version = 11 : i64} {
  func.func @mlp_kernel(%arg0: i32, %arg1: memref<42x17xf32, #tpu.memory_space<vmem>>, %arg2: memref<2x1024xf32, #tpu.memory_space<vmem>>, %arg3: memref<2x1024xf32, #tpu.memory_space<vmem>>) attributes {dimension_semantics = [#tpu.dimension_semantics<parallel>], iteration_bounds = array<i64: 1>, scalar_prefetch = 0 : i64, scratch_operands = 0 : i64, tpu.core_type = #tpu.core_type<tc>, window_params = [{pipeline_mode = #tpu.pipeline_mode<synchronous>, transform_indices = @transform_0, window_bounds = array<i64: 42, 17>}, {transform_indices = @transform_1, window_bounds = array<i64: 2, 1024>}, {transform_indices = @transform_2, window_bounds = array<i64: 2, 1024>}]} {
    %c0 = arith.constant 0 : index
    %c0_0 = arith.constant 0 : index
    %0 = vector.load %arg1[%c0, %c0_0] : memref<42x17xf32, #tpu.memory_space<vmem>>, vector<42x17xf32>
    %c0_1 = arith.constant 0 : index
    %c0_2 = arith.constant 0 : index
    %1 = vector.load %arg2[%c0_1, %c0_2] : memref<2x1024xf32, #tpu.memory_space<vmem>>, vector<2x1024xf32>
    %2 = vector.extract_strided_slice %0 {offsets = [0, 0], sizes = [4, 17], strides = [1, 1]} : vector<42x17xf32> to vector<4x17xf32>
    %3 = vector.extract_strided_slice %2 {offsets = [0, 2], sizes = [4, 1], strides = [1, 1]} : vector<4x17xf32> to vector<4x1xf32>
    %4 = vector.shape_cast %3 : vector<4x1xf32> to vector<4x1xf32>
    %5 = vector.broadcast %4 : vector<4x1xf32> to vector<4x1024xf32>
    %6 = vector.extract_strided_slice %2 {offsets = [0, 0], sizes = [4, 1], strides = [1, 1]} : vector<4x17xf32> to vector<4x1xf32>
    %7 = vector.extract_strided_slice %1 {offsets = [0, 0], sizes = [1, 1024], strides = [1, 1]} : vector<2x1024xf32> to vector<1x1024xf32>
    %8 = vector.broadcast %6 : vector<4x1xf32> to vector<4x1024xf32>
    %9 = vector.broadcast %7 : vector<1x1024xf32> to vector<4x1024xf32>
    %10 = arith.mulf %8, %9 : vector<4x1024xf32>
    %11 = arith.addf %5, %10 : vector<4x1024xf32>
    %12 = vector.extract_strided_slice %2 {offsets = [0, 1], sizes = [4, 1], strides = [1, 1]} : vector<4x17xf32> to vector<4x1xf32>
    %13 = vector.extract_strided_slice %1 {offsets = [1, 0], sizes = [1, 1024], strides = [1, 1]} : vector<2x1024xf32> to vector<1x1024xf32>
    %14 = vector.broadcast %12 : vector<4x1xf32> to vector<4x1024xf32>
    %15 = vector.broadcast %13 : vector<1x1024xf32> to vector<4x1024xf32>
    %16 = arith.mulf %14, %15 : vector<4x1024xf32>
    %17 = arith.addf %11, %16 : vector<4x1024xf32>
    %cst = arith.constant 0.000000e+00 : f32
    %18 = vector.broadcast %cst : f32 to vector<4x1024xf32>
    %19 = arith.cmpf oge, %17, %18 : vector<4x1024xf32>
    %cst_3 = arith.constant 0.00999999977 : f32
    %20 = vector.broadcast %cst_3 : f32 to vector<4x1024xf32>
    %21 = arith.mulf %20, %17 : vector<4x1024xf32>
    %22 = arith.select %19, %17, %21 : vector<4x1024xi1>, vector<4x1024xf32>
    %23 = vector.extract_strided_slice %0 {offsets = [4, 0], sizes = [8, 17], strides = [1, 1]} : vector<42x17xf32> to vector<8x17xf32>
    %24 = vector.extract_strided_slice %23 {offsets = [0, 4], sizes = [8, 1], strides = [1, 1]} : vector<8x17xf32> to vector<8x1xf32>
    %25 = vector.shape_cast %24 : vector<8x1xf32> to vector<8x1xf32>
    %26 = vector.broadcast %25 : vector<8x1xf32> to vector<8x1024xf32>
    %27 = vector.extract_strided_slice %23 {offsets = [0, 0], sizes = [8, 1], strides = [1, 1]} : vector<8x17xf32> to vector<8x1xf32>
    %28 = vector.extract_strided_slice %22 {offsets = [0, 0], sizes = [1, 1024], strides = [1, 1]} : vector<4x1024xf32> to vector<1x1024xf32>
    %29 = vector.broadcast %27 : vector<8x1xf32> to vector<8x1024xf32>
    %30 = vector.broadcast %28 : vector<1x1024xf32> to vector<8x1024xf32>
    %31 = arith.mulf %29, %30 : vector<8x1024xf32>
    %32 = arith.addf %26, %31 : vector<8x1024xf32>
    %33 = vector.extract_strided_slice %23 {offsets = [0, 1], sizes = [8, 1], strides = [1, 1]} : vector<8x17xf32> to vector<8x1xf32>
    %34 = vector.extract_strided_slice %22 {offsets = [1, 0], sizes = [1, 1024], strides = [1, 1]} : vector<4x1024xf32> to vector<1x1024xf32>
    %35 = vector.broadcast %33 : vector<8x1xf32> to vector<8x1024xf32>
    %36 = vector.broadcast %34 : vector<1x1024xf32> to vector<8x1024xf32>
    %37 = arith.mulf %35, %36 : vector<8x1024xf32>
    %38 = arith.addf %32, %37 : vector<8x1024xf32>
    %39 = vector.extract_strided_slice %23 {offsets = [0, 2], sizes = [8, 1], strides = [1, 1]} : vector<8x17xf32> to vector<8x1xf32>
    %40 = vector.extract_strided_slice %22 {offsets = [2, 0], sizes = [1, 1024], strides = [1, 1]} : vector<4x1024xf32> to vector<1x1024xf32>
    %41 = vector.broadcast %39 : vector<8x1xf32> to vector<8x1024xf32>
    %42 = vector.broadcast %40 : vector<1x1024xf32> to vector<8x1024xf32>
    %43 = arith.mulf %41, %42 : vector<8x1024xf32>
    %44 = arith.addf %38, %43 : vector<8x1024xf32>
    %45 = vector.extract_strided_slice %23 {offsets = [0, 3], sizes = [8, 1], strides = [1, 1]} : vector<8x17xf32> to vector<8x1xf32>
    %46 = vector.extract_strided_slice %22 {offsets = [3, 0], sizes = [1, 1024], strides = [1, 1]} : vector<4x1024xf32> to vector<1x1024xf32>
    %47 = vector.broadcast %45 : vector<8x1xf32> to vector<8x1024xf32>
    %48 = vector.broadcast %46 : vector<1x1024xf32> to vector<8x1024xf32>
    %49 = arith.mulf %47, %48 : vector<8x1024xf32>
    %50 = arith.addf %44, %49 : vector<8x1024xf32>
    %cst_4 = arith.constant 0.000000e+00 : f32
    %51 = vector.broadcast %cst_4 : f32 to vector<8x1024xf32>
    %52 = arith.cmpf oge, %50, %51 : vector<8x1024xf32>
    %cst_5 = arith.constant 0.00999999977 : f32
    %53 = vector.broadcast %cst_5 : f32 to vector<8x1024xf32>
    %54 = arith.mulf %53, %50 : vector<8x1024xf32>
    %55 = arith.select %52, %50, %54 : vector<8x1024xi1>, vector<8x1024xf32>
    %56 = vector.extract_strided_slice %0 {offsets = [12, 0], sizes = [16, 17], strides = [1, 1]} : vector<42x17xf32> to vector<16x17xf32>
    %57 = vector.extract_strided_slice %56 {offsets = [0, 8], sizes = [16, 1], strides = [1, 1]} : vector<16x17xf32> to vector<16x1xf32>
    %58 = vector.shape_cast %57 : vector<16x1xf32> to vector<16x1xf32>
    %59 = vector.broadcast %58 : vector<16x1xf32> to vector<16x1024xf32>
    %60 = vector.extract_strided_slice %56 {offsets = [0, 0], sizes = [16, 1], strides = [1, 1]} : vector<16x17xf32> to vector<16x1xf32>
    %61 = vector.extract_strided_slice %55 {offsets = [0, 0], sizes = [1, 1024], strides = [1, 1]} : vector<8x1024xf32> to vector<1x1024xf32>
    %62 = vector.broadcast %60 : vector<16x1xf32> to vector<16x1024xf32>
    %63 = vector.broadcast %61 : vector<1x1024xf32> to vector<16x1024xf32>
    %64 = arith.mulf %62, %63 : vector<16x1024xf32>
    %65 = arith.addf %59, %64 : vector<16x1024xf32>
    %66 = vector.extract_strided_slice %56 {offsets = [0, 1], sizes = [16, 1], strides = [1, 1]} : vector<16x17xf32> to vector<16x1xf32>
    %67 = vector.extract_strided_slice %55 {offsets = [1, 0], sizes = [1, 1024], strides = [1, 1]} : vector<8x1024xf32> to vector<1x1024xf32>
    %68 = vector.broadcast %66 : vector<16x1xf32> to vector<16x1024xf32>
    %69 = vector.broadcast %67 : vector<1x1024xf32> to vector<16x1024xf32>
    %70 = arith.mulf %68, %69 : vector<16x1024xf32>
    %71 = arith.addf %65, %70 : vector<16x1024xf32>
    %72 = vector.extract_strided_slice %56 {offsets = [0, 2], sizes = [16, 1], strides = [1, 1]} : vector<16x17xf32> to vector<16x1xf32>
    %73 = vector.extract_strided_slice %55 {offsets = [2, 0], sizes = [1, 1024], strides = [1, 1]} : vector<8x1024xf32> to vector<1x1024xf32>
    %74 = vector.broadcast %72 : vector<16x1xf32> to vector<16x1024xf32>
    %75 = vector.broadcast %73 : vector<1x1024xf32> to vector<16x1024xf32>
    %76 = arith.mulf %74, %75 : vector<16x1024xf32>
    %77 = arith.addf %71, %76 : vector<16x1024xf32>
    %78 = vector.extract_strided_slice %56 {offsets = [0, 3], sizes = [16, 1], strides = [1, 1]} : vector<16x17xf32> to vector<16x1xf32>
    %79 = vector.extract_strided_slice %55 {offsets = [3, 0], sizes = [1, 1024], strides = [1, 1]} : vector<8x1024xf32> to vector<1x1024xf32>
    %80 = vector.broadcast %78 : vector<16x1xf32> to vector<16x1024xf32>
    %81 = vector.broadcast %79 : vector<1x1024xf32> to vector<16x1024xf32>
    %82 = arith.mulf %80, %81 : vector<16x1024xf32>
    %83 = arith.addf %77, %82 : vector<16x1024xf32>
    %84 = vector.extract_strided_slice %56 {offsets = [0, 4], sizes = [16, 1], strides = [1, 1]} : vector<16x17xf32> to vector<16x1xf32>
    %85 = vector.extract_strided_slice %55 {offsets = [4, 0], sizes = [1, 1024], strides = [1, 1]} : vector<8x1024xf32> to vector<1x1024xf32>
    %86 = vector.broadcast %84 : vector<16x1xf32> to vector<16x1024xf32>
    %87 = vector.broadcast %85 : vector<1x1024xf32> to vector<16x1024xf32>
    %88 = arith.mulf %86, %87 : vector<16x1024xf32>
    %89 = arith.addf %83, %88 : vector<16x1024xf32>
    %90 = vector.extract_strided_slice %56 {offsets = [0, 5], sizes = [16, 1], strides = [1, 1]} : vector<16x17xf32> to vector<16x1xf32>
    %91 = vector.extract_strided_slice %55 {offsets = [5, 0], sizes = [1, 1024], strides = [1, 1]} : vector<8x1024xf32> to vector<1x1024xf32>
    %92 = vector.broadcast %90 : vector<16x1xf32> to vector<16x1024xf32>
    %93 = vector.broadcast %91 : vector<1x1024xf32> to vector<16x1024xf32>
    %94 = arith.mulf %92, %93 : vector<16x1024xf32>
    %95 = arith.addf %89, %94 : vector<16x1024xf32>
    %96 = vector.extract_strided_slice %56 {offsets = [0, 6], sizes = [16, 1], strides = [1, 1]} : vector<16x17xf32> to vector<16x1xf32>
    %97 = vector.extract_strided_slice %55 {offsets = [6, 0], sizes = [1, 1024], strides = [1, 1]} : vector<8x1024xf32> to vector<1x1024xf32>
    %98 = vector.broadcast %96 : vector<16x1xf32> to vector<16x1024xf32>
    %99 = vector.broadcast %97 : vector<1x1024xf32> to vector<16x1024xf32>
    %100 = arith.mulf %98, %99 : vector<16x1024xf32>
    %101 = arith.addf %95, %100 : vector<16x1024xf32>
    %102 = vector.extract_strided_slice %56 {offsets = [0, 7], sizes = [16, 1], strides = [1, 1]} : vector<16x17xf32> to vector<16x1xf32>
    %103 = vector.extract_strided_slice %55 {offsets = [7, 0], sizes = [1, 1024], strides = [1, 1]} : vector<8x1024xf32> to vector<1x1024xf32>
    %104 = vector.broadcast %102 : vector<16x1xf32> to vector<16x1024xf32>
    %105 = vector.broadcast %103 : vector<1x1024xf32> to vector<16x1024xf32>
    %106 = arith.mulf %104, %105 : vector<16x1024xf32>
    %107 = arith.addf %101, %106 : vector<16x1024xf32>
    %cst_6 = arith.constant 0.000000e+00 : f32
    %108 = vector.broadcast %cst_6 : f32 to vector<16x1024xf32>
    %109 = arith.cmpf oge, %107, %108 : vector<16x1024xf32>
    %cst_7 = arith.constant 0.00999999977 : f32
    %110 = vector.broadcast %cst_7 : f32 to vector<16x1024xf32>
    %111 = arith.mulf %110, %107 : vector<16x1024xf32>
    %112 = arith.select %109, %107, %111 : vector<16x1024xi1>, vector<16x1024xf32>
    %113 = vector.extract_strided_slice %0 {offsets = [28, 0], sizes = [8, 17], strides = [1, 1]} : vector<42x17xf32> to vector<8x17xf32>
    %114 = vector.extract_strided_slice %113 {offsets = [0, 16], sizes = [8, 1], strides = [1, 1]} : vector<8x17xf32> to vector<8x1xf32>
    %115 = vector.shape_cast %114 : vector<8x1xf32> to vector<8x1xf32>
    %116 = vector.broadcast %115 : vector<8x1xf32> to vector<8x1024xf32>
    %117 = vector.extract_strided_slice %113 {offsets = [0, 0], sizes = [8, 1], strides = [1, 1]} : vector<8x17xf32> to vector<8x1xf32>
    %118 = vector.extract_strided_slice %112 {offsets = [0, 0], sizes = [1, 1024], strides = [1, 1]} : vector<16x1024xf32> to vector<1x1024xf32>
    %119 = vector.broadcast %117 : vector<8x1xf32> to vector<8x1024xf32>
    %120 = vector.broadcast %118 : vector<1x1024xf32> to vector<8x1024xf32>
    %121 = arith.mulf %119, %120 : vector<8x1024xf32>
    %122 = arith.addf %116, %121 : vector<8x1024xf32>
    %123 = vector.extract_strided_slice %113 {offsets = [0, 1], sizes = [8, 1], strides = [1, 1]} : vector<8x17xf32> to vector<8x1xf32>
    %124 = vector.extract_strided_slice %112 {offsets = [1, 0], sizes = [1, 1024], strides = [1, 1]} : vector<16x1024xf32> to vector<1x1024xf32>
    %125 = vector.broadcast %123 : vector<8x1xf32> to vector<8x1024xf32>
    %126 = vector.broadcast %124 : vector<1x1024xf32> to vector<8x1024xf32>
    %127 = arith.mulf %125, %126 : vector<8x1024xf32>
    %128 = arith.addf %122, %127 : vector<8x1024xf32>
    %129 = vector.extract_strided_slice %113 {offsets = [0, 2], sizes = [8, 1], strides = [1, 1]} : vector<8x17xf32> to vector<8x1xf32>
    %130 = vector.extract_strided_slice %112 {offsets = [2, 0], sizes = [1, 1024], strides = [1, 1]} : vector<16x1024xf32> to vector<1x1024xf32>
    %131 = vector.broadcast %129 : vector<8x1xf32> to vector<8x1024xf32>
    %132 = vector.broadcast %130 : vector<1x1024xf32> to vector<8x1024xf32>
    %133 = arith.mulf %131, %132 : vector<8x1024xf32>
    %134 = arith.addf %128, %133 : vector<8x1024xf32>
    %135 = vector.extract_strided_slice %113 {offsets = [0, 3], sizes = [8, 1], strides = [1, 1]} : vector<8x17xf32> to vector<8x1xf32>
    %136 = vector.extract_strided_slice %112 {offsets = [3, 0], sizes = [1, 1024], strides = [1, 1]} : vector<16x1024xf32> to vector<1x1024xf32>
    %137 = vector.broadcast %135 : vector<8x1xf32> to vector<8x1024xf32>
    %138 = vector.broadcast %136 : vector<1x1024xf32> to vector<8x1024xf32>
    %139 = arith.mulf %137, %138 : vector<8x1024xf32>
    %140 = arith.addf %134, %139 : vector<8x1024xf32>
    %141 = vector.extract_strided_slice %113 {offsets = [0, 4], sizes = [8, 1], strides = [1, 1]} : vector<8x17xf32> to vector<8x1xf32>
    %142 = vector.extract_strided_slice %112 {offsets = [4, 0], sizes = [1, 1024], strides = [1, 1]} : vector<16x1024xf32> to vector<1x1024xf32>
    %143 = vector.broadcast %141 : vector<8x1xf32> to vector<8x1024xf32>
    %144 = vector.broadcast %142 : vector<1x1024xf32> to vector<8x1024xf32>
    %145 = arith.mulf %143, %144 : vector<8x1024xf32>
    %146 = arith.addf %140, %145 : vector<8x1024xf32>
    %147 = vector.extract_strided_slice %113 {offsets = [0, 5], sizes = [8, 1], strides = [1, 1]} : vector<8x17xf32> to vector<8x1xf32>
    %148 = vector.extract_strided_slice %112 {offsets = [5, 0], sizes = [1, 1024], strides = [1, 1]} : vector<16x1024xf32> to vector<1x1024xf32>
    %149 = vector.broadcast %147 : vector<8x1xf32> to vector<8x1024xf32>
    %150 = vector.broadcast %148 : vector<1x1024xf32> to vector<8x1024xf32>
    %151 = arith.mulf %149, %150 : vector<8x1024xf32>
    %152 = arith.addf %146, %151 : vector<8x1024xf32>
    %153 = vector.extract_strided_slice %113 {offsets = [0, 6], sizes = [8, 1], strides = [1, 1]} : vector<8x17xf32> to vector<8x1xf32>
    %154 = vector.extract_strided_slice %112 {offsets = [6, 0], sizes = [1, 1024], strides = [1, 1]} : vector<16x1024xf32> to vector<1x1024xf32>
    %155 = vector.broadcast %153 : vector<8x1xf32> to vector<8x1024xf32>
    %156 = vector.broadcast %154 : vector<1x1024xf32> to vector<8x1024xf32>
    %157 = arith.mulf %155, %156 : vector<8x1024xf32>
    %158 = arith.addf %152, %157 : vector<8x1024xf32>
    %159 = vector.extract_strided_slice %113 {offsets = [0, 7], sizes = [8, 1], strides = [1, 1]} : vector<8x17xf32> to vector<8x1xf32>
    %160 = vector.extract_strided_slice %112 {offsets = [7, 0], sizes = [1, 1024], strides = [1, 1]} : vector<16x1024xf32> to vector<1x1024xf32>
    %161 = vector.broadcast %159 : vector<8x1xf32> to vector<8x1024xf32>
    %162 = vector.broadcast %160 : vector<1x1024xf32> to vector<8x1024xf32>
    %163 = arith.mulf %161, %162 : vector<8x1024xf32>
    %164 = arith.addf %158, %163 : vector<8x1024xf32>
    %165 = vector.extract_strided_slice %113 {offsets = [0, 8], sizes = [8, 1], strides = [1, 1]} : vector<8x17xf32> to vector<8x1xf32>
    %166 = vector.extract_strided_slice %112 {offsets = [8, 0], sizes = [1, 1024], strides = [1, 1]} : vector<16x1024xf32> to vector<1x1024xf32>
    %167 = vector.broadcast %165 : vector<8x1xf32> to vector<8x1024xf32>
    %168 = vector.broadcast %166 : vector<1x1024xf32> to vector<8x1024xf32>
    %169 = arith.mulf %167, %168 : vector<8x1024xf32>
    %170 = arith.addf %164, %169 : vector<8x1024xf32>
    %171 = vector.extract_strided_slice %113 {offsets = [0, 9], sizes = [8, 1], strides = [1, 1]} : vector<8x17xf32> to vector<8x1xf32>
    %172 = vector.extract_strided_slice %112 {offsets = [9, 0], sizes = [1, 1024], strides = [1, 1]} : vector<16x1024xf32> to vector<1x1024xf32>
    %173 = vector.broadcast %171 : vector<8x1xf32> to vector<8x1024xf32>
    %174 = vector.broadcast %172 : vector<1x1024xf32> to vector<8x1024xf32>
    %175 = arith.mulf %173, %174 : vector<8x1024xf32>
    %176 = arith.addf %170, %175 : vector<8x1024xf32>
    %177 = vector.extract_strided_slice %113 {offsets = [0, 10], sizes = [8, 1], strides = [1, 1]} : vector<8x17xf32> to vector<8x1xf32>
    %178 = vector.extract_strided_slice %112 {offsets = [10, 0], sizes = [1, 1024], strides = [1, 1]} : vector<16x1024xf32> to vector<1x1024xf32>
    %179 = vector.broadcast %177 : vector<8x1xf32> to vector<8x1024xf32>
    %180 = vector.broadcast %178 : vector<1x1024xf32> to vector<8x1024xf32>
    %181 = arith.mulf %179, %180 : vector<8x1024xf32>
    %182 = arith.addf %176, %181 : vector<8x1024xf32>
    %183 = vector.extract_strided_slice %113 {offsets = [0, 11], sizes = [8, 1], strides = [1, 1]} : vector<8x17xf32> to vector<8x1xf32>
    %184 = vector.extract_strided_slice %112 {offsets = [11, 0], sizes = [1, 1024], strides = [1, 1]} : vector<16x1024xf32> to vector<1x1024xf32>
    %185 = vector.broadcast %183 : vector<8x1xf32> to vector<8x1024xf32>
    %186 = vector.broadcast %184 : vector<1x1024xf32> to vector<8x1024xf32>
    %187 = arith.mulf %185, %186 : vector<8x1024xf32>
    %188 = arith.addf %182, %187 : vector<8x1024xf32>
    %189 = vector.extract_strided_slice %113 {offsets = [0, 12], sizes = [8, 1], strides = [1, 1]} : vector<8x17xf32> to vector<8x1xf32>
    %190 = vector.extract_strided_slice %112 {offsets = [12, 0], sizes = [1, 1024], strides = [1, 1]} : vector<16x1024xf32> to vector<1x1024xf32>
    %191 = vector.broadcast %189 : vector<8x1xf32> to vector<8x1024xf32>
    %192 = vector.broadcast %190 : vector<1x1024xf32> to vector<8x1024xf32>
    %193 = arith.mulf %191, %192 : vector<8x1024xf32>
    %194 = arith.addf %188, %193 : vector<8x1024xf32>
    %195 = vector.extract_strided_slice %113 {offsets = [0, 13], sizes = [8, 1], strides = [1, 1]} : vector<8x17xf32> to vector<8x1xf32>
    %196 = vector.extract_strided_slice %112 {offsets = [13, 0], sizes = [1, 1024], strides = [1, 1]} : vector<16x1024xf32> to vector<1x1024xf32>
    %197 = vector.broadcast %195 : vector<8x1xf32> to vector<8x1024xf32>
    %198 = vector.broadcast %196 : vector<1x1024xf32> to vector<8x1024xf32>
    %199 = arith.mulf %197, %198 : vector<8x1024xf32>
    %200 = arith.addf %194, %199 : vector<8x1024xf32>
    %201 = vector.extract_strided_slice %113 {offsets = [0, 14], sizes = [8, 1], strides = [1, 1]} : vector<8x17xf32> to vector<8x1xf32>
    %202 = vector.extract_strided_slice %112 {offsets = [14, 0], sizes = [1, 1024], strides = [1, 1]} : vector<16x1024xf32> to vector<1x1024xf32>
    %203 = vector.broadcast %201 : vector<8x1xf32> to vector<8x1024xf32>
    %204 = vector.broadcast %202 : vector<1x1024xf32> to vector<8x1024xf32>
    %205 = arith.mulf %203, %204 : vector<8x1024xf32>
    %206 = arith.addf %200, %205 : vector<8x1024xf32>
    %207 = vector.extract_strided_slice %113 {offsets = [0, 15], sizes = [8, 1], strides = [1, 1]} : vector<8x17xf32> to vector<8x1xf32>
    %208 = vector.extract_strided_slice %112 {offsets = [15, 0], sizes = [1, 1024], strides = [1, 1]} : vector<16x1024xf32> to vector<1x1024xf32>
    %209 = vector.broadcast %207 : vector<8x1xf32> to vector<8x1024xf32>
    %210 = vector.broadcast %208 : vector<1x1024xf32> to vector<8x1024xf32>
    %211 = arith.mulf %209, %210 : vector<8x1024xf32>
    %212 = arith.addf %206, %211 : vector<8x1024xf32>
    %cst_8 = arith.constant 0.000000e+00 : f32
    %213 = vector.broadcast %cst_8 : f32 to vector<8x1024xf32>
    %214 = arith.cmpf oge, %212, %213 : vector<8x1024xf32>
    %cst_9 = arith.constant 0.00999999977 : f32
    %215 = vector.broadcast %cst_9 : f32 to vector<8x1024xf32>
    %216 = arith.mulf %215, %212 : vector<8x1024xf32>
    %217 = arith.select %214, %212, %216 : vector<8x1024xi1>, vector<8x1024xf32>
    %218 = vector.extract_strided_slice %0 {offsets = [36, 0], sizes = [4, 17], strides = [1, 1]} : vector<42x17xf32> to vector<4x17xf32>
    %219 = vector.extract_strided_slice %218 {offsets = [0, 8], sizes = [4, 1], strides = [1, 1]} : vector<4x17xf32> to vector<4x1xf32>
    %220 = vector.shape_cast %219 : vector<4x1xf32> to vector<4x1xf32>
    %221 = vector.broadcast %220 : vector<4x1xf32> to vector<4x1024xf32>
    %222 = vector.extract_strided_slice %218 {offsets = [0, 0], sizes = [4, 1], strides = [1, 1]} : vector<4x17xf32> to vector<4x1xf32>
    %223 = vector.extract_strided_slice %217 {offsets = [0, 0], sizes = [1, 1024], strides = [1, 1]} : vector<8x1024xf32> to vector<1x1024xf32>
    %224 = vector.broadcast %222 : vector<4x1xf32> to vector<4x1024xf32>
    %225 = vector.broadcast %223 : vector<1x1024xf32> to vector<4x1024xf32>
    %226 = arith.mulf %224, %225 : vector<4x1024xf32>
    %227 = arith.addf %221, %226 : vector<4x1024xf32>
    %228 = vector.extract_strided_slice %218 {offsets = [0, 1], sizes = [4, 1], strides = [1, 1]} : vector<4x17xf32> to vector<4x1xf32>
    %229 = vector.extract_strided_slice %217 {offsets = [1, 0], sizes = [1, 1024], strides = [1, 1]} : vector<8x1024xf32> to vector<1x1024xf32>
    %230 = vector.broadcast %228 : vector<4x1xf32> to vector<4x1024xf32>
    %231 = vector.broadcast %229 : vector<1x1024xf32> to vector<4x1024xf32>
    %232 = arith.mulf %230, %231 : vector<4x1024xf32>
    %233 = arith.addf %227, %232 : vector<4x1024xf32>
    %234 = vector.extract_strided_slice %218 {offsets = [0, 2], sizes = [4, 1], strides = [1, 1]} : vector<4x17xf32> to vector<4x1xf32>
    %235 = vector.extract_strided_slice %217 {offsets = [2, 0], sizes = [1, 1024], strides = [1, 1]} : vector<8x1024xf32> to vector<1x1024xf32>
    %236 = vector.broadcast %234 : vector<4x1xf32> to vector<4x1024xf32>
    %237 = vector.broadcast %235 : vector<1x1024xf32> to vector<4x1024xf32>
    %238 = arith.mulf %236, %237 : vector<4x1024xf32>
    %239 = arith.addf %233, %238 : vector<4x1024xf32>
    %240 = vector.extract_strided_slice %218 {offsets = [0, 3], sizes = [4, 1], strides = [1, 1]} : vector<4x17xf32> to vector<4x1xf32>
    %241 = vector.extract_strided_slice %217 {offsets = [3, 0], sizes = [1, 1024], strides = [1, 1]} : vector<8x1024xf32> to vector<1x1024xf32>
    %242 = vector.broadcast %240 : vector<4x1xf32> to vector<4x1024xf32>
    %243 = vector.broadcast %241 : vector<1x1024xf32> to vector<4x1024xf32>
    %244 = arith.mulf %242, %243 : vector<4x1024xf32>
    %245 = arith.addf %239, %244 : vector<4x1024xf32>
    %246 = vector.extract_strided_slice %218 {offsets = [0, 4], sizes = [4, 1], strides = [1, 1]} : vector<4x17xf32> to vector<4x1xf32>
    %247 = vector.extract_strided_slice %217 {offsets = [4, 0], sizes = [1, 1024], strides = [1, 1]} : vector<8x1024xf32> to vector<1x1024xf32>
    %248 = vector.broadcast %246 : vector<4x1xf32> to vector<4x1024xf32>
    %249 = vector.broadcast %247 : vector<1x1024xf32> to vector<4x1024xf32>
    %250 = arith.mulf %248, %249 : vector<4x1024xf32>
    %251 = arith.addf %245, %250 : vector<4x1024xf32>
    %252 = vector.extract_strided_slice %218 {offsets = [0, 5], sizes = [4, 1], strides = [1, 1]} : vector<4x17xf32> to vector<4x1xf32>
    %253 = vector.extract_strided_slice %217 {offsets = [5, 0], sizes = [1, 1024], strides = [1, 1]} : vector<8x1024xf32> to vector<1x1024xf32>
    %254 = vector.broadcast %252 : vector<4x1xf32> to vector<4x1024xf32>
    %255 = vector.broadcast %253 : vector<1x1024xf32> to vector<4x1024xf32>
    %256 = arith.mulf %254, %255 : vector<4x1024xf32>
    %257 = arith.addf %251, %256 : vector<4x1024xf32>
    %258 = vector.extract_strided_slice %218 {offsets = [0, 6], sizes = [4, 1], strides = [1, 1]} : vector<4x17xf32> to vector<4x1xf32>
    %259 = vector.extract_strided_slice %217 {offsets = [6, 0], sizes = [1, 1024], strides = [1, 1]} : vector<8x1024xf32> to vector<1x1024xf32>
    %260 = vector.broadcast %258 : vector<4x1xf32> to vector<4x1024xf32>
    %261 = vector.broadcast %259 : vector<1x1024xf32> to vector<4x1024xf32>
    %262 = arith.mulf %260, %261 : vector<4x1024xf32>
    %263 = arith.addf %257, %262 : vector<4x1024xf32>
    %264 = vector.extract_strided_slice %218 {offsets = [0, 7], sizes = [4, 1], strides = [1, 1]} : vector<4x17xf32> to vector<4x1xf32>
    %265 = vector.extract_strided_slice %217 {offsets = [7, 0], sizes = [1, 1024], strides = [1, 1]} : vector<8x1024xf32> to vector<1x1024xf32>
    %266 = vector.broadcast %264 : vector<4x1xf32> to vector<4x1024xf32>
    %267 = vector.broadcast %265 : vector<1x1024xf32> to vector<4x1024xf32>
    %268 = arith.mulf %266, %267 : vector<4x1024xf32>
    %269 = arith.addf %263, %268 : vector<4x1024xf32>
    %cst_10 = arith.constant 0.000000e+00 : f32
    %270 = vector.broadcast %cst_10 : f32 to vector<4x1024xf32>
    %271 = arith.cmpf oge, %269, %270 : vector<4x1024xf32>
    %cst_11 = arith.constant 0.00999999977 : f32
    %272 = vector.broadcast %cst_11 : f32 to vector<4x1024xf32>
    %273 = arith.mulf %272, %269 : vector<4x1024xf32>
    %274 = arith.select %271, %269, %273 : vector<4x1024xi1>, vector<4x1024xf32>
    %275 = vector.extract_strided_slice %0 {offsets = [40, 0], sizes = [2, 17], strides = [1, 1]} : vector<42x17xf32> to vector<2x17xf32>
    %276 = vector.extract_strided_slice %275 {offsets = [0, 4], sizes = [2, 1], strides = [1, 1]} : vector<2x17xf32> to vector<2x1xf32>
    %277 = vector.shape_cast %276 : vector<2x1xf32> to vector<2x1xf32>
    %278 = vector.broadcast %277 : vector<2x1xf32> to vector<2x1024xf32>
    %279 = vector.extract_strided_slice %275 {offsets = [0, 0], sizes = [2, 1], strides = [1, 1]} : vector<2x17xf32> to vector<2x1xf32>
    %280 = vector.extract_strided_slice %274 {offsets = [0, 0], sizes = [1, 1024], strides = [1, 1]} : vector<4x1024xf32> to vector<1x1024xf32>
    %281 = vector.broadcast %279 : vector<2x1xf32> to vector<2x1024xf32>
    %282 = vector.broadcast %280 : vector<1x1024xf32> to vector<2x1024xf32>
    %283 = arith.mulf %281, %282 : vector<2x1024xf32>
    %284 = arith.addf %278, %283 : vector<2x1024xf32>
    %285 = vector.extract_strided_slice %275 {offsets = [0, 1], sizes = [2, 1], strides = [1, 1]} : vector<2x17xf32> to vector<2x1xf32>
    %286 = vector.extract_strided_slice %274 {offsets = [1, 0], sizes = [1, 1024], strides = [1, 1]} : vector<4x1024xf32> to vector<1x1024xf32>
    %287 = vector.broadcast %285 : vector<2x1xf32> to vector<2x1024xf32>
    %288 = vector.broadcast %286 : vector<1x1024xf32> to vector<2x1024xf32>
    %289 = arith.mulf %287, %288 : vector<2x1024xf32>
    %290 = arith.addf %284, %289 : vector<2x1024xf32>
    %291 = vector.extract_strided_slice %275 {offsets = [0, 2], sizes = [2, 1], strides = [1, 1]} : vector<2x17xf32> to vector<2x1xf32>
    %292 = vector.extract_strided_slice %274 {offsets = [2, 0], sizes = [1, 1024], strides = [1, 1]} : vector<4x1024xf32> to vector<1x1024xf32>
    %293 = vector.broadcast %291 : vector<2x1xf32> to vector<2x1024xf32>
    %294 = vector.broadcast %292 : vector<1x1024xf32> to vector<2x1024xf32>
    %295 = arith.mulf %293, %294 : vector<2x1024xf32>
    %296 = arith.addf %290, %295 : vector<2x1024xf32>
    %297 = vector.extract_strided_slice %275 {offsets = [0, 3], sizes = [2, 1], strides = [1, 1]} : vector<2x17xf32> to vector<2x1xf32>
    %298 = vector.extract_strided_slice %274 {offsets = [3, 0], sizes = [1, 1024], strides = [1, 1]} : vector<4x1024xf32> to vector<1x1024xf32>
    %299 = vector.broadcast %297 : vector<2x1xf32> to vector<2x1024xf32>
    %300 = vector.broadcast %298 : vector<1x1024xf32> to vector<2x1024xf32>
    %301 = arith.mulf %299, %300 : vector<2x1024xf32>
    %302 = arith.addf %296, %301 : vector<2x1024xf32>
    %c0_12 = arith.constant 0 : index
    %c0_13 = arith.constant 0 : index
    %303 = vector.load %arg3[%c0_12, %c0_13] : memref<2x1024xf32, #tpu.memory_space<vmem>>, vector<2x1024xf32>
    tpu.vector_store %arg3[%c0_12, %c0_13], %302 {strides = array<i32>} : memref<2x1024xf32, #tpu.memory_space<vmem>>, vector<2x1024xf32>,
    return
  }
  func.func @transform_0(%arg0: i32) -> (i32, i32) {
    %c0_i32 = arith.constant 0 : i32
    %c0_i32_0 = arith.constant 0 : i32
    %c0_i32_1 = arith.constant 0 : i32
    return %c0_i32, %c0_i32_0 : i32, i32
  }
  func.func @transform_1(%arg0: i32) -> (i32, i32) {
    %c0_i32 = arith.constant 0 : i32
    %c0_i32_0 = arith.constant 0 : i32
    return %c0_i32, %arg0 : i32, i32
  }
  func.func @transform_2(%arg0: i32) -> (i32, i32) {
    %c0_i32 = arith.constant 0 : i32
    %c0_i32_0 = arith.constant 0 : i32
    return %c0_i32, %arg0 : i32, i32
  }
}

</mosaic_0001>

<llo_original>
// kernel: _mlp_forward_jit.1
$region0: #{_mlp_forward_jit.1}
  #allocation0 [shape = 'u32[]', space=smem, size = 0x4, offset = 0x4, fixed_abs, tag = 'smem constant byte address 0x4 - core index']
  #allocation1 [shape = 'u32[144,128]{1,0:T(1,128)}', space=vmem, size = 0x12000, scoped, tag = 'internal scratch']
  %s0 = inlined_call_operand.vmem [shape: f32[42,17], index: 0, kind: input, shape index: {}]
  %s1 = inlined_call_operand.vmem [shape: f32[2,1000], index: 1, kind: input, shape index: {}]
  %s2 = inlined_call_operand.hbm [shape: f32[2,1000], index: 2, kind: output, shape index: {}]
  %s3 = sld [smem:[#allocation0]]
  $region18: #{_mlp_forward_jit.1} parent=0
    _
  %s5 = ssub.s32 1, %s3
  %s6 = scalar_select 0, %s5, %s3
  $region1: #{_mlp_forward_jit.1} parent=0
    #allocation2 [shape = 'u8[8192]{0}', space=vmem, size = 0x2000, scoped, tag = 'output window, operand 0, single buffered']
    #allocation3 [shape = 's32[1]{0}', space=sflag, size = 0x4, scoped, tag = 'scoped memory for _mlp_forward_jit.1']
    %7 = vsyncpa [#allocation3], 0
    // Predicated region
    $region2: #{_mlp_forward_jit.1} parent=1 // pred_check
      _
    $region3: #{_mlp_forward_jit.1} parent=1 // pred_check_branch
      %9 = sbr.rel (0) target = $region5
    $region4: #{_mlp_forward_jit.1} parent=1 // pred_region
      _
    $region5: #{_mlp_forward_jit.1} parent=1 // pred_fallthru
      _
    // Predicated region
    $region6: #{_mlp_forward_jit.1} parent=1 // pred_check
      _
    $region7: #{_mlp_forward_jit.1} parent=1 // pred_check_branch
      %11 = sbr.rel (0) target = $region9
    $region8: #{_mlp_forward_jit.1} parent=1 // pred_region
      _
    $region9: #{_mlp_forward_jit.1} parent=1 // pred_fallthru
      _
    %v12 = vld [vmem:[%s0] sm:$0xff]
    %v13 = vld [vmem:[%s0 + $0x8] sm:$0xff]
    %v14 = vld [vmem:[%s0 + $0x10] sm:$0xff]
    %v15 = vld [vmem:[%s0 + $0x18] sm:$0xff]
    %v16 = vld [vmem:[%s0 + $0x20] sm:$0xff]
    %v17 = vld [vmem:[%s0 + $0x28] sm:$0x3]
    %v18 = vld [vmem:[%s1] sm:$0xff]
    %v19 = vld [vmem:[%s1 + $0x8] sm:$0xff]
    %21 = vset.pattern.permute.xlu0 2
    %22 = vperm.xlu0 %21, %v12
    %v23 = vpop.permute.xlu0 %22
    %25 = vset.pattern.permute.xlu0 0
    %26 = vperm.xlu0 %25, %v12
    %v27 = vpop.permute.xlu0 %26
    %v31 = vlaneseq
    %v32 = vshrl.u32 %v31, 7
    %v33 = vsub.s32 0, %v32
    %v34 = vrot.slane %v18, %v33
    %v35 = vlaneseq
    %v36 = vshrl.u32 %v35, 7
    %v37 = vsub.s32 2, %v36
    %v38 = vrot.slane %v18, %v37
    %v39 = vlaneseq
    %v40 = vshrl.u32 %v39, 7
    %v41 = vsub.s32 4, %v40
    %v42 = vrot.slane %v18, %v41
    %v43 = vlaneseq
    %v44 = vshrl.u32 %v43, 7
    %v45 = vsub.s32 6, %v44
    %v46 = vrot.slane %v18, %v45
    %v47 = vlaneseq
    %v48 = vshrl.u32 %v47, 7
    %v49 = vsub.s32 0, %v48
    %v50 = vrot.slane %v19, %v49
    %v51 = vlaneseq
    %v52 = vshrl.u32 %v51, 7
    %v53 = vsub.s32 2, %v52
    %v54 = vrot.slane %v19, %v53
    %v55 = vlaneseq
    %v56 = vshrl.u32 %v55, 7
    %v57 = vsub.s32 4, %v56
    %v58 = vrot.slane %v19, %v57
    %v59 = vlaneseq
    %v60 = vshrl.u32 %v59, 7
    %v61 = vsub.s32 6, %v60
    %v62 = vrot.slane %v19, %v61
    %v71 = vlaneseq
    %v72 = vshrl.u32 %v71, 7
    %v73 = vsub.s32 0, %v72
    %v74 = vrot.slane %v34, %v73
    %v75 = vlaneseq
    %v76 = vshrl.u32 %v75, 7
    %v77 = vsub.s32 0, %v76
    %v78 = vrot.slane %v38, %v77
    %v79 = vlaneseq
    %v80 = vshrl.u32 %v79, 7
    %v81 = vsub.s32 0, %v80
    %v82 = vrot.slane %v42, %v81
    %v83 = vlaneseq
    %v84 = vshrl.u32 %v83, 7
    %v85 = vsub.s32 0, %v84
    %v86 = vrot.slane %v46, %v85
    %v87 = vlaneseq
    %v88 = vshrl.u32 %v87, 7
    %v89 = vsub.s32 0, %v88
    %v90 = vrot.slane %v50, %v89
    %v91 = vlaneseq
    %v92 = vshrl.u32 %v91, 7
    %v93 = vsub.s32 0, %v92
    %v94 = vrot.slane %v54, %v93
    %v95 = vlaneseq
    %v96 = vshrl.u32 %v95, 7
    %v97 = vsub.s32 0, %v96
    %v98 = vrot.slane %v58, %v97
    %v99 = vlaneseq
    %v100 = vshrl.u32 %v99, 7
    %v101 = vsub.s32 0, %v100
    %v102 = vrot.slane %v62, %v101
    %v103 = vmul.f32 %v27, %v74
    %v104 = vmul.f32 %v27, %v78
    %v105 = vmul.f32 %v27, %v82
    %v106 = vmul.f32 %v27, %v86
    %v107 = vmul.f32 %v27, %v90
    %v108 = vmul.f32 %v27, %v94
    %v109 = vmul.f32 %v27, %v98
    %v110 = vmul.f32 %v27, %v102
    %v111 = vadd.f32 %v23, %v103
    %v112 = vadd.f32 %v23, %v104
    %v113 = vadd.f32 %v23, %v105
    %v114 = vadd.f32 %v23, %v106
    %v115 = vadd.f32 %v23, %v107
    %v116 = vadd.f32 %v23, %v108
    %v117 = vadd.f32 %v23, %v109
    %v118 = vadd.f32 %v23, %v110
    %119 = vset.pattern.permute.xlu0 1
    %120 = vperm.xlu0 %119, %v12
    %v121 = vpop.permute.xlu0 %120
    %v123 = vlaneseq
    %v124 = vshrl.u32 %v123, 7
    %v125 = vsub.s32 1, %v124
    %v126 = vrot.slane %v18, %v125
    %v127 = vlaneseq
    %v128 = vshrl.u32 %v127, 7
    %v129 = vsub.s32 3, %v128
    %v130 = vrot.slane %v18, %v129
    %v131 = vlaneseq
    %v132 = vshrl.u32 %v131, 7
    %v133 = vsub.s32 5, %v132
    %v134 = vrot.slane %v18, %v133
    %v135 = vlaneseq
    %v136 = vshrl.u32 %v135, 7
    %v137 = vsub.s32 7, %v136
    %v138 = vrot.slane %v18, %v137
    %v139 = vlaneseq
    %v140 = vshrl.u32 %v139, 7
    %v141 = vsub.s32 1, %v140
    %v142 = vrot.slane %v19, %v141
    %v143 = vlaneseq
    %v144 = vshrl.u32 %v143, 7
    %v145 = vsub.s32 3, %v144
    %v146 = vrot.slane %v19, %v145
    %v147 = vlaneseq
    %v148 = vshrl.u32 %v147, 7
    %v149 = vsub.s32 5, %v148
    %v150 = vrot.slane %v19, %v149
    %v151 = vlaneseq
    %v152 = vshrl.u32 %v151, 7
    %v153 = vsub.s32 7, %v152
    %v154 = vrot.slane %v19, %v153
    %v163 = vlaneseq
    %v164 = vshrl.u32 %v163, 7
    %v165 = vsub.s32 1, %v164
    %v166 = vrot.slane %v126, %v165
    %v167 = vlaneseq
    %v168 = vshrl.u32 %v167, 7
    %v169 = vsub.s32 1, %v168
    %v170 = vrot.slane %v130, %v169
    %v171 = vlaneseq
    %v172 = vshrl.u32 %v171, 7
    %v173 = vsub.s32 1, %v172
    %v174 = vrot.slane %v134, %v173
    %v175 = vlaneseq
    %v176 = vshrl.u32 %v175, 7
    %v177 = vsub.s32 1, %v176
    %v178 = vrot.slane %v138, %v177
    %v179 = vlaneseq
    %v180 = vshrl.u32 %v179, 7
    %v181 = vsub.s32 1, %v180
    %v182 = vrot.slane %v142, %v181
    %v183 = vlaneseq
    %v184 = vshrl.u32 %v183, 7
    %v185 = vsub.s32 1, %v184
    %v186 = vrot.slane %v146, %v185
    %v187 = vlaneseq
    %v188 = vshrl.u32 %v187, 7
    %v189 = vsub.s32 1, %v188
    %v190 = vrot.slane %v150, %v189
    %v191 = vlaneseq
    %v192 = vshrl.u32 %v191, 7
    %v193 = vsub.s32 1, %v192
    %v194 = vrot.slane %v154, %v193
    %v195 = vmul.f32 %v121, %v166
    %v196 = vmul.f32 %v121, %v170
    %v197 = vmul.f32 %v121, %v174
    %v198 = vmul.f32 %v121, %v178
    %v199 = vmul.f32 %v121, %v182
    %v200 = vmul.f32 %v121, %v186
    %v201 = vmul.f32 %v121, %v190
    %v202 = vmul.f32 %v121, %v194
    %v203 = vadd.f32 %v111, %v195
    %v204 = vadd.f32 %v112, %v196
    %v205 = vadd.f32 %v113, %v197
    %v206 = vadd.f32 %v114, %v198
    %v207 = vadd.f32 %v115, %v199
    %v208 = vadd.f32 %v116, %v200
    %v209 = vadd.f32 %v117, %v201
    %v210 = vadd.f32 %v118, %v202
    %vm211 = vcmp.ge.f32.partialorder %v203, 0.0
    %vm212 = vcmp.ge.f32.partialorder %v204, 0.0
    %vm213 = vcmp.ge.f32.partialorder %v205, 0.0
    %vm214 = vcmp.ge.f32.partialorder %v206, 0.0
    %vm215 = vcmp.ge.f32.partialorder %v207, 0.0
    %vm216 = vcmp.ge.f32.partialorder %v208, 0.0
    %vm217 = vcmp.ge.f32.partialorder %v209, 0.0
    %vm218 = vcmp.ge.f32.partialorder %v210, 0.0
    %v219 = vmul.f32 %v203, 0.01
    %v220 = vmul.f32 %v204, 0.01
    %v221 = vmul.f32 %v205, 0.01
    %v222 = vmul.f32 %v206, 0.01
    %v223 = vmul.f32 %v207, 0.01
    %v224 = vmul.f32 %v208, 0.01
    %v225 = vmul.f32 %v209, 0.01
    %v226 = vmul.f32 %v210, 0.01
    %v227 = vsel %vm211, %v203, %v219
    %v228 = vsel %vm212, %v204, %v220
    %v229 = vsel %vm213, %v205, %v221
    %v230 = vsel %vm214, %v206, %v222
    %v231 = vsel %vm215, %v207, %v223
    %v232 = vsel %vm216, %v208, %v224
    %v233 = vsel %vm217, %v209, %v225
    %v234 = vsel %vm218, %v210, %v226
    %235 = vset.pattern.permute.xlu0 4
    %236 = vperm.xlu0 %235, %v12
    %v237 = vpop.permute.xlu0 %236
    %240 = vset.pattern.permute.xlu0 4
    %241 = vperm.xlu0 %240, %v13
    %v242 = vpop.permute.xlu0 %241
    %244 = vset.pattern.permute.xlu0 0
    %245 = vperm.xlu0 %244, %v13
    %v246 = vpop.permute.xlu0 %245
    %v248 = vlaneseq
    %v249 = vshrl.u32 %v248, 7
    %v250 = vsub.s32 0, %v249
    %v251 = vrot.slane %v227, %v250
    %v252 = vlaneseq
    %v253 = vshrl.u32 %v252, 7
    %v254 = vsub.s32 0, %v253
    %v255 = vrot.slane %v228, %v254
    %v256 = vlaneseq
    %v257 = vshrl.u32 %v256, 7
    %v258 = vsub.s32 0, %v257
    %v259 = vrot.slane %v229, %v258
    %v260 = vlaneseq
    %v261 = vshrl.u32 %v260, 7
    %v262 = vsub.s32 0, %v261
    %v263 = vrot.slane %v230, %v262
    %v264 = vlaneseq
    %v265 = vshrl.u32 %v264, 7
    %v266 = vsub.s32 0, %v265
    %v267 = vrot.slane %v231, %v266
    %v268 = vlaneseq
    %v269 = vshrl.u32 %v268, 7
    %v270 = vsub.s32 0, %v269
    %v271 = vrot.slane %v232, %v270
    %v272 = vlaneseq
    %v273 = vshrl.u32 %v272, 7
    %v274 = vsub.s32 0, %v273
    %v275 = vrot.slane %v233, %v274
    %v276 = vlaneseq
    %v277 = vshrl.u32 %v276, 7
    %v278 = vsub.s32 0, %v277
    %v279 = vrot.slane %v234, %v278
    %v280 = vmul.f32 %v27, %v251
    %v281 = vmul.f32 %v27, %v255
    %v282 = vmul.f32 %v27, %v259
    %v283 = vmul.f32 %v27, %v263
    %v284 = vmul.f32 %v27, %v267
    %v285 = vmul.f32 %v27, %v271
    %v286 = vmul.f32 %v27, %v275
    %v287 = vmul.f32 %v27, %v279
    %v288 = vmul.f32 %v246, %v251
    %v289 = vmul.f32 %v246, %v255
    %v290 = vmul.f32 %v246, %v259
    %v291 = vmul.f32 %v246, %v263
    %v292 = vmul.f32 %v246, %v267
    %v293 = vmul.f32 %v246, %v271
    %v294 = vmul.f32 %v246, %v275
    %v295 = vmul.f32 %v246, %v279
    %v296 = vadd.f32 %v237, %v280
    %v297 = vadd.f32 %v237, %v281
    %v298 = vadd.f32 %v237, %v282
    %v299 = vadd.f32 %v237, %v283
    %v300 = vadd.f32 %v237, %v284
    %v301 = vadd.f32 %v237, %v285
    %v302 = vadd.f32 %v237, %v286
    %v303 = vadd.f32 %v237, %v287
    %v304 = vadd.f32 %v242, %v288
    %v305 = vadd.f32 %v242, %v289
    %v306 = vadd.f32 %v242, %v290
    %v307 = vadd.f32 %v242, %v291
    %v308 = vadd.f32 %v242, %v292
    %v309 = vadd.f32 %v242, %v293
    %v310 = vadd.f32 %v242, %v294
    %v311 = vadd.f32 %v242, %v295
    %312 = vset.pattern.permute.xlu0 1
    %313 = vperm.xlu0 %312, %v13
    %v314 = vpop.permute.xlu0 %313
    %v316 = vlaneseq
    %v317 = vshrl.u32 %v316, 7
    %v318 = vsub.s32 1, %v317
    %v319 = vrot.slane %v227, %v318
    %v320 = vlaneseq
    %v321 = vshrl.u32 %v320, 7
    %v322 = vsub.s32 1, %v321
    %v323 = vrot.slane %v228, %v322
    %v324 = vlaneseq
    %v325 = vshrl.u32 %v324, 7
    %v326 = vsub.s32 1, %v325
    %v327 = vrot.slane %v229, %v326
    %v328 = vlaneseq
    %v329 = vshrl.u32 %v328, 7
    %v330 = vsub.s32 1, %v329
    %v331 = vrot.slane %v230, %v330
    %v332 = vlaneseq
    %v333 = vshrl.u32 %v332, 7
    %v334 = vsub.s32 1, %v333
    %v335 = vrot.slane %v231, %v334
    %v336 = vlaneseq
    %v337 = vshrl.u32 %v336, 7
    %v338 = vsub.s32 1, %v337
    %v339 = vrot.slane %v232, %v338
    %v340 = vlaneseq
    %v341 = vshrl.u32 %v340, 7
    %v342 = vsub.s32 1, %v341
    %v343 = vrot.slane %v233, %v342
    %v344 = vlaneseq
    %v345 = vshrl.u32 %v344, 7
    %v346 = vsub.s32 1, %v345
    %v347 = vrot.slane %v234, %v346
    %v348 = vmul.f32 %v121, %v319
    %v349 = vmul.f32 %v121, %v323
    %v350 = vmul.f32 %v121, %v327
    %v351 = vmul.f32 %v121, %v331
    %v352 = vmul.f32 %v121, %v335
    %v353 = vmul.f32 %v121, %v339
    %v354 = vmul.f32 %v121, %v343
    %v355 = vmul.f32 %v121, %v347
    %v356 = vmul.f32 %v314, %v319
    %v357 = vmul.f32 %v314, %v323
    %v358 = vmul.f32 %v314, %v327
    %v359 = vmul.f32 %v314, %v331
    %v360 = vmul.f32 %v314, %v335
    %v361 = vmul.f32 %v314, %v339
    %v362 = vmul.f32 %v314, %v343
    %v363 = vmul.f32 %v314, %v347
    %v364 = vadd.f32 %v296, %v348
    %v365 = vadd.f32 %v297, %v349
    %v366 = vadd.f32 %v298, %v350
    %v367 = vadd.f32 %v299, %v351
    %v368 = vadd.f32 %v300, %v352
    %v369 = vadd.f32 %v301, %v353
    %v370 = vadd.f32 %v302, %v354
    %v371 = vadd.f32 %v303, %v355
    %v372 = vadd.f32 %v304, %v356
    %v373 = vadd.f32 %v305, %v357
    %v374 = vadd.f32 %v306, %v358
    %v375 = vadd.f32 %v307, %v359
    %v376 = vadd.f32 %v308, %v360
    %v377 = vadd.f32 %v309, %v361
    %v378 = vadd.f32 %v310, %v362
    %v379 = vadd.f32 %v311, %v363
    %380 = vset.pattern.permute.xlu0 2
    %381 = vperm.xlu0 %380, %v13
    %v382 = vpop.permute.xlu0 %381
    %v384 = vlaneseq
    %v385 = vshrl.u32 %v384, 7
    %v386 = vsub.s32 2, %v385
    %v387 = vrot.slane %v227, %v386
    %v388 = vlaneseq
    %v389 = vshrl.u32 %v388, 7
    %v390 = vsub.s32 2, %v389
    %v391 = vrot.slane %v228, %v390
    %v392 = vlaneseq
    %v393 = vshrl.u32 %v392, 7
    %v394 = vsub.s32 2, %v393
    %v395 = vrot.slane %v229, %v394
    %v396 = vlaneseq
    %v397 = vshrl.u32 %v396, 7
    %v398 = vsub.s32 2, %v397
    %v399 = vrot.slane %v230, %v398
    %v400 = vlaneseq
    %v401 = vshrl.u32 %v400, 7
    %v402 = vsub.s32 2, %v401
    %v403 = vrot.slane %v231, %v402
    %v404 = vlaneseq
    %v405 = vshrl.u32 %v404, 7
    %v406 = vsub.s32 2, %v405
    %v407 = vrot.slane %v232, %v406
    %v408 = vlaneseq
    %v409 = vshrl.u32 %v408, 7
    %v410 = vsub.s32 2, %v409
    %v411 = vrot.slane %v233, %v410
    %v412 = vlaneseq
    %v413 = vshrl.u32 %v412, 7
    %v414 = vsub.s32 2, %v413
    %v415 = vrot.slane %v234, %v414
    %v416 = vmul.f32 %v23, %v387
    %v417 = vmul.f32 %v23, %v391
    %v418 = vmul.f32 %v23, %v395
    %v419 = vmul.f32 %v23, %v399
    %v420 = vmul.f32 %v23, %v403
    %v421 = vmul.f32 %v23, %v407
    %v422 = vmul.f32 %v23, %v411
    %v423 = vmul.f32 %v23, %v415
    %v424 = vmul.f32 %v382, %v387
    %v425 = vmul.f32 %v382, %v391
    %v426 = vmul.f32 %v382, %v395
    %v427 = vmul.f32 %v382, %v399
    %v428 = vmul.f32 %v382, %v403
    %v429 = vmul.f32 %v382, %v407
    %v430 = vmul.f32 %v382, %v411
    %v431 = vmul.f32 %v382, %v415
    %v432 = vadd.f32 %v364, %v416
    %v433 = vadd.f32 %v365, %v417
    %v434 = vadd.f32 %v366, %v418
    %v435 = vadd.f32 %v367, %v419
    %v436 = vadd.f32 %v368, %v420
    %v437 = vadd.f32 %v369, %v421
    %v438 = vadd.f32 %v370, %v422
    %v439 = vadd.f32 %v371, %v423
    %v440 = vadd.f32 %v372, %v424
    %v441 = vadd.f32 %v373, %v425
    %v442 = vadd.f32 %v374, %v426
    %v443 = vadd.f32 %v375, %v427
    %v444 = vadd.f32 %v376, %v428
    %v445 = vadd.f32 %v377, %v429
    %v446 = vadd.f32 %v378, %v430
    %v447 = vadd.f32 %v379, %v431
    %448 = vset.pattern.permute.xlu0 3
    %449 = vperm.xlu0 %448, %v12
    %v450 = vpop.permute.xlu0 %449
    %452 = vset.pattern.permute.xlu0 3
    %453 = vperm.xlu0 %452, %v13
    %v454 = vpop.permute.xlu0 %453
    %v456 = vlaneseq
    %v457 = vshrl.u32 %v456, 7
    %v458 = vsub.s32 3, %v457
    %v459 = vrot.slane %v227, %v458
    %v460 = vlaneseq
    %v461 = vshrl.u32 %v460, 7
    %v462 = vsub.s32 3, %v461
    %v463 = vrot.slane %v228, %v462
    %v464 = vlaneseq
    %v465 = vshrl.u32 %v464, 7
    %v466 = vsub.s32 3, %v465
    %v467 = vrot.slane %v229, %v466
    %v468 = vlaneseq
    %v469 = vshrl.u32 %v468, 7
    %v470 = vsub.s32 3, %v469
    %v471 = vrot.slane %v230, %v470
    %v472 = vlaneseq
    %v473 = vshrl.u32 %v472, 7
    %v474 = vsub.s32 3, %v473
    %v475 = vrot.slane %v231, %v474
    %v476 = vlaneseq
    %v477 = vshrl.u32 %v476, 7
    %v478 = vsub.s32 3, %v477
    %v479 = vrot.slane %v232, %v478
    %v480 = vlaneseq
    %v481 = vshrl.u32 %v480, 7
    %v482 = vsub.s32 3, %v481
    %v483 = vrot.slane %v233, %v482
    %v484 = vlaneseq
    %v485 = vshrl.u32 %v484, 7
    %v486 = vsub.s32 3, %v485
    %v487 = vrot.slane %v234, %v486
    %v488 = vmul.f32 %v450, %v459
    %v489 = vmul.f32 %v450, %v463
    %v490 = vmul.f32 %v450, %v467
    %v491 = vmul.f32 %v450, %v471
    %v492 = vmul.f32 %v450, %v475
    %v493 = vmul.f32 %v450, %v479
    %v494 = vmul.f32 %v450, %v483
    %v495 = vmul.f32 %v450, %v487
    %v496 = vmul.f32 %v454, %v459
    %v497 = vmul.f32 %v454, %v463
    %v498 = vmul.f32 %v454, %v467
    %v499 = vmul.f32 %v454, %v471
    %v500 = vmul.f32 %v454, %v475
    %v501 = vmul.f32 %v454, %v479
    %v502 = vmul.f32 %v454, %v483
    %v503 = vmul.f32 %v454, %v487
    %v504 = vadd.f32 %v432, %v488
    %v505 = vadd.f32 %v433, %v489
    %v506 = vadd.f32 %v434, %v490
    %v507 = vadd.f32 %v435, %v491
    %v508 = vadd.f32 %v436, %v492
    %v509 = vadd.f32 %v437, %v493
    %v510 = vadd.f32 %v438, %v494
    %v511 = vadd.f32 %v439, %v495
    %v512 = vadd.f32 %v440, %v496
    %v513 = vadd.f32 %v441, %v497
    %v514 = vadd.f32 %v442, %v498
    %v515 = vadd.f32 %v443, %v499
    %v516 = vadd.f32 %v444, %v500
    %v517 = vadd.f32 %v445, %v501
    %v518 = vadd.f32 %v446, %v502
    %v519 = vadd.f32 %v447, %v503
    %vm520 = vcmp.ge.f32.partialorder %v504, 0.0
    %vm521 = vcmp.ge.f32.partialorder %v505, 0.0
    %vm522 = vcmp.ge.f32.partialorder %v506, 0.0
    %vm523 = vcmp.ge.f32.partialorder %v507, 0.0
    %vm524 = vcmp.ge.f32.partialorder %v508, 0.0
    %vm525 = vcmp.ge.f32.partialorder %v509, 0.0
    %vm526 = vcmp.ge.f32.partialorder %v510, 0.0
    %vm527 = vcmp.ge.f32.partialorder %v511, 0.0
    %vm528 = vcmp.ge.f32.partialorder %v512, 0.0
    %vm529 = vcmp.ge.f32.partialorder %v513, 0.0
    %vm530 = vcmp.ge.f32.partialorder %v514, 0.0
    %vm531 = vcmp.ge.f32.partialorder %v515, 0.0
    %vm532 = vcmp.ge.f32.partialorder %v516, 0.0
    %vm533 = vcmp.ge.f32.partialorder %v517, 0.0
    %vm534 = vcmp.ge.f32.partialorder %v518, 0.0
    %vm535 = vcmp.ge.f32.partialorder %v519, 0.0
    %v536 = vmul.f32 %v504, 0.01
    %v537 = vmul.f32 %v505, 0.01
    %v538 = vmul.f32 %v506, 0.01
    %v539 = vmul.f32 %v507, 0.01
    %v540 = vmul.f32 %v508, 0.01
    %v541 = vmul.f32 %v509, 0.01
    %v542 = vmul.f32 %v510, 0.01
    %v543 = vmul.f32 %v511, 0.01
    %v544 = vmul.f32 %v512, 0.01
    %v545 = vmul.f32 %v513, 0.01
    %v546 = vmul.f32 %v514, 0.01
    %v547 = vmul.f32 %v515, 0.01
    %v548 = vmul.f32 %v516, 0.01
    %v549 = vmul.f32 %v517, 0.01
    %v550 = vmul.f32 %v518, 0.01
    %v551 = vmul.f32 %v519, 0.01
    %v552 = vsel %vm520, %v504, %v536
    %v553 = vsel %vm521, %v505, %v537
    %v554 = vsel %vm522, %v506, %v538
    %v555 = vsel %vm523, %v507, %v539
    %v556 = vsel %vm524, %v508, %v540
    %v557 = vsel %vm525, %v509, %v541
    %v558 = vsel %vm526, %v510, %v542
    %v559 = vsel %vm527, %v511, %v543
    %v560 = vsel %vm528, %v512, %v544
    %v561 = vsel %vm529, %v513, %v545
    %v562 = vsel %vm530, %v514, %v546
    %v563 = vsel %vm531, %v515, %v547
    %v564 = vsel %vm532, %v516, %v548
    %v565 = vsel %vm533, %v517, %v549
    %v566 = vsel %vm534, %v518, %v550
    %v567 = vsel %vm535, %v519, %v551
    %568 = vset.pattern.permute.xlu0 8
    %569 = vperm.xlu0 %568, %v13
    %v570 = vpop.permute.xlu0 %569
    %573 = vset.pattern.permute.xlu0 8
    %574 = vperm.xlu0 %573, %v14
    %v575 = vpop.permute.xlu0 %574
    %578 = vset.pattern.permute.xlu0 8
    %579 = vperm.xlu0 %578, %v15
    %v580 = vpop.permute.xlu0 %579
    %582 = vset.pattern.permute.xlu0 0
    %583 = vperm.xlu0 %582, %v14
    %v584 = vpop.permute.xlu0 %583
    %586 = vset.pattern.permute.xlu0 0
    %587 = vperm.xlu0 %586, %v15
    %v588 = vpop.permute.xlu0 %587
    %v590 = vlaneseq
    %v591 = vshrl.u32 %v590, 7
    %v592 = vsub.s32 4, %v591
    %v593 = vrot.slane %v552, %v592
    %v594 = vlaneseq
    %v595 = vshrl.u32 %v594, 7
    %v596 = vsub.s32 4, %v595
    %v597 = vrot.slane %v553, %v596
    %v598 = vlaneseq
    %v599 = vshrl.u32 %v598, 7
    %v600 = vsub.s32 4, %v599
    %v601 = vrot.slane %v554, %v600
    %v602 = vlaneseq
    %v603 = vshrl.u32 %v602, 7
    %v604 = vsub.s32 4, %v603
    %v605 = vrot.slane %v555, %v604
    %v606 = vlaneseq
    %v607 = vshrl.u32 %v606, 7
    %v608 = vsub.s32 4, %v607
    %v609 = vrot.slane %v556, %v608
    %v610 = vlaneseq
    %v611 = vshrl.u32 %v610, 7
    %v612 = vsub.s32 4, %v611
    %v613 = vrot.slane %v557, %v612
    %v614 = vlaneseq
    %v615 = vshrl.u32 %v614, 7
    %v616 = vsub.s32 4, %v615
    %v617 = vrot.slane %v558, %v616
    %v618 = vlaneseq
    %v619 = vshrl.u32 %v618, 7
    %v620 = vsub.s32 4, %v619
    %v621 = vrot.slane %v559, %v620
    %v622 = vmul.f32 %v246, %v593
    %v623 = vmul.f32 %v246, %v597
    %v624 = vmul.f32 %v246, %v601
    %v625 = vmul.f32 %v246, %v605
    %v626 = vmul.f32 %v246, %v609
    %v627 = vmul.f32 %v246, %v613
    %v628 = vmul.f32 %v246, %v617
    %v629 = vmul.f32 %v246, %v621
    %v630 = vmul.f32 %v584, %v593
    %v631 = vmul.f32 %v584, %v597
    %v632 = vmul.f32 %v584, %v601
    %v633 = vmul.f32 %v584, %v605
    %v634 = vmul.f32 %v584, %v609
    %v635 = vmul.f32 %v584, %v613
    %v636 = vmul.f32 %v584, %v617
    %v637 = vmul.f32 %v584, %v621
    %v638 = vmul.f32 %v588, %v593
    %v639 = vmul.f32 %v588, %v597
    %v640 = vmul.f32 %v588, %v601
    %v641 = vmul.f32 %v588, %v605
    %v642 = vmul.f32 %v588, %v609
    %v643 = vmul.f32 %v588, %v613
    %v644 = vmul.f32 %v588, %v617
    %v645 = vmul.f32 %v588, %v621
    %v646 = vadd.f32 %v570, %v622
    %v647 = vadd.f32 %v570, %v623
    %v648 = vadd.f32 %v570, %v624
    %v649 = vadd.f32 %v570, %v625
    %v650 = vadd.f32 %v570, %v626
    %v651 = vadd.f32 %v570, %v627
    %v652 = vadd.f32 %v570, %v628
    %v653 = vadd.f32 %v570, %v629
    %v654 = vadd.f32 %v575, %v630
    %v655 = vadd.f32 %v575, %v631
    %v656 = vadd.f32 %v575, %v632
    %v657 = vadd.f32 %v575, %v633
    %v658 = vadd.f32 %v575, %v634
    %v659 = vadd.f32 %v575, %v635
    %v660 = vadd.f32 %v575, %v636
    %v661 = vadd.f32 %v575, %v637
    %v662 = vadd.f32 %v580, %v638
    %v663 = vadd.f32 %v580, %v639
    %v664 = vadd.f32 %v580, %v640
    %v665 = vadd.f32 %v580, %v641
    %v666 = vadd.f32 %v580, %v642
    %v667 = vadd.f32 %v580, %v643
    %v668 = vadd.f32 %v580, %v644
    %v669 = vadd.f32 %v580, %v645
    %670 = vset.pattern.permute.xlu0 1
    %671 = vperm.xlu0 %670, %v14
    %v672 = vpop.permute.xlu0 %671
    %674 = vset.pattern.permute.xlu0 1
    %675 = vperm.xlu0 %674, %v15
    %v676 = vpop.permute.xlu0 %675
    %v678 = vlaneseq
    %v679 = vshrl.u32 %v678, 7
    %v680 = vsub.s32 5, %v679
    %v681 = vrot.slane %v552, %v680
    %v682 = vlaneseq
    %v683 = vshrl.u32 %v682, 7
    %v684 = vsub.s32 5, %v683
    %v685 = vrot.slane %v553, %v684
    %v686 = vlaneseq
    %v687 = vshrl.u32 %v686, 7
    %v688 = vsub.s32 5, %v687
    %v689 = vrot.slane %v554, %v688
    %v690 = vlaneseq
    %v691 = vshrl.u32 %v690, 7
    %v692 = vsub.s32 5, %v691
    %v693 = vrot.slane %v555, %v692
    %v694 = vlaneseq
    %v695 = vshrl.u32 %v694, 7
    %v696 = vsub.s32 5, %v695
    %v697 = vrot.slane %v556, %v696
    %v698 = vlaneseq
    %v699 = vshrl.u32 %v698, 7
    %v700 = vsub.s32 5, %v699
    %v701 = vrot.slane %v557, %v700
    %v702 = vlaneseq
    %v703 = vshrl.u32 %v702, 7
    %v704 = vsub.s32 5, %v703
    %v705 = vrot.slane %v558, %v704
    %v706 = vlaneseq
    %v707 = vshrl.u32 %v706, 7
    %v708 = vsub.s32 5, %v707
    %v709 = vrot.slane %v559, %v708
    %v710 = vmul.f32 %v314, %v681
    %v711 = vmul.f32 %v314, %v685
    %v712 = vmul.f32 %v314, %v689
    %v713 = vmul.f32 %v314, %v693
    %v714 = vmul.f32 %v314, %v697
    %v715 = vmul.f32 %v314, %v701
    %v716 = vmul.f32 %v314, %v705
    %v717 = vmul.f32 %v314, %v709
    %v718 = vmul.f32 %v672, %v681
    %v719 = vmul.f32 %v672, %v685
    %v720 = vmul.f32 %v672, %v689
    %v721 = vmul.f32 %v672, %v693
    %v722 = vmul.f32 %v672, %v697
    %v723 = vmul.f32 %v672, %v701
    %v724 = vmul.f32 %v672, %v705
    %v725 = vmul.f32 %v672, %v709
    %v726 = vmul.f32 %v676, %v681
    %v727 = vmul.f32 %v676, %v685
    %v728 = vmul.f32 %v676, %v689
    %v729 = vmul.f32 %v676, %v693
    %v730 = vmul.f32 %v676, %v697
    %v731 = vmul.f32 %v676, %v701
    %v732 = vmul.f32 %v676, %v705
    %v733 = vmul.f32 %v676, %v709
    %v734 = vadd.f32 %v646, %v710
    %v735 = vadd.f32 %v647, %v711
    %v736 = vadd.f32 %v648, %v712
    %v737 = vadd.f32 %v649, %v713
    %v738 = vadd.f32 %v650, %v714
    %v739 = vadd.f32 %v651, %v715
    %v740 = vadd.f32 %v652, %v716
    %v741 = vadd.f32 %v653, %v717
    %v742 = vadd.f32 %v654, %v718
    %v743 = vadd.f32 %v655, %v719
    %v744 = vadd.f32 %v656, %v720
    %v745 = vadd.f32 %v657, %v721
    %v746 = vadd.f32 %v658, %v722
    %v747 = vadd.f32 %v659, %v723
    %v748 = vadd.f32 %v660, %v724
    %v749 = vadd.f32 %v661, %v725
    %v750 = vadd.f32 %v662, %v726
    %v751 = vadd.f32 %v663, %v727
    %v752 = vadd.f32 %v664, %v728
    %v753 = vadd.f32 %v665, %v729
    %v754 = vadd.f32 %v666, %v730
    %v755 = vadd.f32 %v667, %v731
    %v756 = vadd.f32 %v668, %v732
    %v757 = vadd.f32 %v669, %v733
    %758 = vset.pattern.permute.xlu0 2
    %759 = vperm.xlu0 %758, %v14
    %v760 = vpop.permute.xlu0 %759
    %762 = vset.pattern.permute.xlu0 2
    %763 = vperm.xlu0 %762, %v15
    %v764 = vpop.permute.xlu0 %763
    %v766 = vlaneseq
    %v767 = vshrl.u32 %v766, 7
    %v768 = vsub.s32 6, %v767
    %v769 = vrot.slane %v552, %v768
    %v770 = vlaneseq
    %v771 = vshrl.u32 %v770, 7
    %v772 = vsub.s32 6, %v771
    %v773 = vrot.slane %v553, %v772
    %v774 = vlaneseq
    %v775 = vshrl.u32 %v774, 7
    %v776 = vsub.s32 6, %v775
    %v777 = vrot.slane %v554, %v776
    %v778 = vlaneseq
    %v779 = vshrl.u32 %v778, 7
    %v780 = vsub.s32 6, %v779
    %v781 = vrot.slane %v555, %v780
    %v782 = vlaneseq
    %v783 = vshrl.u32 %v782, 7
    %v784 = vsub.s32 6, %v783
    %v785 = vrot.slane %v556, %v784
    %v786 = vlaneseq
    %v787 = vshrl.u32 %v786, 7
    %v788 = vsub.s32 6, %v787
    %v789 = vrot.slane %v557, %v788
    %v790 = vlaneseq
    %v791 = vshrl.u32 %v790, 7
    %v792 = vsub.s32 6, %v791
    %v793 = vrot.slane %v558, %v792
    %v794 = vlaneseq
    %v795 = vshrl.u32 %v794, 7
    %v796 = vsub.s32 6, %v795
    %v797 = vrot.slane %v559, %v796
    %v798 = vmul.f32 %v382, %v769
    %v799 = vmul.f32 %v382, %v773
    %v800 = vmul.f32 %v382, %v777
    %v801 = vmul.f32 %v382, %v781
    %v802 = vmul.f32 %v382, %v785
    %v803 = vmul.f32 %v382, %v789
    %v804 = vmul.f32 %v382, %v793
    %v805 = vmul.f32 %v382, %v797
    %v806 = vmul.f32 %v760, %v769
    %v807 = vmul.f32 %v760, %v773
    %v808 = vmul.f32 %v760, %v777
    %v809 = vmul.f32 %v760, %v781
    %v810 = vmul.f32 %v760, %v785
    %v811 = vmul.f32 %v760, %v789
    %v812 = vmul.f32 %v760, %v793
    %v813 = vmul.f32 %v760, %v797
    %v814 = vmul.f32 %v764, %v769
    %v815 = vmul.f32 %v764, %v773
    %v816 = vmul.f32 %v764, %v777
    %v817 = vmul.f32 %v764, %v781
    %v818 = vmul.f32 %v764, %v785
    %v819 = vmul.f32 %v764, %v789
    %v820 = vmul.f32 %v764, %v793
    %v821 = vmul.f32 %v764, %v797
    %v822 = vadd.f32 %v734, %v798
    %v823 = vadd.f32 %v735, %v799
    %v824 = vadd.f32 %v736, %v800
    %v825 = vadd.f32 %v737, %v801
    %v826 = vadd.f32 %v738, %v802
    %v827 = vadd.f32 %v739, %v803
    %v828 = vadd.f32 %v740, %v804
    %v829 = vadd.f32 %v741, %v805
    %v830 = vadd.f32 %v742, %v806
    %v831 = vadd.f32 %v743, %v807
    %v832 = vadd.f32 %v744, %v808
    %v833 = vadd.f32 %v745, %v809
    %v834 = vadd.f32 %v746, %v810
    %v835 = vadd.f32 %v747, %v811
    %v836 = vadd.f32 %v748, %v812
    %v837 = vadd.f32 %v749, %v813
    %v838 = vadd.f32 %v750, %v814
    %v839 = vadd.f32 %v751, %v815
    %v840 = vadd.f32 %v752, %v816
    %v841 = vadd.f32 %v753, %v817
    %v842 = vadd.f32 %v754, %v818
    %v843 = vadd.f32 %v755, %v819
    %v844 = vadd.f32 %v756, %v820
    %v845 = vadd.f32 %v757, %v821
    %846 = vset.pattern.permute.xlu0 3
    %847 = vperm.xlu0 %846, %v14
    %v848 = vpop.permute.xlu0 %847
    %850 = vset.pattern.permute.xlu0 3
    %851 = vperm.xlu0 %850, %v15
    %v852 = vpop.permute.xlu0 %851
    %v854 = vlaneseq
    %v855 = vshrl.u32 %v854, 7
    %v856 = vsub.s32 7, %v855
    %v857 = vrot.slane %v552, %v856
    %v858 = vlaneseq
    %v859 = vshrl.u32 %v858, 7
    %v860 = vsub.s32 7, %v859
    %v861 = vrot.slane %v553, %v860
    %v862 = vlaneseq
    %v863 = vshrl.u32 %v862, 7
    %v864 = vsub.s32 7, %v863
    %v865 = vrot.slane %v554, %v864
    %v866 = vlaneseq
    %v867 = vshrl.u32 %v866, 7
    %v868 = vsub.s32 7, %v867
    %v869 = vrot.slane %v555, %v868
    %v870 = vlaneseq
    %v871 = vshrl.u32 %v870, 7
    %v872 = vsub.s32 7, %v871
    %v873 = vrot.slane %v556, %v872
    %v874 = vlaneseq
    %v875 = vshrl.u32 %v874, 7
    %v876 = vsub.s32 7, %v875
    %v877 = vrot.slane %v557, %v876
    %v878 = vlaneseq
    %v879 = vshrl.u32 %v878, 7
    %v880 = vsub.s32 7, %v879
    %v881 = vrot.slane %v558, %v880
    %v882 = vlaneseq
    %v883 = vshrl.u32 %v882, 7
    %v884 = vsub.s32 7, %v883
    %v885 = vrot.slane %v559, %v884
    %v886 = vmul.f32 %v454, %v857
    %v887 = vmul.f32 %v454, %v861
    %v888 = vmul.f32 %v454, %v865
    %v889 = vmul.f32 %v454, %v869
    %v890 = vmul.f32 %v454, %v873
    %v891 = vmul.f32 %v454, %v877
    %v892 = vmul.f32 %v454, %v881
    %v893 = vmul.f32 %v454, %v885
    %v894 = vmul.f32 %v848, %v857
    %v895 = vmul.f32 %v848, %v861
    %v896 = vmul.f32 %v848, %v865
    %v897 = vmul.f32 %v848, %v869
    %v898 = vmul.f32 %v848, %v873
    %v899 = vmul.f32 %v848, %v877
    %v900 = vmul.f32 %v848, %v881
    %v901 = vmul.f32 %v848, %v885
    %v902 = vmul.f32 %v852, %v857
    %v903 = vmul.f32 %v852, %v861
    %v904 = vmul.f32 %v852, %v865
    %v905 = vmul.f32 %v852, %v869
    %v906 = vmul.f32 %v852, %v873
    %v907 = vmul.f32 %v852, %v877
    %v908 = vmul.f32 %v852, %v881
    %v909 = vmul.f32 %v852, %v885
    %v910 = vadd.f32 %v822, %v886
    %v911 = vadd.f32 %v823, %v887
    %v912 = vadd.f32 %v824, %v888
    %v913 = vadd.f32 %v825, %v889
    %v914 = vadd.f32 %v826, %v890
    %v915 = vadd.f32 %v827, %v891
    %v916 = vadd.f32 %v828, %v892
    %v917 = vadd.f32 %v829, %v893
    %v918 = vadd.f32 %v830, %v894
    %v919 = vadd.f32 %v831, %v895
    %v920 = vadd.f32 %v832, %v896
    %v921 = vadd.f32 %v833, %v897
    %v922 = vadd.f32 %v834, %v898
    %v923 = vadd.f32 %v835, %v899
    %v924 = vadd.f32 %v836, %v900
    %v925 = vadd.f32 %v837, %v901
    %v926 = vadd.f32 %v838, %v902
    %v927 = vadd.f32 %v839, %v903
    %v928 = vadd.f32 %v840, %v904
    %v929 = vadd.f32 %v841, %v905
    %v930 = vadd.f32 %v842, %v906
    %v931 = vadd.f32 %v843, %v907
    %v932 = vadd.f32 %v844, %v908
    %v933 = vadd.f32 %v845, %v909
    %934 = vset.pattern.permute.xlu0 4
    %935 = vperm.xlu0 %934, %v14
    %v936 = vpop.permute.xlu0 %935
    %938 = vset.pattern.permute.xlu0 4
    %939 = vperm.xlu0 %938, %v15
    %v940 = vpop.permute.xlu0 %939
    %v942 = vlaneseq
    %v943 = vshrl.u32 %v942, 7
    %v944 = vsub.s32 0, %v943
    %v945 = vrot.slane %v560, %v944
    %v946 = vlaneseq
    %v947 = vshrl.u32 %v946, 7
    %v948 = vsub.s32 0, %v947
    %v949 = vrot.slane %v561, %v948
    %v950 = vlaneseq
    %v951 = vshrl.u32 %v950, 7
    %v952 = vsub.s32 0, %v951
    %v953 = vrot.slane %v562, %v952
    %v954 = vlaneseq
    %v955 = vshrl.u32 %v954, 7
    %v956 = vsub.s32 0, %v955
    %v957 = vrot.slane %v563, %v956
    %v958 = vlaneseq
    %v959 = vshrl.u32 %v958, 7
    %v960 = vsub.s32 0, %v959
    %v961 = vrot.slane %v564, %v960
    %v962 = vlaneseq
    %v963 = vshrl.u32 %v962, 7
    %v964 = vsub.s32 0, %v963
    %v965 = vrot.slane %v565, %v964
    %v966 = vlaneseq
    %v967 = vshrl.u32 %v966, 7
    %v968 = vsub.s32 0, %v967
    %v969 = vrot.slane %v566, %v968
    %v970 = vlaneseq
    %v971 = vshrl.u32 %v970, 7
    %v972 = vsub.s32 0, %v971
    %v973 = vrot.slane %v567, %v972
    %v974 = vmul.f32 %v242, %v945
    %v975 = vmul.f32 %v242, %v949
    %v976 = vmul.f32 %v242, %v953
    %v977 = vmul.f32 %v242, %v957
    %v978 = vmul.f32 %v242, %v961
    %v979 = vmul.f32 %v242, %v965
    %v980 = vmul.f32 %v242, %v969
    %v981 = vmul.f32 %v242, %v973
    %v982 = vmul.f32 %v936, %v945
    %v983 = vmul.f32 %v936, %v949
    %v984 = vmul.f32 %v936, %v953
    %v985 = vmul.f32 %v936, %v957
    %v986 = vmul.f32 %v936, %v961
    %v987 = vmul.f32 %v936, %v965
    %v988 = vmul.f32 %v936, %v969
    %v989 = vmul.f32 %v936, %v973
    %v990 = vmul.f32 %v940, %v945
    %v991 = vmul.f32 %v940, %v949
    %v992 = vmul.f32 %v940, %v953
    %v993 = vmul.f32 %v940, %v957
    %v994 = vmul.f32 %v940, %v961
    %v995 = vmul.f32 %v940, %v965
    %v996 = vmul.f32 %v940, %v969
    %v997 = vmul.f32 %v940, %v973
    %v998 = vadd.f32 %v910, %v974
    %v999 = vadd.f32 %v911, %v975
    %v1000 = vadd.f32 %v912, %v976
    %v1001 = vadd.f32 %v913, %v977
    %v1002 = vadd.f32 %v914, %v978
    %v1003 = vadd.f32 %v915, %v979
    %v1004 = vadd.f32 %v916, %v980
    %v1005 = vadd.f32 %v917, %v981
    %v1006 = vadd.f32 %v918, %v982
    %v1007 = vadd.f32 %v919, %v983
    %v1008 = vadd.f32 %v920, %v984
    %v1009 = vadd.f32 %v921, %v985
    %v1010 = vadd.f32 %v922, %v986
    %v1011 = vadd.f32 %v923, %v987
    %v1012 = vadd.f32 %v924, %v988
    %v1013 = vadd.f32 %v925, %v989
    %v1014 = vadd.f32 %v926, %v990
    %v1015 = vadd.f32 %v927, %v991
    %v1016 = vadd.f32 %v928, %v992
    %v1017 = vadd.f32 %v929, %v993
    %v1018 = vadd.f32 %v930, %v994
    %v1019 = vadd.f32 %v931, %v995
    %v1020 = vadd.f32 %v932, %v996
    %v1021 = vadd.f32 %v933, %v997
    %1022 = vset.pattern.permute.xlu0 5
    %1023 = vperm.xlu0 %1022, %v13
    %v1024 = vpop.permute.xlu0 %1023
    %1026 = vset.pattern.permute.xlu0 5
    %1027 = vperm.xlu0 %1026, %v14
    %v1028 = vpop.permute.xlu0 %1027
    %1030 = vset.pattern.permute.xlu0 5
    %1031 = vperm.xlu0 %1030, %v15
    %v1032 = vpop.permute.xlu0 %1031
    %v1034 = vlaneseq
    %v1035 = vshrl.u32 %v1034, 7
    %v1036 = vsub.s32 1, %v1035
    %v1037 = vrot.slane %v560, %v1036
    %v1038 = vlaneseq
    %v1039 = vshrl.u32 %v1038, 7
    %v1040 = vsub.s32 1, %v1039
    %v1041 = vrot.slane %v561, %v1040
    %v1042 = vlaneseq
    %v1043 = vshrl.u32 %v1042, 7
    %v1044 = vsub.s32 1, %v1043
    %v1045 = vrot.slane %v562, %v1044
    %v1046 = vlaneseq
    %v1047 = vshrl.u32 %v1046, 7
    %v1048 = vsub.s32 1, %v1047
    %v1049 = vrot.slane %v563, %v1048
    %v1050 = vlaneseq
    %v1051 = vshrl.u32 %v1050, 7
    %v1052 = vsub.s32 1, %v1051
    %v1053 = vrot.slane %v564, %v1052
    %v1054 = vlaneseq
    %v1055 = vshrl.u32 %v1054, 7
    %v1056 = vsub.s32 1, %v1055
    %v1057 = vrot.slane %v565, %v1056
    %v1058 = vlaneseq
    %v1059 = vshrl.u32 %v1058, 7
    %v1060 = vsub.s32 1, %v1059
    %v1061 = vrot.slane %v566, %v1060
    %v1062 = vlaneseq
    %v1063 = vshrl.u32 %v1062, 7
    %v1064 = vsub.s32 1, %v1063
    %v1065 = vrot.slane %v567, %v1064
    %v1066 = vmul.f32 %v1024, %v1037
    %v1067 = vmul.f32 %v1024, %v1041
    %v1068 = vmul.f32 %v1024, %v1045
    %v1069 = vmul.f32 %v1024, %v1049
    %v1070 = vmul.f32 %v1024, %v1053
    %v1071 = vmul.f32 %v1024, %v1057
    %v1072 = vmul.f32 %v1024, %v1061
    %v1073 = vmul.f32 %v1024, %v1065
    %v1074 = vmul.f32 %v1028, %v1037
    %v1075 = vmul.f32 %v1028, %v1041
    %v1076 = vmul.f32 %v1028, %v1045
    %v1077 = vmul.f32 %v1028, %v1049
    %v1078 = vmul.f32 %v1028, %v1053
    %v1079 = vmul.f32 %v1028, %v1057
    %v1080 = vmul.f32 %v1028, %v1061
    %v1081 = vmul.f32 %v1028, %v1065
    %v1082 = vmul.f32 %v1032, %v1037
    %v1083 = vmul.f32 %v1032, %v1041
    %v1084 = vmul.f32 %v1032, %v1045
    %v1085 = vmul.f32 %v1032, %v1049
    %v1086 = vmul.f32 %v1032, %v1053
    %v1087 = vmul.f32 %v1032, %v1057
    %v1088 = vmul.f32 %v1032, %v1061
    %v1089 = vmul.f32 %v1032, %v1065
    %v1090 = vadd.f32 %v998, %v1066
    %v1091 = vadd.f32 %v999, %v1067
    %v1092 = vadd.f32 %v1000, %v1068
    %v1093 = vadd.f32 %v1001, %v1069
    %v1094 = vadd.f32 %v1002, %v1070
    %v1095 = vadd.f32 %v1003, %v1071
    %v1096 = vadd.f32 %v1004, %v1072
    %v1097 = vadd.f32 %v1005, %v1073
    %v1098 = vadd.f32 %v1006, %v1074
    %v1099 = vadd.f32 %v1007, %v1075
    %v1100 = vadd.f32 %v1008, %v1076
    %v1101 = vadd.f32 %v1009, %v1077
    %v1102 = vadd.f32 %v1010, %v1078
    %v1103 = vadd.f32 %v1011, %v1079
    %v1104 = vadd.f32 %v1012, %v1080
    %v1105 = vadd.f32 %v1013, %v1081
    %v1106 = vadd.f32 %v1014, %v1082
    %v1107 = vadd.f32 %v1015, %v1083
    %v1108 = vadd.f32 %v1016, %v1084
    %v1109 = vadd.f32 %v1017, %v1085
    %v1110 = vadd.f32 %v1018, %v1086
    %v1111 = vadd.f32 %v1019, %v1087
    %v1112 = vadd.f32 %v1020, %v1088
    %v1113 = vadd.f32 %v1021, %v1089
    %1114 = vset.pattern.permute.xlu0 6
    %1115 = vperm.xlu0 %1114, %v13
    %v1116 = vpop.permute.xlu0 %1115
    %1118 = vset.pattern.permute.xlu0 6
    %1119 = vperm.xlu0 %1118, %v14
    %v1120 = vpop.permute.xlu0 %1119
    %1122 = vset.pattern.permute.xlu0 6
    %1123 = vperm.xlu0 %1122, %v15
    %v1124 = vpop.permute.xlu0 %1123
    %v1126 = vlaneseq
    %v1127 = vshrl.u32 %v1126, 7
    %v1128 = vsub.s32 2, %v1127
    %v1129 = vrot.slane %v560, %v1128
    %v1130 = vlaneseq
    %v1131 = vshrl.u32 %v1130, 7
    %v1132 = vsub.s32 2, %v1131
    %v1133 = vrot.slane %v561, %v1132
    %v1134 = vlaneseq
    %v1135 = vshrl.u32 %v1134, 7
    %v1136 = vsub.s32 2, %v1135
    %v1137 = vrot.slane %v562, %v1136
    %v1138 = vlaneseq
    %v1139 = vshrl.u32 %v1138, 7
    %v1140 = vsub.s32 2, %v1139
    %v1141 = vrot.slane %v563, %v1140
    %v1142 = vlaneseq
    %v1143 = vshrl.u32 %v1142, 7
    %v1144 = vsub.s32 2, %v1143
    %v1145 = vrot.slane %v564, %v1144
    %v1146 = vlaneseq
    %v1147 = vshrl.u32 %v1146, 7
    %v1148 = vsub.s32 2, %v1147
    %v1149 = vrot.slane %v565, %v1148
    %v1150 = vlaneseq
    %v1151 = vshrl.u32 %v1150, 7
    %v1152 = vsub.s32 2, %v1151
    %v1153 = vrot.slane %v566, %v1152
    %v1154 = vlaneseq
    %v1155 = vshrl.u32 %v1154, 7
    %v1156 = vsub.s32 2, %v1155
    %v1157 = vrot.slane %v567, %v1156
    %v1158 = vmul.f32 %v1116, %v1129
    %v1159 = vmul.f32 %v1116, %v1133
    %v1160 = vmul.f32 %v1116, %v1137
    %v1161 = vmul.f32 %v1116, %v1141
    %v1162 = vmul.f32 %v1116, %v1145
    %v1163 = vmul.f32 %v1116, %v1149
    %v1164 = vmul.f32 %v1116, %v1153
    %v1165 = vmul.f32 %v1116, %v1157
    %v1166 = vmul.f32 %v1120, %v1129
    %v1167 = vmul.f32 %v1120, %v1133
    %v1168 = vmul.f32 %v1120, %v1137
    %v1169 = vmul.f32 %v1120, %v1141
    %v1170 = vmul.f32 %v1120, %v1145
    %v1171 = vmul.f32 %v1120, %v1149
    %v1172 = vmul.f32 %v1120, %v1153
    %v1173 = vmul.f32 %v1120, %v1157
    %v1174 = vmul.f32 %v1124, %v1129
    %v1175 = vmul.f32 %v1124, %v1133
    %v1176 = vmul.f32 %v1124, %v1137
    %v1177 = vmul.f32 %v1124, %v1141
    %v1178 = vmul.f32 %v1124, %v1145
    %v1179 = vmul.f32 %v1124, %v1149
    %v1180 = vmul.f32 %v1124, %v1153
    %v1181 = vmul.f32 %v1124, %v1157
    %v1182 = vadd.f32 %v1090, %v1158
    %v1183 = vadd.f32 %v1091, %v1159
    %v1184 = vadd.f32 %v1092, %v1160
    %v1185 = vadd.f32 %v1093, %v1161
    %v1186 = vadd.f32 %v1094, %v1162
    %v1187 = vadd.f32 %v1095, %v1163
    %v1188 = vadd.f32 %v1096, %v1164
    %v1189 = vadd.f32 %v1097, %v1165
    %v1190 = vadd.f32 %v1098, %v1166
    %v1191 = vadd.f32 %v1099, %v1167
    %v1192 = vadd.f32 %v1100, %v1168
    %v1193 = vadd.f32 %v1101, %v1169
    %v1194 = vadd.f32 %v1102, %v1170
    %v1195 = vadd.f32 %v1103, %v1171
    %v1196 = vadd.f32 %v1104, %v1172
    %v1197 = vadd.f32 %v1105, %v1173
    %v1198 = vadd.f32 %v1106, %v1174
    %v1199 = vadd.f32 %v1107, %v1175
    %v1200 = vadd.f32 %v1108, %v1176
    %v1201 = vadd.f32 %v1109, %v1177
    %v1202 = vadd.f32 %v1110, %v1178
    %v1203 = vadd.f32 %v1111, %v1179
    %v1204 = vadd.f32 %v1112, %v1180
    %v1205 = vadd.f32 %v1113, %v1181
    %1206 = vset.pattern.permute.xlu0 7
    %1207 = vperm.xlu0 %1206, %v13
    %v1208 = vpop.permute.xlu0 %1207
    %1210 = vset.pattern.permute.xlu0 7
    %1211 = vperm.xlu0 %1210, %v14
    %v1212 = vpop.permute.xlu0 %1211
    %1214 = vset.pattern.permute.xlu0 7
    %1215 = vperm.xlu0 %1214, %v15
    %v1216 = vpop.permute.xlu0 %1215
    %v1218 = vlaneseq
    %v1219 = vshrl.u32 %v1218, 7
    %v1220 = vsub.s32 3, %v1219
    %v1221 = vrot.slane %v560, %v1220
    %v1222 = vlaneseq
    %v1223 = vshrl.u32 %v1222, 7
    %v1224 = vsub.s32 3, %v1223
    %v1225 = vrot.slane %v561, %v1224
    %v1226 = vlaneseq
    %v1227 = vshrl.u32 %v1226, 7
    %v1228 = vsub.s32 3, %v1227
    %v1229 = vrot.slane %v562, %v1228
    %v1230 = vlaneseq
    %v1231 = vshrl.u32 %v1230, 7
    %v1232 = vsub.s32 3, %v1231
    %v1233 = vrot.slane %v563, %v1232
    %v1234 = vlaneseq
    %v1235 = vshrl.u32 %v1234, 7
    %v1236 = vsub.s32 3, %v1235
    %v1237 = vrot.slane %v564, %v1236
    %v1238 = vlaneseq
    %v1239 = vshrl.u32 %v1238, 7
    %v1240 = vsub.s32 3, %v1239
    %v1241 = vrot.slane %v565, %v1240
    %v1242 = vlaneseq
    %v1243 = vshrl.u32 %v1242, 7
    %v1244 = vsub.s32 3, %v1243
    %v1245 = vrot.slane %v566, %v1244
    %v1246 = vlaneseq
    %v1247 = vshrl.u32 %v1246, 7
    %v1248 = vsub.s32 3, %v1247
    %v1249 = vrot.slane %v567, %v1248
    %v1250 = vmul.f32 %v1208, %v1221
    %v1251 = vmul.f32 %v1208, %v1225
    %v1252 = vmul.f32 %v1208, %v1229
    %v1253 = vmul.f32 %v1208, %v1233
    %v1254 = vmul.f32 %v1208, %v1237
    %v1255 = vmul.f32 %v1208, %v1241
    %v1256 = vmul.f32 %v1208, %v1245
    %v1257 = vmul.f32 %v1208, %v1249
    %v1258 = vmul.f32 %v1212, %v1221
    %v1259 = vmul.f32 %v1212, %v1225
    %v1260 = vmul.f32 %v1212, %v1229
    %v1261 = vmul.f32 %v1212, %v1233
    %v1262 = vmul.f32 %v1212, %v1237
    %v1263 = vmul.f32 %v1212, %v1241
    %v1264 = vmul.f32 %v1212, %v1245
    %v1265 = vmul.f32 %v1212, %v1249
    %v1266 = vmul.f32 %v1216, %v1221
    %v1267 = vmul.f32 %v1216, %v1225
    %v1268 = vmul.f32 %v1216, %v1229
    %v1269 = vmul.f32 %v1216, %v1233
    %v1270 = vmul.f32 %v1216, %v1237
    %v1271 = vmul.f32 %v1216, %v1241
    %v1272 = vmul.f32 %v1216, %v1245
    %v1273 = vmul.f32 %v1216, %v1249
    %v1274 = vadd.f32 %v1182, %v1250
    %v1275 = vadd.f32 %v1183, %v1251
    %v1276 = vadd.f32 %v1184, %v1252
    %v1277 = vadd.f32 %v1185, %v1253
    %v1278 = vadd.f32 %v1186, %v1254
    %v1279 = vadd.f32 %v1187, %v1255
    %v1280 = vadd.f32 %v1188, %v1256
    %v1281 = vadd.f32 %v1189, %v1257
    %v1282 = vadd.f32 %v1190, %v1258
    %v1283 = vadd.f32 %v1191, %v1259
    %v1284 = vadd.f32 %v1192, %v1260
    %v1285 = vadd.f32 %v1193, %v1261
    %v1286 = vadd.f32 %v1194, %v1262
    %v1287 = vadd.f32 %v1195, %v1263
    %v1288 = vadd.f32 %v1196, %v1264
    %v1289 = vadd.f32 %v1197, %v1265
    %v1290 = vadd.f32 %v1198, %v1266
    %v1291 = vadd.f32 %v1199, %v1267
    %v1292 = vadd.f32 %v1200, %v1268
    %v1293 = vadd.f32 %v1201, %v1269
    %v1294 = vadd.f32 %v1202, %v1270
    %v1295 = vadd.f32 %v1203, %v1271
    %v1296 = vadd.f32 %v1204, %v1272
    %v1297 = vadd.f32 %v1205, %v1273
    %vm1298 = vcmp.ge.f32.partialorder %v1274, 0.0
    %vm1299 = vcmp.ge.f32.partialorder %v1275, 0.0
    %vm1300 = vcmp.ge.f32.partialorder %v1276, 0.0
    %vm1301 = vcmp.ge.f32.partialorder %v1277, 0.0
    %vm1302 = vcmp.ge.f32.partialorder %v1278, 0.0
    %vm1303 = vcmp.ge.f32.partialorder %v1279, 0.0
    %vm1304 = vcmp.ge.f32.partialorder %v1280, 0.0
    %vm1305 = vcmp.ge.f32.partialorder %v1281, 0.0
    %vm1306 = vcmp.ge.f32.partialorder %v1282, 0.0
    %vm1307 = vcmp.ge.f32.partialorder %v1283, 0.0
    %vm1308 = vcmp.ge.f32.partialorder %v1284, 0.0
    %vm1309 = vcmp.ge.f32.partialorder %v1285, 0.0
    %vm1310 = vcmp.ge.f32.partialorder %v1286, 0.0
    %vm1311 = vcmp.ge.f32.partialorder %v1287, 0.0
    %vm1312 = vcmp.ge.f32.partialorder %v1288, 0.0
    %vm1313 = vcmp.ge.f32.partialorder %v1289, 0.0
    %vm1314 = vcmp.ge.f32.partialorder %v1290, 0.0
    %vm1315 = vcmp.ge.f32.partialorder %v1291, 0.0
    %vm1316 = vcmp.ge.f32.partialorder %v1292, 0.0
    %vm1317 = vcmp.ge.f32.partialorder %v1293, 0.0
    %vm1318 = vcmp.ge.f32.partialorder %v1294, 0.0
    %vm1319 = vcmp.ge.f32.partialorder %v1295, 0.0
    %vm1320 = vcmp.ge.f32.partialorder %v1296, 0.0
    %vm1321 = vcmp.ge.f32.partialorder %v1297, 0.0
    %v1322 = vmul.f32 %v1274, 0.01
    %v1323 = vmul.f32 %v1275, 0.01
    %v1324 = vmul.f32 %v1276, 0.01
    %v1325 = vmul.f32 %v1277, 0.01
    %v1326 = vmul.f32 %v1278, 0.01
    %v1327 = vmul.f32 %v1279, 0.01
    %v1328 = vmul.f32 %v1280, 0.01
    %v1329 = vmul.f32 %v1281, 0.01
    %v1330 = vmul.f32 %v1282, 0.01
    %v1331 = vmul.f32 %v1283, 0.01
    %v1332 = vmul.f32 %v1284, 0.01
    %v1333 = vmul.f32 %v1285, 0.01
    %v1334 = vmul.f32 %v1286, 0.01
    %v1335 = vmul.f32 %v1287, 0.01
    %v1336 = vmul.f32 %v1288, 0.01
    %v1337 = vmul.f32 %v1289, 0.01
    %v1338 = vmul.f32 %v1290, 0.01
    %v1339 = vmul.f32 %v1291, 0.01
    %v1340 = vmul.f32 %v1292, 0.01
    %v1341 = vmul.f32 %v1293, 0.01
    %v1342 = vmul.f32 %v1294, 0.01
    %v1343 = vmul.f32 %v1295, 0.01
    %v1344 = vmul.f32 %v1296, 0.01
    %v1345 = vmul.f32 %v1297, 0.01
    %v1346 = vsel %vm1298, %v1274, %v1322
    %v1347 = vsel %vm1299, %v1275, %v1323
    %v1348 = vsel %vm1300, %v1276, %v1324
    %v1349 = vsel %vm1301, %v1277, %v1325
    %v1350 = vsel %vm1302, %v1278, %v1326
    %v1351 = vsel %vm1303, %v1279, %v1327
    %v1352 = vsel %vm1304, %v1280, %v1328
    %v1353 = vsel %vm1305, %v1281, %v1329
    %v1354 = vsel %vm1306, %v1282, %v1330
    %v1355 = vsel %vm1307, %v1283, %v1331
    %v1356 = vsel %vm1308, %v1284, %v1332
    %v1357 = vsel %vm1309, %v1285, %v1333
    %v1358 = vsel %vm1310, %v1286, %v1334
    %v1359 = vsel %vm1311, %v1287, %v1335
    %v1360 = vsel %vm1312, %v1288, %v1336
    %v1361 = vsel %vm1313, %v1289, %v1337
    %v1362 = vsel %vm1314, %v1290, %v1338
    %v1363 = vsel %vm1315, %v1291, %v1339
    %v1364 = vsel %vm1316, %v1292, %v1340
    %v1365 = vsel %vm1317, %v1293, %v1341
    %v1366 = vsel %vm1318, %v1294, %v1342
    %v1367 = vsel %vm1319, %v1295, %v1343
    %v1368 = vsel %vm1320, %v1296, %v1344
    %v1369 = vsel %vm1321, %v1297, %v1345
    %1370 = vset.pattern.permute.xlu0 16
    %1371 = vperm.xlu0 %1370, %v15
    %v1372 = vpop.permute.xlu0 %1371
    %1375 = vset.pattern.permute.xlu0 16
    %1376 = vperm.xlu0 %1375, %v16
    %v1377 = vpop.permute.xlu0 %1376
    %1379 = vset.pattern.permute.xlu0 0
    %1380 = vperm.xlu0 %1379, %v16
    %v1381 = vpop.permute.xlu0 %1380
    %v1383 = vlaneseq
    %v1384 = vshrl.u32 %v1383, 7
    %v1385 = vsub.s32 4, %v1384
    %v1386 = vrot.slane %v1346, %v1385
    %v1387 = vlaneseq
    %v1388 = vshrl.u32 %v1387, 7
    %v1389 = vsub.s32 4, %v1388
    %v1390 = vrot.slane %v1347, %v1389
    %v1391 = vlaneseq
    %v1392 = vshrl.u32 %v1391, 7
    %v1393 = vsub.s32 4, %v1392
    %v1394 = vrot.slane %v1348, %v1393
    %v1395 = vlaneseq
    %v1396 = vshrl.u32 %v1395, 7
    %v1397 = vsub.s32 4, %v1396
    %v1398 = vrot.slane %v1349, %v1397
    %v1399 = vlaneseq
    %v1400 = vshrl.u32 %v1399, 7
    %v1401 = vsub.s32 4, %v1400
    %v1402 = vrot.slane %v1350, %v1401
    %v1403 = vlaneseq
    %v1404 = vshrl.u32 %v1403, 7
    %v1405 = vsub.s32 4, %v1404
    %v1406 = vrot.slane %v1351, %v1405
    %v1407 = vlaneseq
    %v1408 = vshrl.u32 %v1407, 7
    %v1409 = vsub.s32 4, %v1408
    %v1410 = vrot.slane %v1352, %v1409
    %v1411 = vlaneseq
    %v1412 = vshrl.u32 %v1411, 7
    %v1413 = vsub.s32 4, %v1412
    %v1414 = vrot.slane %v1353, %v1413
    %v1415 = vmul.f32 %v588, %v1386
    %v1416 = vmul.f32 %v588, %v1390
    %v1417 = vmul.f32 %v588, %v1394
    %v1418 = vmul.f32 %v588, %v1398
    %v1419 = vmul.f32 %v588, %v1402
    %v1420 = vmul.f32 %v588, %v1406
    %v1421 = vmul.f32 %v588, %v1410
    %v1422 = vmul.f32 %v588, %v1414
    %v1423 = vmul.f32 %v1381, %v1386
    %v1424 = vmul.f32 %v1381, %v1390
    %v1425 = vmul.f32 %v1381, %v1394
    %v1426 = vmul.f32 %v1381, %v1398
    %v1427 = vmul.f32 %v1381, %v1402
    %v1428 = vmul.f32 %v1381, %v1406
    %v1429 = vmul.f32 %v1381, %v1410
    %v1430 = vmul.f32 %v1381, %v1414
    %v1431 = vadd.f32 %v1372, %v1415
    %v1432 = vadd.f32 %v1372, %v1416
    %v1433 = vadd.f32 %v1372, %v1417
    %v1434 = vadd.f32 %v1372, %v1418
    %v1435 = vadd.f32 %v1372, %v1419
    %v1436 = vadd.f32 %v1372, %v1420
    %v1437 = vadd.f32 %v1372, %v1421
    %v1438 = vadd.f32 %v1372, %v1422
    %v1439 = vadd.f32 %v1377, %v1423
    %v1440 = vadd.f32 %v1377, %v1424
    %v1441 = vadd.f32 %v1377, %v1425
    %v1442 = vadd.f32 %v1377, %v1426
    %v1443 = vadd.f32 %v1377, %v1427
    %v1444 = vadd.f32 %v1377, %v1428
    %v1445 = vadd.f32 %v1377, %v1429
    %v1446 = vadd.f32 %v1377, %v1430
    %1447 = vset.pattern.permute.xlu0 1
    %1448 = vperm.xlu0 %1447, %v16
    %v1449 = vpop.permute.xlu0 %1448
    %v1451 = vlaneseq
    %v1452 = vshrl.u32 %v1451, 7
    %v1453 = vsub.s32 5, %v1452
    %v1454 = vrot.slane %v1346, %v1453
    %v1455 = vlaneseq
    %v1456 = vshrl.u32 %v1455, 7
    %v1457 = vsub.s32 5, %v1456
    %v1458 = vrot.slane %v1347, %v1457
    %v1459 = vlaneseq
    %v1460 = vshrl.u32 %v1459, 7
    %v1461 = vsub.s32 5, %v1460
    %v1462 = vrot.slane %v1348, %v1461
    %v1463 = vlaneseq
    %v1464 = vshrl.u32 %v1463, 7
    %v1465 = vsub.s32 5, %v1464
    %v1466 = vrot.slane %v1349, %v1465
    %v1467 = vlaneseq
    %v1468 = vshrl.u32 %v1467, 7
    %v1469 = vsub.s32 5, %v1468
    %v1470 = vrot.slane %v1350, %v1469
    %v1471 = vlaneseq
    %v1472 = vshrl.u32 %v1471, 7
    %v1473 = vsub.s32 5, %v1472
    %v1474 = vrot.slane %v1351, %v1473
    %v1475 = vlaneseq
    %v1476 = vshrl.u32 %v1475, 7
    %v1477 = vsub.s32 5, %v1476
    %v1478 = vrot.slane %v1352, %v1477
    %v1479 = vlaneseq
    %v1480 = vshrl.u32 %v1479, 7
    %v1481 = vsub.s32 5, %v1480
    %v1482 = vrot.slane %v1353, %v1481
    %v1483 = vmul.f32 %v676, %v1454
    %v1484 = vmul.f32 %v676, %v1458
    %v1485 = vmul.f32 %v676, %v1462
    %v1486 = vmul.f32 %v676, %v1466
    %v1487 = vmul.f32 %v676, %v1470
    %v1488 = vmul.f32 %v676, %v1474
    %v1489 = vmul.f32 %v676, %v1478
    %v1490 = vmul.f32 %v676, %v1482
    %v1491 = vmul.f32 %v1449, %v1454
    %v1492 = vmul.f32 %v1449, %v1458
    %v1493 = vmul.f32 %v1449, %v1462
    %v1494 = vmul.f32 %v1449, %v1466
    %v1495 = vmul.f32 %v1449, %v1470
    %v1496 = vmul.f32 %v1449, %v1474
    %v1497 = vmul.f32 %v1449, %v1478
    %v1498 = vmul.f32 %v1449, %v1482
    %v1499 = vadd.f32 %v1431, %v1483
    %v1500 = vadd.f32 %v1432, %v1484
    %v1501 = vadd.f32 %v1433, %v1485
    %v1502 = vadd.f32 %v1434, %v1486
    %v1503 = vadd.f32 %v1435, %v1487
    %v1504 = vadd.f32 %v1436, %v1488
    %v1505 = vadd.f32 %v1437, %v1489
    %v1506 = vadd.f32 %v1438, %v1490
    %v1507 = vadd.f32 %v1439, %v1491
    %v1508 = vadd.f32 %v1440, %v1492
    %v1509 = vadd.f32 %v1441, %v1493
    %v1510 = vadd.f32 %v1442, %v1494
    %v1511 = vadd.f32 %v1443, %v1495
    %v1512 = vadd.f32 %v1444, %v1496
    %v1513 = vadd.f32 %v1445, %v1497
    %v1514 = vadd.f32 %v1446, %v1498
    %1515 = vset.pattern.permute.xlu0 2
    %1516 = vperm.xlu0 %1515, %v16
    %v1517 = vpop.permute.xlu0 %1516
    %v1519 = vlaneseq
    %v1520 = vshrl.u32 %v1519, 7
    %v1521 = vsub.s32 6, %v1520
    %v1522 = vrot.slane %v1346, %v1521
    %v1523 = vlaneseq
    %v1524 = vshrl.u32 %v1523, 7
    %v1525 = vsub.s32 6, %v1524
    %v1526 = vrot.slane %v1347, %v1525
    %v1527 = vlaneseq
    %v1528 = vshrl.u32 %v1527, 7
    %v1529 = vsub.s32 6, %v1528
    %v1530 = vrot.slane %v1348, %v1529
    %v1531 = vlaneseq
    %v1532 = vshrl.u32 %v1531, 7
    %v1533 = vsub.s32 6, %v1532
    %v1534 = vrot.slane %v1349, %v1533
    %v1535 = vlaneseq
    %v1536 = vshrl.u32 %v1535, 7
    %v1537 = vsub.s32 6, %v1536
    %v1538 = vrot.slane %v1350, %v1537
    %v1539 = vlaneseq
    %v1540 = vshrl.u32 %v1539, 7
    %v1541 = vsub.s32 6, %v1540
    %v1542 = vrot.slane %v1351, %v1541
    %v1543 = vlaneseq
    %v1544 = vshrl.u32 %v1543, 7
    %v1545 = vsub.s32 6, %v1544
    %v1546 = vrot.slane %v1352, %v1545
    %v1547 = vlaneseq
    %v1548 = vshrl.u32 %v1547, 7
    %v1549 = vsub.s32 6, %v1548
    %v1550 = vrot.slane %v1353, %v1549
    %v1551 = vmul.f32 %v764, %v1522
    %v1552 = vmul.f32 %v764, %v1526
    %v1553 = vmul.f32 %v764, %v1530
    %v1554 = vmul.f32 %v764, %v1534
    %v1555 = vmul.f32 %v764, %v1538
    %v1556 = vmul.f32 %v764, %v1542
    %v1557 = vmul.f32 %v764, %v1546
    %v1558 = vmul.f32 %v764, %v1550
    %v1559 = vmul.f32 %v1517, %v1522
    %v1560 = vmul.f32 %v1517, %v1526
    %v1561 = vmul.f32 %v1517, %v1530
    %v1562 = vmul.f32 %v1517, %v1534
    %v1563 = vmul.f32 %v1517, %v1538
    %v1564 = vmul.f32 %v1517, %v1542
    %v1565 = vmul.f32 %v1517, %v1546
    %v1566 = vmul.f32 %v1517, %v1550
    %v1567 = vadd.f32 %v1499, %v1551
    %v1568 = vadd.f32 %v1500, %v1552
    %v1569 = vadd.f32 %v1501, %v1553
    %v1570 = vadd.f32 %v1502, %v1554
    %v1571 = vadd.f32 %v1503, %v1555
    %v1572 = vadd.f32 %v1504, %v1556
    %v1573 = vadd.f32 %v1505, %v1557
    %v1574 = vadd.f32 %v1506, %v1558
    %v1575 = vadd.f32 %v1507, %v1559
    %v1576 = vadd.f32 %v1508, %v1560
    %v1577 = vadd.f32 %v1509, %v1561
    %v1578 = vadd.f32 %v1510, %v1562
    %v1579 = vadd.f32 %v1511, %v1563
    %v1580 = vadd.f32 %v1512, %v1564
    %v1581 = vadd.f32 %v1513, %v1565
    %v1582 = vadd.f32 %v1514, %v1566
    %1583 = vset.pattern.permute.xlu0 3
    %1584 = vperm.xlu0 %1583, %v16
    %v1585 = vpop.permute.xlu0 %1584
    %v1587 = vlaneseq
    %v1588 = vshrl.u32 %v1587, 7
    %v1589 = vsub.s32 7, %v1588
    %v1590 = vrot.slane %v1346, %v1589
    %v1591 = vlaneseq
    %v1592 = vshrl.u32 %v1591, 7
    %v1593 = vsub.s32 7, %v1592
    %v1594 = vrot.slane %v1347, %v1593
    %v1595 = vlaneseq
    %v1596 = vshrl.u32 %v1595, 7
    %v1597 = vsub.s32 7, %v1596
    %v1598 = vrot.slane %v1348, %v1597
    %v1599 = vlaneseq
    %v1600 = vshrl.u32 %v1599, 7
    %v1601 = vsub.s32 7, %v1600
    %v1602 = vrot.slane %v1349, %v1601
    %v1603 = vlaneseq
    %v1604 = vshrl.u32 %v1603, 7
    %v1605 = vsub.s32 7, %v1604
    %v1606 = vrot.slane %v1350, %v1605
    %v1607 = vlaneseq
    %v1608 = vshrl.u32 %v1607, 7
    %v1609 = vsub.s32 7, %v1608
    %v1610 = vrot.slane %v1351, %v1609
    %v1611 = vlaneseq
    %v1612 = vshrl.u32 %v1611, 7
    %v1613 = vsub.s32 7, %v1612
    %v1614 = vrot.slane %v1352, %v1613
    %v1615 = vlaneseq
    %v1616 = vshrl.u32 %v1615, 7
    %v1617 = vsub.s32 7, %v1616
    %v1618 = vrot.slane %v1353, %v1617
    %v1619 = vmul.f32 %v852, %v1590
    %v1620 = vmul.f32 %v852, %v1594
    %v1621 = vmul.f32 %v852, %v1598
    %v1622 = vmul.f32 %v852, %v1602
    %v1623 = vmul.f32 %v852, %v1606
    %v1624 = vmul.f32 %v852, %v1610
    %v1625 = vmul.f32 %v852, %v1614
    %v1626 = vmul.f32 %v852, %v1618
    %v1627 = vmul.f32 %v1585, %v1590
    %v1628 = vmul.f32 %v1585, %v1594
    %v1629 = vmul.f32 %v1585, %v1598
    %v1630 = vmul.f32 %v1585, %v1602
    %v1631 = vmul.f32 %v1585, %v1606
    %v1632 = vmul.f32 %v1585, %v1610
    %v1633 = vmul.f32 %v1585, %v1614
    %v1634 = vmul.f32 %v1585, %v1618
    %v1635 = vadd.f32 %v1567, %v1619
    %v1636 = vadd.f32 %v1568, %v1620
    %v1637 = vadd.f32 %v1569, %v1621
    %v1638 = vadd.f32 %v1570, %v1622
    %v1639 = vadd.f32 %v1571, %v1623
    %v1640 = vadd.f32 %v1572, %v1624
    %v1641 = vadd.f32 %v1573, %v1625
    %v1642 = vadd.f32 %v1574, %v1626
    %v1643 = vadd.f32 %v1575, %v1627
    %v1644 = vadd.f32 %v1576, %v1628
    %v1645 = vadd.f32 %v1577, %v1629
    %v1646 = vadd.f32 %v1578, %v1630
    %v1647 = vadd.f32 %v1579, %v1631
    %v1648 = vadd.f32 %v1580, %v1632
    %v1649 = vadd.f32 %v1581, %v1633
    %v1650 = vadd.f32 %v1582, %v1634
    %1651 = vset.pattern.permute.xlu0 4
    %1652 = vperm.xlu0 %1651, %v16
    %v1653 = vpop.permute.xlu0 %1652
    %v1655 = vlaneseq
    %v1656 = vshrl.u32 %v1655, 7
    %v1657 = vsub.s32 0, %v1656
    %v1658 = vrot.slane %v1354, %v1657
    %v1659 = vlaneseq
    %v1660 = vshrl.u32 %v1659, 7
    %v1661 = vsub.s32 0, %v1660
    %v1662 = vrot.slane %v1355, %v1661
    %v1663 = vlaneseq
    %v1664 = vshrl.u32 %v1663, 7
    %v1665 = vsub.s32 0, %v1664
    %v1666 = vrot.slane %v1356, %v1665
    %v1667 = vlaneseq
    %v1668 = vshrl.u32 %v1667, 7
    %v1669 = vsub.s32 0, %v1668
    %v1670 = vrot.slane %v1357, %v1669
    %v1671 = vlaneseq
    %v1672 = vshrl.u32 %v1671, 7
    %v1673 = vsub.s32 0, %v1672
    %v1674 = vrot.slane %v1358, %v1673
    %v1675 = vlaneseq
    %v1676 = vshrl.u32 %v1675, 7
    %v1677 = vsub.s32 0, %v1676
    %v1678 = vrot.slane %v1359, %v1677
    %v1679 = vlaneseq
    %v1680 = vshrl.u32 %v1679, 7
    %v1681 = vsub.s32 0, %v1680
    %v1682 = vrot.slane %v1360, %v1681
    %v1683 = vlaneseq
    %v1684 = vshrl.u32 %v1683, 7
    %v1685 = vsub.s32 0, %v1684
    %v1686 = vrot.slane %v1361, %v1685
    %v1687 = vmul.f32 %v940, %v1658
    %v1688 = vmul.f32 %v940, %v1662
    %v1689 = vmul.f32 %v940, %v1666
    %v1690 = vmul.f32 %v940, %v1670
    %v1691 = vmul.f32 %v940, %v1674
    %v1692 = vmul.f32 %v940, %v1678
    %v1693 = vmul.f32 %v940, %v1682
    %v1694 = vmul.f32 %v940, %v1686
    %v1695 = vmul.f32 %v1653, %v1658
    %v1696 = vmul.f32 %v1653, %v1662
    %v1697 = vmul.f32 %v1653, %v1666
    %v1698 = vmul.f32 %v1653, %v1670
    %v1699 = vmul.f32 %v1653, %v1674
    %v1700 = vmul.f32 %v1653, %v1678
    %v1701 = vmul.f32 %v1653, %v1682
    %v1702 = vmul.f32 %v1653, %v1686
    %v1703 = vadd.f32 %v1635, %v1687
    %v1704 = vadd.f32 %v1636, %v1688
    %v1705 = vadd.f32 %v1637, %v1689
    %v1706 = vadd.f32 %v1638, %v1690
    %v1707 = vadd.f32 %v1639, %v1691
    %v1708 = vadd.f32 %v1640, %v1692
    %v1709 = vadd.f32 %v1641, %v1693
    %v1710 = vadd.f32 %v1642, %v1694
    %v1711 = vadd.f32 %v1643, %v1695
    %v1712 = vadd.f32 %v1644, %v1696
    %v1713 = vadd.f32 %v1645, %v1697
    %v1714 = vadd.f32 %v1646, %v1698
    %v1715 = vadd.f32 %v1647, %v1699
    %v1716 = vadd.f32 %v1648, %v1700
    %v1717 = vadd.f32 %v1649, %v1701
    %v1718 = vadd.f32 %v1650, %v1702
    %1719 = vset.pattern.permute.xlu0 5
    %1720 = vperm.xlu0 %1719, %v16
    %v1721 = vpop.permute.xlu0 %1720
    %v1723 = vlaneseq
    %v1724 = vshrl.u32 %v1723, 7
    %v1725 = vsub.s32 1, %v1724
    %v1726 = vrot.slane %v1354, %v1725
    %v1727 = vlaneseq
    %v1728 = vshrl.u32 %v1727, 7
    %v1729 = vsub.s32 1, %v1728
    %v1730 = vrot.slane %v1355, %v1729
    %v1731 = vlaneseq
    %v1732 = vshrl.u32 %v1731, 7
    %v1733 = vsub.s32 1, %v1732
    %v1734 = vrot.slane %v1356, %v1733
    %v1735 = vlaneseq
    %v1736 = vshrl.u32 %v1735, 7
    %v1737 = vsub.s32 1, %v1736
    %v1738 = vrot.slane %v1357, %v1737
    %v1739 = vlaneseq
    %v1740 = vshrl.u32 %v1739, 7
    %v1741 = vsub.s32 1, %v1740
    %v1742 = vrot.slane %v1358, %v1741
    %v1743 = vlaneseq
    %v1744 = vshrl.u32 %v1743, 7
    %v1745 = vsub.s32 1, %v1744
    %v1746 = vrot.slane %v1359, %v1745
    %v1747 = vlaneseq
    %v1748 = vshrl.u32 %v1747, 7
    %v1749 = vsub.s32 1, %v1748
    %v1750 = vrot.slane %v1360, %v1749
    %v1751 = vlaneseq
    %v1752 = vshrl.u32 %v1751, 7
    %v1753 = vsub.s32 1, %v1752
    %v1754 = vrot.slane %v1361, %v1753
    %v1755 = vmul.f32 %v1032, %v1726
    %v1756 = vmul.f32 %v1032, %v1730
    %v1757 = vmul.f32 %v1032, %v1734
    %v1758 = vmul.f32 %v1032, %v1738
    %v1759 = vmul.f32 %v1032, %v1742
    %v1760 = vmul.f32 %v1032, %v1746
    %v1761 = vmul.f32 %v1032, %v1750
    %v1762 = vmul.f32 %v1032, %v1754
    %v1763 = vmul.f32 %v1721, %v1726
    %v1764 = vmul.f32 %v1721, %v1730
    %v1765 = vmul.f32 %v1721, %v1734
    %v1766 = vmul.f32 %v1721, %v1738
    %v1767 = vmul.f32 %v1721, %v1742
    %v1768 = vmul.f32 %v1721, %v1746
    %v1769 = vmul.f32 %v1721, %v1750
    %v1770 = vmul.f32 %v1721, %v1754
    %v1771 = vadd.f32 %v1703, %v1755
    %v1772 = vadd.f32 %v1704, %v1756
    %v1773 = vadd.f32 %v1705, %v1757
    %v1774 = vadd.f32 %v1706, %v1758
    %v1775 = vadd.f32 %v1707, %v1759
    %v1776 = vadd.f32 %v1708, %v1760
    %v1777 = vadd.f32 %v1709, %v1761
    %v1778 = vadd.f32 %v1710, %v1762
    %v1779 = vadd.f32 %v1711, %v1763
    %v1780 = vadd.f32 %v1712, %v1764
    %v1781 = vadd.f32 %v1713, %v1765
    %v1782 = vadd.f32 %v1714, %v1766
    %v1783 = vadd.f32 %v1715, %v1767
    %v1784 = vadd.f32 %v1716, %v1768
    %v1785 = vadd.f32 %v1717, %v1769
    %v1786 = vadd.f32 %v1718, %v1770
    %1787 = vset.pattern.permute.xlu0 6
    %1788 = vperm.xlu0 %1787, %v16
    %v1789 = vpop.permute.xlu0 %1788
    %v1791 = vlaneseq
    %v1792 = vshrl.u32 %v1791, 7
    %v1793 = vsub.s32 2, %v1792
    %v1794 = vrot.slane %v1354, %v1793
    %v1795 = vlaneseq
    %v1796 = vshrl.u32 %v1795, 7
    %v1797 = vsub.s32 2, %v1796
    %v1798 = vrot.slane %v1355, %v1797
    %v1799 = vlaneseq
    %v1800 = vshrl.u32 %v1799, 7
    %v1801 = vsub.s32 2, %v1800
    %v1802 = vrot.slane %v1356, %v1801
    %v1803 = vlaneseq
    %v1804 = vshrl.u32 %v1803, 7
    %v1805 = vsub.s32 2, %v1804
    %v1806 = vrot.slane %v1357, %v1805
    %v1807 = vlaneseq
    %v1808 = vshrl.u32 %v1807, 7
    %v1809 = vsub.s32 2, %v1808
    %v1810 = vrot.slane %v1358, %v1809
    %v1811 = vlaneseq
    %v1812 = vshrl.u32 %v1811, 7
    %v1813 = vsub.s32 2, %v1812
    %v1814 = vrot.slane %v1359, %v1813
    %v1815 = vlaneseq
    %v1816 = vshrl.u32 %v1815, 7
    %v1817 = vsub.s32 2, %v1816
    %v1818 = vrot.slane %v1360, %v1817
    %v1819 = vlaneseq
    %v1820 = vshrl.u32 %v1819, 7
    %v1821 = vsub.s32 2, %v1820
    %v1822 = vrot.slane %v1361, %v1821
    %v1823 = vmul.f32 %v1124, %v1794
    %v1824 = vmul.f32 %v1124, %v1798
    %v1825 = vmul.f32 %v1124, %v1802
    %v1826 = vmul.f32 %v1124, %v1806
    %v1827 = vmul.f32 %v1124, %v1810
    %v1828 = vmul.f32 %v1124, %v1814
    %v1829 = vmul.f32 %v1124, %v1818
    %v1830 = vmul.f32 %v1124, %v1822
    %v1831 = vmul.f32 %v1789, %v1794
    %v1832 = vmul.f32 %v1789, %v1798
    %v1833 = vmul.f32 %v1789, %v1802
    %v1834 = vmul.f32 %v1789, %v1806
    %v1835 = vmul.f32 %v1789, %v1810
    %v1836 = vmul.f32 %v1789, %v1814
    %v1837 = vmul.f32 %v1789, %v1818
    %v1838 = vmul.f32 %v1789, %v1822
    %v1839 = vadd.f32 %v1771, %v1823
    %v1840 = vadd.f32 %v1772, %v1824
    %v1841 = vadd.f32 %v1773, %v1825
    %v1842 = vadd.f32 %v1774, %v1826
    %v1843 = vadd.f32 %v1775, %v1827
    %v1844 = vadd.f32 %v1776, %v1828
    %v1845 = vadd.f32 %v1777, %v1829
    %v1846 = vadd.f32 %v1778, %v1830
    %v1847 = vadd.f32 %v1779, %v1831
    %v1848 = vadd.f32 %v1780, %v1832
    %v1849 = vadd.f32 %v1781, %v1833
    %v1850 = vadd.f32 %v1782, %v1834
    %v1851 = vadd.f32 %v1783, %v1835
    %v1852 = vadd.f32 %v1784, %v1836
    %v1853 = vadd.f32 %v1785, %v1837
    %v1854 = vadd.f32 %v1786, %v1838
    %1855 = vset.pattern.permute.xlu0 7
    %1856 = vperm.xlu0 %1855, %v16
    %v1857 = vpop.permute.xlu0 %1856
    %v1859 = vlaneseq
    %v1860 = vshrl.u32 %v1859, 7
    %v1861 = vsub.s32 3, %v1860
    %v1862 = vrot.slane %v1354, %v1861
    %v1863 = vlaneseq
    %v1864 = vshrl.u32 %v1863, 7
    %v1865 = vsub.s32 3, %v1864
    %v1866 = vrot.slane %v1355, %v1865
    %v1867 = vlaneseq
    %v1868 = vshrl.u32 %v1867, 7
    %v1869 = vsub.s32 3, %v1868
    %v1870 = vrot.slane %v1356, %v1869
    %v1871 = vlaneseq
    %v1872 = vshrl.u32 %v1871, 7
    %v1873 = vsub.s32 3, %v1872
    %v1874 = vrot.slane %v1357, %v1873
    %v1875 = vlaneseq
    %v1876 = vshrl.u32 %v1875, 7
    %v1877 = vsub.s32 3, %v1876
    %v1878 = vrot.slane %v1358, %v1877
    %v1879 = vlaneseq
    %v1880 = vshrl.u32 %v1879, 7
    %v1881 = vsub.s32 3, %v1880
    %v1882 = vrot.slane %v1359, %v1881
    %v1883 = vlaneseq
    %v1884 = vshrl.u32 %v1883, 7
    %v1885 = vsub.s32 3, %v1884
    %v1886 = vrot.slane %v1360, %v1885
    %v1887 = vlaneseq
    %v1888 = vshrl.u32 %v1887, 7
    %v1889 = vsub.s32 3, %v1888
    %v1890 = vrot.slane %v1361, %v1889
    %v1891 = vmul.f32 %v1216, %v1862
    %v1892 = vmul.f32 %v1216, %v1866
    %v1893 = vmul.f32 %v1216, %v1870
    %v1894 = vmul.f32 %v1216, %v1874
    %v1895 = vmul.f32 %v1216, %v1878
    %v1896 = vmul.f32 %v1216, %v1882
    %v1897 = vmul.f32 %v1216, %v1886
    %v1898 = vmul.f32 %v1216, %v1890
    %v1899 = vmul.f32 %v1857, %v1862
    %v1900 = vmul.f32 %v1857, %v1866
    %v1901 = vmul.f32 %v1857, %v1870
    %v1902 = vmul.f32 %v1857, %v1874
    %v1903 = vmul.f32 %v1857, %v1878
    %v1904 = vmul.f32 %v1857, %v1882
    %v1905 = vmul.f32 %v1857, %v1886
    %v1906 = vmul.f32 %v1857, %v1890
    %v1907 = vadd.f32 %v1839, %v1891
    %v1908 = vadd.f32 %v1840, %v1892
    %v1909 = vadd.f32 %v1841, %v1893
    %v1910 = vadd.f32 %v1842, %v1894
    %v1911 = vadd.f32 %v1843, %v1895
    %v1912 = vadd.f32 %v1844, %v1896
    %v1913 = vadd.f32 %v1845, %v1897
    %v1914 = vadd.f32 %v1846, %v1898
    %v1915 = vadd.f32 %v1847, %v1899
    %v1916 = vadd.f32 %v1848, %v1900
    %v1917 = vadd.f32 %v1849, %v1901
    %v1918 = vadd.f32 %v1850, %v1902
    %v1919 = vadd.f32 %v1851, %v1903
    %v1920 = vadd.f32 %v1852, %v1904
    %v1921 = vadd.f32 %v1853, %v1905
    %v1922 = vadd.f32 %v1854, %v1906
    %1923 = vset.pattern.permute.xlu0 8
    %1924 = vperm.xlu0 %1923, %v16
    %v1925 = vpop.permute.xlu0 %1924
    %v1927 = vlaneseq
    %v1928 = vshrl.u32 %v1927, 7
    %v1929 = vsub.s32 4, %v1928
    %v1930 = vrot.slane %v1354, %v1929
    %v1931 = vlaneseq
    %v1932 = vshrl.u32 %v1931, 7
    %v1933 = vsub.s32 4, %v1932
    %v1934 = vrot.slane %v1355, %v1933
    %v1935 = vlaneseq
    %v1936 = vshrl.u32 %v1935, 7
    %v1937 = vsub.s32 4, %v1936
    %v1938 = vrot.slane %v1356, %v1937
    %v1939 = vlaneseq
    %v1940 = vshrl.u32 %v1939, 7
    %v1941 = vsub.s32 4, %v1940
    %v1942 = vrot.slane %v1357, %v1941
    %v1943 = vlaneseq
    %v1944 = vshrl.u32 %v1943, 7
    %v1945 = vsub.s32 4, %v1944
    %v1946 = vrot.slane %v1358, %v1945
    %v1947 = vlaneseq
    %v1948 = vshrl.u32 %v1947, 7
    %v1949 = vsub.s32 4, %v1948
    %v1950 = vrot.slane %v1359, %v1949
    %v1951 = vlaneseq
    %v1952 = vshrl.u32 %v1951, 7
    %v1953 = vsub.s32 4, %v1952
    %v1954 = vrot.slane %v1360, %v1953
    %v1955 = vlaneseq
    %v1956 = vshrl.u32 %v1955, 7
    %v1957 = vsub.s32 4, %v1956
    %v1958 = vrot.slane %v1361, %v1957
    %v1959 = vmul.f32 %v580, %v1930
    %v1960 = vmul.f32 %v580, %v1934
    %v1961 = vmul.f32 %v580, %v1938
    %v1962 = vmul.f32 %v580, %v1942
    %v1963 = vmul.f32 %v580, %v1946
    %v1964 = vmul.f32 %v580, %v1950
    %v1965 = vmul.f32 %v580, %v1954
    %v1966 = vmul.f32 %v580, %v1958
    %v1967 = vmul.f32 %v1925, %v1930
    %v1968 = vmul.f32 %v1925, %v1934
    %v1969 = vmul.f32 %v1925, %v1938
    %v1970 = vmul.f32 %v1925, %v1942
    %v1971 = vmul.f32 %v1925, %v1946
    %v1972 = vmul.f32 %v1925, %v1950
    %v1973 = vmul.f32 %v1925, %v1954
    %v1974 = vmul.f32 %v1925, %v1958
    %v1975 = vadd.f32 %v1907, %v1959
    %v1976 = vadd.f32 %v1908, %v1960
    %v1977 = vadd.f32 %v1909, %v1961
    %v1978 = vadd.f32 %v1910, %v1962
    %v1979 = vadd.f32 %v1911, %v1963
    %v1980 = vadd.f32 %v1912, %v1964
    %v1981 = vadd.f32 %v1913, %v1965
    %v1982 = vadd.f32 %v1914, %v1966
    %v1983 = vadd.f32 %v1915, %v1967
    %v1984 = vadd.f32 %v1916, %v1968
    %v1985 = vadd.f32 %v1917, %v1969
    %v1986 = vadd.f32 %v1918, %v1970
    %v1987 = vadd.f32 %v1919, %v1971
    %v1988 = vadd.f32 %v1920, %v1972
    %v1989 = vadd.f32 %v1921, %v1973
    %v1990 = vadd.f32 %v1922, %v1974
    %1991 = vset.pattern.permute.xlu0 9
    %1992 = vperm.xlu0 %1991, %v15
    %v1993 = vpop.permute.xlu0 %1992
    %1995 = vset.pattern.permute.xlu0 9
    %1996 = vperm.xlu0 %1995, %v16
    %v1997 = vpop.permute.xlu0 %1996
    %v1999 = vlaneseq
    %v2000 = vshrl.u32 %v1999, 7
    %v2001 = vsub.s32 5, %v2000
    %v2002 = vrot.slane %v1354, %v2001
    %v2003 = vlaneseq
    %v2004 = vshrl.u32 %v2003, 7
    %v2005 = vsub.s32 5, %v2004
    %v2006 = vrot.slane %v1355, %v2005
    %v2007 = vlaneseq
    %v2008 = vshrl.u32 %v2007, 7
    %v2009 = vsub.s32 5, %v2008
    %v2010 = vrot.slane %v1356, %v2009
    %v2011 = vlaneseq
    %v2012 = vshrl.u32 %v2011, 7
    %v2013 = vsub.s32 5, %v2012
    %v2014 = vrot.slane %v1357, %v2013
    %v2015 = vlaneseq
    %v2016 = vshrl.u32 %v2015, 7
    %v2017 = vsub.s32 5, %v2016
    %v2018 = vrot.slane %v1358, %v2017
    %v2019 = vlaneseq
    %v2020 = vshrl.u32 %v2019, 7
    %v2021 = vsub.s32 5, %v2020
    %v2022 = vrot.slane %v1359, %v2021
    %v2023 = vlaneseq
    %v2024 = vshrl.u32 %v2023, 7
    %v2025 = vsub.s32 5, %v2024
    %v2026 = vrot.slane %v1360, %v2025
    %v2027 = vlaneseq
    %v2028 = vshrl.u32 %v2027, 7
    %v2029 = vsub.s32 5, %v2028
    %v2030 = vrot.slane %v1361, %v2029
    %v2031 = vmul.f32 %v1993, %v2002
    %v2032 = vmul.f32 %v1993, %v2006
    %v2033 = vmul.f32 %v1993, %v2010
    %v2034 = vmul.f32 %v1993, %v2014
    %v2035 = vmul.f32 %v1993, %v2018
    %v2036 = vmul.f32 %v1993, %v2022
    %v2037 = vmul.f32 %v1993, %v2026
    %v2038 = vmul.f32 %v1993, %v2030
    %v2039 = vmul.f32 %v1997, %v2002
    %v2040 = vmul.f32 %v1997, %v2006
    %v2041 = vmul.f32 %v1997, %v2010
    %v2042 = vmul.f32 %v1997, %v2014
    %v2043 = vmul.f32 %v1997, %v2018
    %v2044 = vmul.f32 %v1997, %v2022
    %v2045 = vmul.f32 %v1997, %v2026
    %v2046 = vmul.f32 %v1997, %v2030
    %v2047 = vadd.f32 %v1975, %v2031
    %v2048 = vadd.f32 %v1976, %v2032
    %v2049 = vadd.f32 %v1977, %v2033
    %v2050 = vadd.f32 %v1978, %v2034
    %v2051 = vadd.f32 %v1979, %v2035
    %v2052 = vadd.f32 %v1980, %v2036
    %v2053 = vadd.f32 %v1981, %v2037
    %v2054 = vadd.f32 %v1982, %v2038
    %v2055 = vadd.f32 %v1983, %v2039
    %v2056 = vadd.f32 %v1984, %v2040
    %v2057 = vadd.f32 %v1985, %v2041
    %v2058 = vadd.f32 %v1986, %v2042
    %v2059 = vadd.f32 %v1987, %v2043
    %v2060 = vadd.f32 %v1988, %v2044
    %v2061 = vadd.f32 %v1989, %v2045
    %v2062 = vadd.f32 %v1990, %v2046
    %2063 = vset.pattern.permute.xlu0 10
    %2064 = vperm.xlu0 %2063, %v15
    %v2065 = vpop.permute.xlu0 %2064
    %2067 = vset.pattern.permute.xlu0 10
    %2068 = vperm.xlu0 %2067, %v16
    %v2069 = vpop.permute.xlu0 %2068
    %v2071 = vlaneseq
    %v2072 = vshrl.u32 %v2071, 7
    %v2073 = vsub.s32 6, %v2072
    %v2074 = vrot.slane %v1354, %v2073
    %v2075 = vlaneseq
    %v2076 = vshrl.u32 %v2075, 7
    %v2077 = vsub.s32 6, %v2076
    %v2078 = vrot.slane %v1355, %v2077
    %v2079 = vlaneseq
    %v2080 = vshrl.u32 %v2079, 7
    %v2081 = vsub.s32 6, %v2080
    %v2082 = vrot.slane %v1356, %v2081
    %v2083 = vlaneseq
    %v2084 = vshrl.u32 %v2083, 7
    %v2085 = vsub.s32 6, %v2084
    %v2086 = vrot.slane %v1357, %v2085
    %v2087 = vlaneseq
    %v2088 = vshrl.u32 %v2087, 7
    %v2089 = vsub.s32 6, %v2088
    %v2090 = vrot.slane %v1358, %v2089
    %v2091 = vlaneseq
    %v2092 = vshrl.u32 %v2091, 7
    %v2093 = vsub.s32 6, %v2092
    %v2094 = vrot.slane %v1359, %v2093
    %v2095 = vlaneseq
    %v2096 = vshrl.u32 %v2095, 7
    %v2097 = vsub.s32 6, %v2096
    %v2098 = vrot.slane %v1360, %v2097
    %v2099 = vlaneseq
    %v2100 = vshrl.u32 %v2099, 7
    %v2101 = vsub.s32 6, %v2100
    %v2102 = vrot.slane %v1361, %v2101
    %v2103 = vmul.f32 %v2065, %v2074
    %v2104 = vmul.f32 %v2065, %v2078
    %v2105 = vmul.f32 %v2065, %v2082
    %v2106 = vmul.f32 %v2065, %v2086
    %v2107 = vmul.f32 %v2065, %v2090
    %v2108 = vmul.f32 %v2065, %v2094
    %v2109 = vmul.f32 %v2065, %v2098
    %v2110 = vmul.f32 %v2065, %v2102
    %v2111 = vmul.f32 %v2069, %v2074
    %v2112 = vmul.f32 %v2069, %v2078
    %v2113 = vmul.f32 %v2069, %v2082
    %v2114 = vmul.f32 %v2069, %v2086
    %v2115 = vmul.f32 %v2069, %v2090
    %v2116 = vmul.f32 %v2069, %v2094
    %v2117 = vmul.f32 %v2069, %v2098
    %v2118 = vmul.f32 %v2069, %v2102
    %v2119 = vadd.f32 %v2047, %v2103
    %v2120 = vadd.f32 %v2048, %v2104
    %v2121 = vadd.f32 %v2049, %v2105
    %v2122 = vadd.f32 %v2050, %v2106
    %v2123 = vadd.f32 %v2051, %v2107
    %v2124 = vadd.f32 %v2052, %v2108
    %v2125 = vadd.f32 %v2053, %v2109
    %v2126 = vadd.f32 %v2054, %v2110
    %v2127 = vadd.f32 %v2055, %v2111
    %v2128 = vadd.f32 %v2056, %v2112
    %v2129 = vadd.f32 %v2057, %v2113
    %v2130 = vadd.f32 %v2058, %v2114
    %v2131 = vadd.f32 %v2059, %v2115
    %v2132 = vadd.f32 %v2060, %v2116
    %v2133 = vadd.f32 %v2061, %v2117
    %v2134 = vadd.f32 %v2062, %v2118
    %2135 = vset.pattern.permute.xlu0 11
    %2136 = vperm.xlu0 %2135, %v15
    %v2137 = vpop.permute.xlu0 %2136
    %2139 = vset.pattern.permute.xlu0 11
    %2140 = vperm.xlu0 %2139, %v16
    %v2141 = vpop.permute.xlu0 %2140
    %v2143 = vlaneseq
    %v2144 = vshrl.u32 %v2143, 7
    %v2145 = vsub.s32 7, %v2144
    %v2146 = vrot.slane %v1354, %v2145
    %v2147 = vlaneseq
    %v2148 = vshrl.u32 %v2147, 7
    %v2149 = vsub.s32 7, %v2148
    %v2150 = vrot.slane %v1355, %v2149
    %v2151 = vlaneseq
    %v2152 = vshrl.u32 %v2151, 7
    %v2153 = vsub.s32 7, %v2152
    %v2154 = vrot.slane %v1356, %v2153
    %v2155 = vlaneseq
    %v2156 = vshrl.u32 %v2155, 7
    %v2157 = vsub.s32 7, %v2156
    %v2158 = vrot.slane %v1357, %v2157
    %v2159 = vlaneseq
    %v2160 = vshrl.u32 %v2159, 7
    %v2161 = vsub.s32 7, %v2160
    %v2162 = vrot.slane %v1358, %v2161
    %v2163 = vlaneseq
    %v2164 = vshrl.u32 %v2163, 7
    %v2165 = vsub.s32 7, %v2164
    %v2166 = vrot.slane %v1359, %v2165
    %v2167 = vlaneseq
    %v2168 = vshrl.u32 %v2167, 7
    %v2169 = vsub.s32 7, %v2168
    %v2170 = vrot.slane %v1360, %v2169
    %v2171 = vlaneseq
    %v2172 = vshrl.u32 %v2171, 7
    %v2173 = vsub.s32 7, %v2172
    %v2174 = vrot.slane %v1361, %v2173
    %v2175 = vmul.f32 %v2137, %v2146
    %v2176 = vmul.f32 %v2137, %v2150
    %v2177 = vmul.f32 %v2137, %v2154
    %v2178 = vmul.f32 %v2137, %v2158
    %v2179 = vmul.f32 %v2137, %v2162
    %v2180 = vmul.f32 %v2137, %v2166
    %v2181 = vmul.f32 %v2137, %v2170
    %v2182 = vmul.f32 %v2137, %v2174
    %v2183 = vmul.f32 %v2141, %v2146
    %v2184 = vmul.f32 %v2141, %v2150
    %v2185 = vmul.f32 %v2141, %v2154
    %v2186 = vmul.f32 %v2141, %v2158
    %v2187 = vmul.f32 %v2141, %v2162
    %v2188 = vmul.f32 %v2141, %v2166
    %v2189 = vmul.f32 %v2141, %v2170
    %v2190 = vmul.f32 %v2141, %v2174
    %v2191 = vadd.f32 %v2119, %v2175
    %v2192 = vadd.f32 %v2120, %v2176
    %v2193 = vadd.f32 %v2121, %v2177
    %v2194 = vadd.f32 %v2122, %v2178
    %v2195 = vadd.f32 %v2123, %v2179
    %v2196 = vadd.f32 %v2124, %v2180
    %v2197 = vadd.f32 %v2125, %v2181
    %v2198 = vadd.f32 %v2126, %v2182
    %v2199 = vadd.f32 %v2127, %v2183
    %v2200 = vadd.f32 %v2128, %v2184
    %v2201 = vadd.f32 %v2129, %v2185
    %v2202 = vadd.f32 %v2130, %v2186
    %v2203 = vadd.f32 %v2131, %v2187
    %v2204 = vadd.f32 %v2132, %v2188
    %v2205 = vadd.f32 %v2133, %v2189
    %v2206 = vadd.f32 %v2134, %v2190
    %2207 = vset.pattern.permute.xlu0 12
    %2208 = vperm.xlu0 %2207, %v15
    %v2209 = vpop.permute.xlu0 %2208
    %2211 = vset.pattern.permute.xlu0 12
    %2212 = vperm.xlu0 %2211, %v16
    %v2213 = vpop.permute.xlu0 %2212
    %v2215 = vlaneseq
    %v2216 = vshrl.u32 %v2215, 7
    %v2217 = vsub.s32 0, %v2216
    %v2218 = vrot.slane %v1362, %v2217
    %v2219 = vlaneseq
    %v2220 = vshrl.u32 %v2219, 7
    %v2221 = vsub.s32 0, %v2220
    %v2222 = vrot.slane %v1363, %v2221
    %v2223 = vlaneseq
    %v2224 = vshrl.u32 %v2223, 7
    %v2225 = vsub.s32 0, %v2224
    %v2226 = vrot.slane %v1364, %v2225
    %v2227 = vlaneseq
    %v2228 = vshrl.u32 %v2227, 7
    %v2229 = vsub.s32 0, %v2228
    %v2230 = vrot.slane %v1365, %v2229
    %v2231 = vlaneseq
    %v2232 = vshrl.u32 %v2231, 7
    %v2233 = vsub.s32 0, %v2232
    %v2234 = vrot.slane %v1366, %v2233
    %v2235 = vlaneseq
    %v2236 = vshrl.u32 %v2235, 7
    %v2237 = vsub.s32 0, %v2236
    %v2238 = vrot.slane %v1367, %v2237
    %v2239 = vlaneseq
    %v2240 = vshrl.u32 %v2239, 7
    %v2241 = vsub.s32 0, %v2240
    %v2242 = vrot.slane %v1368, %v2241
    %v2243 = vlaneseq
    %v2244 = vshrl.u32 %v2243, 7
    %v2245 = vsub.s32 0, %v2244
    %v2246 = vrot.slane %v1369, %v2245
    %v2247 = vmul.f32 %v2209, %v2218
    %v2248 = vmul.f32 %v2209, %v2222
    %v2249 = vmul.f32 %v2209, %v2226
    %v2250 = vmul.f32 %v2209, %v2230
    %v2251 = vmul.f32 %v2209, %v2234
    %v2252 = vmul.f32 %v2209, %v2238
    %v2253 = vmul.f32 %v2209, %v2242
    %v2254 = vmul.f32 %v2209, %v2246
    %v2255 = vmul.f32 %v2213, %v2218
    %v2256 = vmul.f32 %v2213, %v2222
    %v2257 = vmul.f32 %v2213, %v2226
    %v2258 = vmul.f32 %v2213, %v2230
    %v2259 = vmul.f32 %v2213, %v2234
    %v2260 = vmul.f32 %v2213, %v2238
    %v2261 = vmul.f32 %v2213, %v2242
    %v2262 = vmul.f32 %v2213, %v2246
    %v2263 = vadd.f32 %v2191, %v2247
    %v2264 = vadd.f32 %v2192, %v2248
    %v2265 = vadd.f32 %v2193, %v2249
    %v2266 = vadd.f32 %v2194, %v2250
    %v2267 = vadd.f32 %v2195, %v2251
    %v2268 = vadd.f32 %v2196, %v2252
    %v2269 = vadd.f32 %v2197, %v2253
    %v2270 = vadd.f32 %v2198, %v2254
    %v2271 = vadd.f32 %v2199, %v2255
    %v2272 = vadd.f32 %v2200, %v2256
    %v2273 = vadd.f32 %v2201, %v2257
    %v2274 = vadd.f32 %v2202, %v2258
    %v2275 = vadd.f32 %v2203, %v2259
    %v2276 = vadd.f32 %v2204, %v2260
    %v2277 = vadd.f32 %v2205, %v2261
    %v2278 = vadd.f32 %v2206, %v2262
    %2279 = vset.pattern.permute.xlu0 13
    %2280 = vperm.xlu0 %2279, %v15
    %v2281 = vpop.permute.xlu0 %2280
    %2283 = vset.pattern.permute.xlu0 13
    %2284 = vperm.xlu0 %2283, %v16
    %v2285 = vpop.permute.xlu0 %2284
    %v2287 = vlaneseq
    %v2288 = vshrl.u32 %v2287, 7
    %v2289 = vsub.s32 1, %v2288
    %v2290 = vrot.slane %v1362, %v2289
    %v2291 = vlaneseq
    %v2292 = vshrl.u32 %v2291, 7
    %v2293 = vsub.s32 1, %v2292
    %v2294 = vrot.slane %v1363, %v2293
    %v2295 = vlaneseq
    %v2296 = vshrl.u32 %v2295, 7
    %v2297 = vsub.s32 1, %v2296
    %v2298 = vrot.slane %v1364, %v2297
    %v2299 = vlaneseq
    %v2300 = vshrl.u32 %v2299, 7
    %v2301 = vsub.s32 1, %v2300
    %v2302 = vrot.slane %v1365, %v2301
    %v2303 = vlaneseq
    %v2304 = vshrl.u32 %v2303, 7
    %v2305 = vsub.s32 1, %v2304
    %v2306 = vrot.slane %v1366, %v2305
    %v2307 = vlaneseq
    %v2308 = vshrl.u32 %v2307, 7
    %v2309 = vsub.s32 1, %v2308
    %v2310 = vrot.slane %v1367, %v2309
    %v2311 = vlaneseq
    %v2312 = vshrl.u32 %v2311, 7
    %v2313 = vsub.s32 1, %v2312
    %v2314 = vrot.slane %v1368, %v2313
    %v2315 = vlaneseq
    %v2316 = vshrl.u32 %v2315, 7
    %v2317 = vsub.s32 1, %v2316
    %v2318 = vrot.slane %v1369, %v2317
    %v2319 = vmul.f32 %v2281, %v2290
    %v2320 = vmul.f32 %v2281, %v2294
    %v2321 = vmul.f32 %v2281, %v2298
    %v2322 = vmul.f32 %v2281, %v2302
    %v2323 = vmul.f32 %v2281, %v2306
    %v2324 = vmul.f32 %v2281, %v2310
    %v2325 = vmul.f32 %v2281, %v2314
    %v2326 = vmul.f32 %v2281, %v2318
    %v2327 = vmul.f32 %v2285, %v2290
    %v2328 = vmul.f32 %v2285, %v2294
    %v2329 = vmul.f32 %v2285, %v2298
    %v2330 = vmul.f32 %v2285, %v2302
    %v2331 = vmul.f32 %v2285, %v2306
    %v2332 = vmul.f32 %v2285, %v2310
    %v2333 = vmul.f32 %v2285, %v2314
    %v2334 = vmul.f32 %v2285, %v2318
    %v2335 = vadd.f32 %v2263, %v2319
    %v2336 = vadd.f32 %v2264, %v2320
    %v2337 = vadd.f32 %v2265, %v2321
    %v2338 = vadd.f32 %v2266, %v2322
    %v2339 = vadd.f32 %v2267, %v2323
    %v2340 = vadd.f32 %v2268, %v2324
    %v2341 = vadd.f32 %v2269, %v2325
    %v2342 = vadd.f32 %v2270, %v2326
    %v2343 = vadd.f32 %v2271, %v2327
    %v2344 = vadd.f32 %v2272, %v2328
    %v2345 = vadd.f32 %v2273, %v2329
    %v2346 = vadd.f32 %v2274, %v2330
    %v2347 = vadd.f32 %v2275, %v2331
    %v2348 = vadd.f32 %v2276, %v2332
    %v2349 = vadd.f32 %v2277, %v2333
    %v2350 = vadd.f32 %v2278, %v2334
    %2351 = vset.pattern.permute.xlu0 14
    %2352 = vperm.xlu0 %2351, %v15
    %v2353 = vpop.permute.xlu0 %2352
    %2355 = vset.pattern.permute.xlu0 14
    %2356 = vperm.xlu0 %2355, %v16
    %v2357 = vpop.permute.xlu0 %2356
    %v2359 = vlaneseq
    %v2360 = vshrl.u32 %v2359, 7
    %v2361 = vsub.s32 2, %v2360
    %v2362 = vrot.slane %v1362, %v2361
    %v2363 = vlaneseq
    %v2364 = vshrl.u32 %v2363, 7
    %v2365 = vsub.s32 2, %v2364
    %v2366 = vrot.slane %v1363, %v2365
    %v2367 = vlaneseq
    %v2368 = vshrl.u32 %v2367, 7
    %v2369 = vsub.s32 2, %v2368
    %v2370 = vrot.slane %v1364, %v2369
    %v2371 = vlaneseq
    %v2372 = vshrl.u32 %v2371, 7
    %v2373 = vsub.s32 2, %v2372
    %v2374 = vrot.slane %v1365, %v2373
    %v2375 = vlaneseq
    %v2376 = vshrl.u32 %v2375, 7
    %v2377 = vsub.s32 2, %v2376
    %v2378 = vrot.slane %v1366, %v2377
    %v2379 = vlaneseq
    %v2380 = vshrl.u32 %v2379, 7
    %v2381 = vsub.s32 2, %v2380
    %v2382 = vrot.slane %v1367, %v2381
    %v2383 = vlaneseq
    %v2384 = vshrl.u32 %v2383, 7
    %v2385 = vsub.s32 2, %v2384
    %v2386 = vrot.slane %v1368, %v2385
    %v2387 = vlaneseq
    %v2388 = vshrl.u32 %v2387, 7
    %v2389 = vsub.s32 2, %v2388
    %v2390 = vrot.slane %v1369, %v2389
    %v2391 = vmul.f32 %v2353, %v2362
    %v2392 = vmul.f32 %v2353, %v2366
    %v2393 = vmul.f32 %v2353, %v2370
    %v2394 = vmul.f32 %v2353, %v2374
    %v2395 = vmul.f32 %v2353, %v2378
    %v2396 = vmul.f32 %v2353, %v2382
    %v2397 = vmul.f32 %v2353, %v2386
    %v2398 = vmul.f32 %v2353, %v2390
    %v2399 = vmul.f32 %v2357, %v2362
    %v2400 = vmul.f32 %v2357, %v2366
    %v2401 = vmul.f32 %v2357, %v2370
    %v2402 = vmul.f32 %v2357, %v2374
    %v2403 = vmul.f32 %v2357, %v2378
    %v2404 = vmul.f32 %v2357, %v2382
    %v2405 = vmul.f32 %v2357, %v2386
    %v2406 = vmul.f32 %v2357, %v2390
    %v2407 = vadd.f32 %v2335, %v2391
    %v2408 = vadd.f32 %v2336, %v2392
    %v2409 = vadd.f32 %v2337, %v2393
    %v2410 = vadd.f32 %v2338, %v2394
    %v2411 = vadd.f32 %v2339, %v2395
    %v2412 = vadd.f32 %v2340, %v2396
    %v2413 = vadd.f32 %v2341, %v2397
    %v2414 = vadd.f32 %v2342, %v2398
    %v2415 = vadd.f32 %v2343, %v2399
    %v2416 = vadd.f32 %v2344, %v2400
    %v2417 = vadd.f32 %v2345, %v2401
    %v2418 = vadd.f32 %v2346, %v2402
    %v2419 = vadd.f32 %v2347, %v2403
    %v2420 = vadd.f32 %v2348, %v2404
    %v2421 = vadd.f32 %v2349, %v2405
    %v2422 = vadd.f32 %v2350, %v2406
    %2423 = vset.pattern.permute.xlu0 15
    %2424 = vperm.xlu0 %2423, %v15
    %v2425 = vpop.permute.xlu0 %2424
    %2427 = vset.pattern.permute.xlu0 15
    %2428 = vperm.xlu0 %2427, %v16
    %v2429 = vpop.permute.xlu0 %2428
    %v2431 = vlaneseq
    %v2432 = vshrl.u32 %v2431, 7
    %v2433 = vsub.s32 3, %v2432
    %v2434 = vrot.slane %v1362, %v2433
    %v2435 = vlaneseq
    %v2436 = vshrl.u32 %v2435, 7
    %v2437 = vsub.s32 3, %v2436
    %v2438 = vrot.slane %v1363, %v2437
    %v2439 = vlaneseq
    %v2440 = vshrl.u32 %v2439, 7
    %v2441 = vsub.s32 3, %v2440
    %v2442 = vrot.slane %v1364, %v2441
    %v2443 = vlaneseq
    %v2444 = vshrl.u32 %v2443, 7
    %v2445 = vsub.s32 3, %v2444
    %v2446 = vrot.slane %v1365, %v2445
    %v2447 = vlaneseq
    %v2448 = vshrl.u32 %v2447, 7
    %v2449 = vsub.s32 3, %v2448
    %v2450 = vrot.slane %v1366, %v2449
    %v2451 = vlaneseq
    %v2452 = vshrl.u32 %v2451, 7
    %v2453 = vsub.s32 3, %v2452
    %v2454 = vrot.slane %v1367, %v2453
    %v2455 = vlaneseq
    %v2456 = vshrl.u32 %v2455, 7
    %v2457 = vsub.s32 3, %v2456
    %v2458 = vrot.slane %v1368, %v2457
    %v2459 = vlaneseq
    %v2460 = vshrl.u32 %v2459, 7
    %v2461 = vsub.s32 3, %v2460
    %v2462 = vrot.slane %v1369, %v2461
    %v2463 = vmul.f32 %v2425, %v2434
    %v2464 = vmul.f32 %v2425, %v2438
    %v2465 = vmul.f32 %v2425, %v2442
    %v2466 = vmul.f32 %v2425, %v2446
    %v2467 = vmul.f32 %v2425, %v2450
    %v2468 = vmul.f32 %v2425, %v2454
    %v2469 = vmul.f32 %v2425, %v2458
    %v2470 = vmul.f32 %v2425, %v2462
    %v2471 = vmul.f32 %v2429, %v2434
    %v2472 = vmul.f32 %v2429, %v2438
    %v2473 = vmul.f32 %v2429, %v2442
    %v2474 = vmul.f32 %v2429, %v2446
    %v2475 = vmul.f32 %v2429, %v2450
    %v2476 = vmul.f32 %v2429, %v2454
    %v2477 = vmul.f32 %v2429, %v2458
    %v2478 = vmul.f32 %v2429, %v2462
    %v2479 = vadd.f32 %v2407, %v2463
    %v2480 = vadd.f32 %v2408, %v2464
    %v2481 = vadd.f32 %v2409, %v2465
    %v2482 = vadd.f32 %v2410, %v2466
    %v2483 = vadd.f32 %v2411, %v2467
    %v2484 = vadd.f32 %v2412, %v2468
    %v2485 = vadd.f32 %v2413, %v2469
    %v2486 = vadd.f32 %v2414, %v2470
    %v2487 = vadd.f32 %v2415, %v2471
    %v2488 = vadd.f32 %v2416, %v2472
    %v2489 = vadd.f32 %v2417, %v2473
    %v2490 = vadd.f32 %v2418, %v2474
    %v2491 = vadd.f32 %v2419, %v2475
    %v2492 = vadd.f32 %v2420, %v2476
    %v2493 = vadd.f32 %v2421, %v2477
    %v2494 = vadd.f32 %v2422, %v2478
    %vm2495 = vcmp.ge.f32.partialorder %v2479, 0.0
    %vm2496 = vcmp.ge.f32.partialorder %v2480, 0.0
    %vm2497 = vcmp.ge.f32.partialorder %v2481, 0.0
    %vm2498 = vcmp.ge.f32.partialorder %v2482, 0.0
    %vm2499 = vcmp.ge.f32.partialorder %v2483, 0.0
    %vm2500 = vcmp.ge.f32.partialorder %v2484, 0.0
    %vm2501 = vcmp.ge.f32.partialorder %v2485, 0.0
    %vm2502 = vcmp.ge.f32.partialorder %v2486, 0.0
    %vm2503 = vcmp.ge.f32.partialorder %v2487, 0.0
    %vm2504 = vcmp.ge.f32.partialorder %v2488, 0.0
    %vm2505 = vcmp.ge.f32.partialorder %v2489, 0.0
    %vm2506 = vcmp.ge.f32.partialorder %v2490, 0.0
    %vm2507 = vcmp.ge.f32.partialorder %v2491, 0.0
    %vm2508 = vcmp.ge.f32.partialorder %v2492, 0.0
    %vm2509 = vcmp.ge.f32.partialorder %v2493, 0.0
    %vm2510 = vcmp.ge.f32.partialorder %v2494, 0.0
    %v2511 = vmul.f32 %v2479, 0.01
    %v2512 = vmul.f32 %v2480, 0.01
    %v2513 = vmul.f32 %v2481, 0.01
    %v2514 = vmul.f32 %v2482, 0.01
    %v2515 = vmul.f32 %v2483, 0.01
    %v2516 = vmul.f32 %v2484, 0.01
    %v2517 = vmul.f32 %v2485, 0.01
    %v2518 = vmul.f32 %v2486, 0.01
    %v2519 = vmul.f32 %v2487, 0.01
    %v2520 = vmul.f32 %v2488, 0.01
    %v2521 = vmul.f32 %v2489, 0.01
    %v2522 = vmul.f32 %v2490, 0.01
    %v2523 = vmul.f32 %v2491, 0.01
    %v2524 = vmul.f32 %v2492, 0.01
    %v2525 = vmul.f32 %v2493, 0.01
    %v2526 = vmul.f32 %v2494, 0.01
    %v2527 = vsel %vm2495, %v2479, %v2511
    %v2528 = vsel %vm2496, %v2480, %v2512
    %v2529 = vsel %vm2497, %v2481, %v2513
    %v2530 = vsel %vm2498, %v2482, %v2514
    %v2531 = vsel %vm2499, %v2483, %v2515
    %v2532 = vsel %vm2500, %v2484, %v2516
    %v2533 = vsel %vm2501, %v2485, %v2517
    %v2534 = vsel %vm2502, %v2486, %v2518
    %v2535 = vsel %vm2503, %v2487, %v2519
    %v2536 = vsel %vm2504, %v2488, %v2520
    %v2537 = vsel %vm2505, %v2489, %v2521
    %v2538 = vsel %vm2506, %v2490, %v2522
    %v2539 = vsel %vm2507, %v2491, %v2523
    %v2540 = vsel %vm2508, %v2492, %v2524
    %v2541 = vsel %vm2509, %v2493, %v2525
    %v2542 = vsel %vm2510, %v2494, %v2526
    %v2543 = vlaneseq
    %v2544 = vshrl.u32 %v2543, 7
    %v2545 = vsub.s32 4, %v2544
    %v2546 = vrot.slane %v2527, %v2545
    %v2547 = vlaneseq
    %v2548 = vshrl.u32 %v2547, 7
    %v2549 = vsub.s32 4, %v2548
    %v2550 = vrot.slane %v2528, %v2549
    %v2551 = vlaneseq
    %v2552 = vshrl.u32 %v2551, 7
    %v2553 = vsub.s32 4, %v2552
    %v2554 = vrot.slane %v2529, %v2553
    %v2555 = vlaneseq
    %v2556 = vshrl.u32 %v2555, 7
    %v2557 = vsub.s32 4, %v2556
    %v2558 = vrot.slane %v2530, %v2557
    %v2559 = vlaneseq
    %v2560 = vshrl.u32 %v2559, 7
    %v2561 = vsub.s32 4, %v2560
    %v2562 = vrot.slane %v2531, %v2561
    %v2563 = vlaneseq
    %v2564 = vshrl.u32 %v2563, 7
    %v2565 = vsub.s32 4, %v2564
    %v2566 = vrot.slane %v2532, %v2565
    %v2567 = vlaneseq
    %v2568 = vshrl.u32 %v2567, 7
    %v2569 = vsub.s32 4, %v2568
    %v2570 = vrot.slane %v2533, %v2569
    %v2571 = vlaneseq
    %v2572 = vshrl.u32 %v2571, 7
    %v2573 = vsub.s32 4, %v2572
    %v2574 = vrot.slane %v2534, %v2573
    %v2575 = vmul.f32 %v1381, %v2546
    %v2576 = vmul.f32 %v1381, %v2550
    %v2577 = vmul.f32 %v1381, %v2554
    %v2578 = vmul.f32 %v1381, %v2558
    %v2579 = vmul.f32 %v1381, %v2562
    %v2580 = vmul.f32 %v1381, %v2566
    %v2581 = vmul.f32 %v1381, %v2570
    %v2582 = vmul.f32 %v1381, %v2574
    %v2583 = vadd.f32 %v1925, %v2575
    %v2584 = vadd.f32 %v1925, %v2576
    %v2585 = vadd.f32 %v1925, %v2577
    %v2586 = vadd.f32 %v1925, %v2578
    %v2587 = vadd.f32 %v1925, %v2579
    %v2588 = vadd.f32 %v1925, %v2580
    %v2589 = vadd.f32 %v1925, %v2581
    %v2590 = vadd.f32 %v1925, %v2582
    %v2591 = vlaneseq
    %v2592 = vshrl.u32 %v2591, 7
    %v2593 = vsub.s32 5, %v2592
    %v2594 = vrot.slane %v2527, %v2593
    %v2595 = vlaneseq
    %v2596 = vshrl.u32 %v2595, 7
    %v2597 = vsub.s32 5, %v2596
    %v2598 = vrot.slane %v2528, %v2597
    %v2599 = vlaneseq
    %v2600 = vshrl.u32 %v2599, 7
    %v2601 = vsub.s32 5, %v2600
    %v2602 = vrot.slane %v2529, %v2601
    %v2603 = vlaneseq
    %v2604 = vshrl.u32 %v2603, 7
    %v2605 = vsub.s32 5, %v2604
    %v2606 = vrot.slane %v2530, %v2605
    %v2607 = vlaneseq
    %v2608 = vshrl.u32 %v2607, 7
    %v2609 = vsub.s32 5, %v2608
    %v2610 = vrot.slane %v2531, %v2609
    %v2611 = vlaneseq
    %v2612 = vshrl.u32 %v2611, 7
    %v2613 = vsub.s32 5, %v2612
    %v2614 = vrot.slane %v2532, %v2613
    %v2615 = vlaneseq
    %v2616 = vshrl.u32 %v2615, 7
    %v2617 = vsub.s32 5, %v2616
    %v2618 = vrot.slane %v2533, %v2617
    %v2619 = vlaneseq
    %v2620 = vshrl.u32 %v2619, 7
    %v2621 = vsub.s32 5, %v2620
    %v2622 = vrot.slane %v2534, %v2621
    %v2623 = vmul.f32 %v1449, %v2594
    %v2624 = vmul.f32 %v1449, %v2598
    %v2625 = vmul.f32 %v1449, %v2602
    %v2626 = vmul.f32 %v1449, %v2606
    %v2627 = vmul.f32 %v1449, %v2610
    %v2628 = vmul.f32 %v1449, %v2614
    %v2629 = vmul.f32 %v1449, %v2618
    %v2630 = vmul.f32 %v1449, %v2622
    %v2631 = vadd.f32 %v2583, %v2623
    %v2632 = vadd.f32 %v2584, %v2624
    %v2633 = vadd.f32 %v2585, %v2625
    %v2634 = vadd.f32 %v2586, %v2626
    %v2635 = vadd.f32 %v2587, %v2627
    %v2636 = vadd.f32 %v2588, %v2628
    %v2637 = vadd.f32 %v2589, %v2629
    %v2638 = vadd.f32 %v2590, %v2630
    %v2639 = vlaneseq
    %v2640 = vshrl.u32 %v2639, 7
    %v2641 = vsub.s32 6, %v2640
    %v2642 = vrot.slane %v2527, %v2641
    %v2643 = vlaneseq
    %v2644 = vshrl.u32 %v2643, 7
    %v2645 = vsub.s32 6, %v2644
    %v2646 = vrot.slane %v2528, %v2645
    %v2647 = vlaneseq
    %v2648 = vshrl.u32 %v2647, 7
    %v2649 = vsub.s32 6, %v2648
    %v2650 = vrot.slane %v2529, %v2649
    %v2651 = vlaneseq
    %v2652 = vshrl.u32 %v2651, 7
    %v2653 = vsub.s32 6, %v2652
    %v2654 = vrot.slane %v2530, %v2653
    %v2655 = vlaneseq
    %v2656 = vshrl.u32 %v2655, 7
    %v2657 = vsub.s32 6, %v2656
    %v2658 = vrot.slane %v2531, %v2657
    %v2659 = vlaneseq
    %v2660 = vshrl.u32 %v2659, 7
    %v2661 = vsub.s32 6, %v2660
    %v2662 = vrot.slane %v2532, %v2661
    %v2663 = vlaneseq
    %v2664 = vshrl.u32 %v2663, 7
    %v2665 = vsub.s32 6, %v2664
    %v2666 = vrot.slane %v2533, %v2665
    %v2667 = vlaneseq
    %v2668 = vshrl.u32 %v2667, 7
    %v2669 = vsub.s32 6, %v2668
    %v2670 = vrot.slane %v2534, %v2669
    %v2671 = vmul.f32 %v1517, %v2642
    %v2672 = vmul.f32 %v1517, %v2646
    %v2673 = vmul.f32 %v1517, %v2650
    %v2674 = vmul.f32 %v1517, %v2654
    %v2675 = vmul.f32 %v1517, %v2658
    %v2676 = vmul.f32 %v1517, %v2662
    %v2677 = vmul.f32 %v1517, %v2666
    %v2678 = vmul.f32 %v1517, %v2670
    %v2679 = vadd.f32 %v2631, %v2671
    %v2680 = vadd.f32 %v2632, %v2672
    %v2681 = vadd.f32 %v2633, %v2673
    %v2682 = vadd.f32 %v2634, %v2674
    %v2683 = vadd.f32 %v2635, %v2675
    %v2684 = vadd.f32 %v2636, %v2676
    %v2685 = vadd.f32 %v2637, %v2677
    %v2686 = vadd.f32 %v2638, %v2678
    %v2687 = vlaneseq
    %v2688 = vshrl.u32 %v2687, 7
    %v2689 = vsub.s32 7, %v2688
    %v2690 = vrot.slane %v2527, %v2689
    %v2691 = vlaneseq
    %v2692 = vshrl.u32 %v2691, 7
    %v2693 = vsub.s32 7, %v2692
    %v2694 = vrot.slane %v2528, %v2693
    %v2695 = vlaneseq
    %v2696 = vshrl.u32 %v2695, 7
    %v2697 = vsub.s32 7, %v2696
    %v2698 = vrot.slane %v2529, %v2697
    %v2699 = vlaneseq
    %v2700 = vshrl.u32 %v2699, 7
    %v2701 = vsub.s32 7, %v2700
    %v2702 = vrot.slane %v2530, %v2701
    %v2703 = vlaneseq
    %v2704 = vshrl.u32 %v2703, 7
    %v2705 = vsub.s32 7, %v2704
    %v2706 = vrot.slane %v2531, %v2705
    %v2707 = vlaneseq
    %v2708 = vshrl.u32 %v2707, 7
    %v2709 = vsub.s32 7, %v2708
    %v2710 = vrot.slane %v2532, %v2709
    %v2711 = vlaneseq
    %v2712 = vshrl.u32 %v2711, 7
    %v2713 = vsub.s32 7, %v2712
    %v2714 = vrot.slane %v2533, %v2713
    %v2715 = vlaneseq
    %v2716 = vshrl.u32 %v2715, 7
    %v2717 = vsub.s32 7, %v2716
    %v2718 = vrot.slane %v2534, %v2717
    %v2719 = vmul.f32 %v1585, %v2690
    %v2720 = vmul.f32 %v1585, %v2694
    %v2721 = vmul.f32 %v1585, %v2698
    %v2722 = vmul.f32 %v1585, %v2702
    %v2723 = vmul.f32 %v1585, %v2706
    %v2724 = vmul.f32 %v1585, %v2710
    %v2725 = vmul.f32 %v1585, %v2714
    %v2726 = vmul.f32 %v1585, %v2718
    %v2727 = vadd.f32 %v2679, %v2719
    %v2728 = vadd.f32 %v2680, %v2720
    %v2729 = vadd.f32 %v2681, %v2721
    %v2730 = vadd.f32 %v2682, %v2722
    %v2731 = vadd.f32 %v2683, %v2723
    %v2732 = vadd.f32 %v2684, %v2724
    %v2733 = vadd.f32 %v2685, %v2725
    %v2734 = vadd.f32 %v2686, %v2726
    %v2735 = vlaneseq
    %v2736 = vshrl.u32 %v2735, 7
    %v2737 = vsub.s32 0, %v2736
    %v2738 = vrot.slane %v2535, %v2737
    %v2739 = vlaneseq
    %v2740 = vshrl.u32 %v2739, 7
    %v2741 = vsub.s32 0, %v2740
    %v2742 = vrot.slane %v2536, %v2741
    %v2743 = vlaneseq
    %v2744 = vshrl.u32 %v2743, 7
    %v2745 = vsub.s32 0, %v2744
    %v2746 = vrot.slane %v2537, %v2745
    %v2747 = vlaneseq
    %v2748 = vshrl.u32 %v2747, 7
    %v2749 = vsub.s32 0, %v2748
    %v2750 = vrot.slane %v2538, %v2749
    %v2751 = vlaneseq
    %v2752 = vshrl.u32 %v2751, 7
    %v2753 = vsub.s32 0, %v2752
    %v2754 = vrot.slane %v2539, %v2753
    %v2755 = vlaneseq
    %v2756 = vshrl.u32 %v2755, 7
    %v2757 = vsub.s32 0, %v2756
    %v2758 = vrot.slane %v2540, %v2757
    %v2759 = vlaneseq
    %v2760 = vshrl.u32 %v2759, 7
    %v2761 = vsub.s32 0, %v2760
    %v2762 = vrot.slane %v2541, %v2761
    %v2763 = vlaneseq
    %v2764 = vshrl.u32 %v2763, 7
    %v2765 = vsub.s32 0, %v2764
    %v2766 = vrot.slane %v2542, %v2765
    %v2767 = vmul.f32 %v1653, %v2738
    %v2768 = vmul.f32 %v1653, %v2742
    %v2769 = vmul.f32 %v1653, %v2746
    %v2770 = vmul.f32 %v1653, %v2750
    %v2771 = vmul.f32 %v1653, %v2754
    %v2772 = vmul.f32 %v1653, %v2758
    %v2773 = vmul.f32 %v1653, %v2762
    %v2774 = vmul.f32 %v1653, %v2766
    %v2775 = vadd.f32 %v2727, %v2767
    %v2776 = vadd.f32 %v2728, %v2768
    %v2777 = vadd.f32 %v2729, %v2769
    %v2778 = vadd.f32 %v2730, %v2770
    %v2779 = vadd.f32 %v2731, %v2771
    %v2780 = vadd.f32 %v2732, %v2772
    %v2781 = vadd.f32 %v2733, %v2773
    %v2782 = vadd.f32 %v2734, %v2774
    %v2783 = vlaneseq
    %v2784 = vshrl.u32 %v2783, 7
    %v2785 = vsub.s32 1, %v2784
    %v2786 = vrot.slane %v2535, %v2785
    %v2787 = vlaneseq
    %v2788 = vshrl.u32 %v2787, 7
    %v2789 = vsub.s32 1, %v2788
    %v2790 = vrot.slane %v2536, %v2789
    %v2791 = vlaneseq
    %v2792 = vshrl.u32 %v2791, 7
    %v2793 = vsub.s32 1, %v2792
    %v2794 = vrot.slane %v2537, %v2793
    %v2795 = vlaneseq
    %v2796 = vshrl.u32 %v2795, 7
    %v2797 = vsub.s32 1, %v2796
    %v2798 = vrot.slane %v2538, %v2797
    %v2799 = vlaneseq
    %v2800 = vshrl.u32 %v2799, 7
    %v2801 = vsub.s32 1, %v2800
    %v2802 = vrot.slane %v2539, %v2801
    %v2803 = vlaneseq
    %v2804 = vshrl.u32 %v2803, 7
    %v2805 = vsub.s32 1, %v2804
    %v2806 = vrot.slane %v2540, %v2805
    %v2807 = vlaneseq
    %v2808 = vshrl.u32 %v2807, 7
    %v2809 = vsub.s32 1, %v2808
    %v2810 = vrot.slane %v2541, %v2809
    %v2811 = vlaneseq
    %v2812 = vshrl.u32 %v2811, 7
    %v2813 = vsub.s32 1, %v2812
    %v2814 = vrot.slane %v2542, %v2813
    %v2815 = vmul.f32 %v1721, %v2786
    %v2816 = vmul.f32 %v1721, %v2790
    %v2817 = vmul.f32 %v1721, %v2794
    %v2818 = vmul.f32 %v1721, %v2798
    %v2819 = vmul.f32 %v1721, %v2802
    %v2820 = vmul.f32 %v1721, %v2806
    %v2821 = vmul.f32 %v1721, %v2810
    %v2822 = vmul.f32 %v1721, %v2814
    %v2823 = vadd.f32 %v2775, %v2815
    %v2824 = vadd.f32 %v2776, %v2816
    %v2825 = vadd.f32 %v2777, %v2817
    %v2826 = vadd.f32 %v2778, %v2818
    %v2827 = vadd.f32 %v2779, %v2819
    %v2828 = vadd.f32 %v2780, %v2820
    %v2829 = vadd.f32 %v2781, %v2821
    %v2830 = vadd.f32 %v2782, %v2822
    %v2831 = vlaneseq
    %v2832 = vshrl.u32 %v2831, 7
    %v2833 = vsub.s32 2, %v2832
    %v2834 = vrot.slane %v2535, %v2833
    %v2835 = vlaneseq
    %v2836 = vshrl.u32 %v2835, 7
    %v2837 = vsub.s32 2, %v2836
    %v2838 = vrot.slane %v2536, %v2837
    %v2839 = vlaneseq
    %v2840 = vshrl.u32 %v2839, 7
    %v2841 = vsub.s32 2, %v2840
    %v2842 = vrot.slane %v2537, %v2841
    %v2843 = vlaneseq
    %v2844 = vshrl.u32 %v2843, 7
    %v2845 = vsub.s32 2, %v2844
    %v2846 = vrot.slane %v2538, %v2845
    %v2847 = vlaneseq
    %v2848 = vshrl.u32 %v2847, 7
    %v2849 = vsub.s32 2, %v2848
    %v2850 = vrot.slane %v2539, %v2849
    %v2851 = vlaneseq
    %v2852 = vshrl.u32 %v2851, 7
    %v2853 = vsub.s32 2, %v2852
    %v2854 = vrot.slane %v2540, %v2853
    %v2855 = vlaneseq
    %v2856 = vshrl.u32 %v2855, 7
    %v2857 = vsub.s32 2, %v2856
    %v2858 = vrot.slane %v2541, %v2857
    %v2859 = vlaneseq
    %v2860 = vshrl.u32 %v2859, 7
    %v2861 = vsub.s32 2, %v2860
    %v2862 = vrot.slane %v2542, %v2861
    %v2863 = vmul.f32 %v1789, %v2834
    %v2864 = vmul.f32 %v1789, %v2838
    %v2865 = vmul.f32 %v1789, %v2842
    %v2866 = vmul.f32 %v1789, %v2846
    %v2867 = vmul.f32 %v1789, %v2850
    %v2868 = vmul.f32 %v1789, %v2854
    %v2869 = vmul.f32 %v1789, %v2858
    %v2870 = vmul.f32 %v1789, %v2862
    %v2871 = vadd.f32 %v2823, %v2863
    %v2872 = vadd.f32 %v2824, %v2864
    %v2873 = vadd.f32 %v2825, %v2865
    %v2874 = vadd.f32 %v2826, %v2866
    %v2875 = vadd.f32 %v2827, %v2867
    %v2876 = vadd.f32 %v2828, %v2868
    %v2877 = vadd.f32 %v2829, %v2869
    %v2878 = vadd.f32 %v2830, %v2870
    %v2879 = vlaneseq
    %v2880 = vshrl.u32 %v2879, 7
    %v2881 = vsub.s32 3, %v2880
    %v2882 = vrot.slane %v2535, %v2881
    %v2883 = vlaneseq
    %v2884 = vshrl.u32 %v2883, 7
    %v2885 = vsub.s32 3, %v2884
    %v2886 = vrot.slane %v2536, %v2885
    %v2887 = vlaneseq
    %v2888 = vshrl.u32 %v2887, 7
    %v2889 = vsub.s32 3, %v2888
    %v2890 = vrot.slane %v2537, %v2889
    %v2891 = vlaneseq
    %v2892 = vshrl.u32 %v2891, 7
    %v2893 = vsub.s32 3, %v2892
    %v2894 = vrot.slane %v2538, %v2893
    %v2895 = vlaneseq
    %v2896 = vshrl.u32 %v2895, 7
    %v2897 = vsub.s32 3, %v2896
    %v2898 = vrot.slane %v2539, %v2897
    %v2899 = vlaneseq
    %v2900 = vshrl.u32 %v2899, 7
    %v2901 = vsub.s32 3, %v2900
    %v2902 = vrot.slane %v2540, %v2901
    %v2903 = vlaneseq
    %v2904 = vshrl.u32 %v2903, 7
    %v2905 = vsub.s32 3, %v2904
    %v2906 = vrot.slane %v2541, %v2905
    %v2907 = vlaneseq
    %v2908 = vshrl.u32 %v2907, 7
    %v2909 = vsub.s32 3, %v2908
    %v2910 = vrot.slane %v2542, %v2909
    %v2911 = vmul.f32 %v1857, %v2882
    %v2912 = vmul.f32 %v1857, %v2886
    %v2913 = vmul.f32 %v1857, %v2890
    %v2914 = vmul.f32 %v1857, %v2894
    %v2915 = vmul.f32 %v1857, %v2898
    %v2916 = vmul.f32 %v1857, %v2902
    %v2917 = vmul.f32 %v1857, %v2906
    %v2918 = vmul.f32 %v1857, %v2910
    %v2919 = vadd.f32 %v2871, %v2911
    %v2920 = vadd.f32 %v2872, %v2912
    %v2921 = vadd.f32 %v2873, %v2913
    %v2922 = vadd.f32 %v2874, %v2914
    %v2923 = vadd.f32 %v2875, %v2915
    %v2924 = vadd.f32 %v2876, %v2916
    %v2925 = vadd.f32 %v2877, %v2917
    %v2926 = vadd.f32 %v2878, %v2918
    %vm2927 = vcmp.ge.f32.partialorder %v2919, 0.0
    %vm2928 = vcmp.ge.f32.partialorder %v2920, 0.0
    %vm2929 = vcmp.ge.f32.partialorder %v2921, 0.0
    %vm2930 = vcmp.ge.f32.partialorder %v2922, 0.0
    %vm2931 = vcmp.ge.f32.partialorder %v2923, 0.0
    %vm2932 = vcmp.ge.f32.partialorder %v2924, 0.0
    %vm2933 = vcmp.ge.f32.partialorder %v2925, 0.0
    %vm2934 = vcmp.ge.f32.partialorder %v2926, 0.0
    %v2935 = vmul.f32 %v2919, 0.01
    %v2936 = vmul.f32 %v2920, 0.01
    %v2937 = vmul.f32 %v2921, 0.01
    %v2938 = vmul.f32 %v2922, 0.01
    %v2939 = vmul.f32 %v2923, 0.01
    %v2940 = vmul.f32 %v2924, 0.01
    %v2941 = vmul.f32 %v2925, 0.01
    %v2942 = vmul.f32 %v2926, 0.01
    %v2943 = vsel %vm2927, %v2919, %v2935
    %v2944 = vsel %vm2928, %v2920, %v2936
    %v2945 = vsel %vm2929, %v2921, %v2937
    %v2946 = vsel %vm2930, %v2922, %v2938
    %v2947 = vsel %vm2931, %v2923, %v2939
    %v2948 = vsel %vm2932, %v2924, %v2940
    %v2949 = vsel %vm2933, %v2925, %v2941
    %v2950 = vsel %vm2934, %v2926, %v2942
    %2952 = vset.pattern.permute.xlu0 4
    %2953 = vperm.xlu0 %2952, %v17
    %v2954 = vpop.permute.xlu0 %2953
    %2956 = vset.pattern.permute.xlu0 0
    %2957 = vperm.xlu0 %2956, %v17
    %v2958 = vpop.permute.xlu0 %2957
    %v2960 = vlaneseq
    %v2961 = vshrl.u32 %v2960, 7
    %v2962 = vsub.s32 4, %v2961
    %v2963 = vrot.slane %v2943, %v2962
    %v2964 = vlaneseq
    %v2965 = vshrl.u32 %v2964, 7
    %v2966 = vsub.s32 4, %v2965
    %v2967 = vrot.slane %v2944, %v2966
    %v2968 = vlaneseq
    %v2969 = vshrl.u32 %v2968, 7
    %v2970 = vsub.s32 4, %v2969
    %v2971 = vrot.slane %v2945, %v2970
    %v2972 = vlaneseq
    %v2973 = vshrl.u32 %v2972, 7
    %v2974 = vsub.s32 4, %v2973
    %v2975 = vrot.slane %v2946, %v2974
    %v2976 = vlaneseq
    %v2977 = vshrl.u32 %v2976, 7
    %v2978 = vsub.s32 4, %v2977
    %v2979 = vrot.slane %v2947, %v2978
    %v2980 = vlaneseq
    %v2981 = vshrl.u32 %v2980, 7
    %v2982 = vsub.s32 4, %v2981
    %v2983 = vrot.slane %v2948, %v2982
    %v2984 = vlaneseq
    %v2985 = vshrl.u32 %v2984, 7
    %v2986 = vsub.s32 4, %v2985
    %v2987 = vrot.slane %v2949, %v2986
    %v2988 = vlaneseq
    %v2989 = vshrl.u32 %v2988, 7
    %v2990 = vsub.s32 4, %v2989
    %v2991 = vrot.slane %v2950, %v2990
    %v2992 = vmul.f32 %v2958, %v2963
    %v2993 = vmul.f32 %v2958, %v2967
    %v2994 = vmul.f32 %v2958, %v2971
    %v2995 = vmul.f32 %v2958, %v2975
    %v2996 = vmul.f32 %v2958, %v2979
    %v2997 = vmul.f32 %v2958, %v2983
    %v2998 = vmul.f32 %v2958, %v2987
    %v2999 = vmul.f32 %v2958, %v2991
    %v3000 = vadd.f32 %v2954, %v2992
    %v3001 = vadd.f32 %v2954, %v2993
    %v3002 = vadd.f32 %v2954, %v2994
    %v3003 = vadd.f32 %v2954, %v2995
    %v3004 = vadd.f32 %v2954, %v2996
    %v3005 = vadd.f32 %v2954, %v2997
    %v3006 = vadd.f32 %v2954, %v2998
    %v3007 = vadd.f32 %v2954, %v2999
    %3008 = vset.pattern.permute.xlu0 1
    %3009 = vperm.xlu0 %3008, %v17
    %v3010 = vpop.permute.xlu0 %3009
    %v3012 = vlaneseq
    %v3013 = vshrl.u32 %v3012, 7
    %v3014 = vsub.s32 5, %v3013
    %v3015 = vrot.slane %v2943, %v3014
    %v3016 = vlaneseq
    %v3017 = vshrl.u32 %v3016, 7
    %v3018 = vsub.s32 5, %v3017
    %v3019 = vrot.slane %v2944, %v3018
    %v3020 = vlaneseq
    %v3021 = vshrl.u32 %v3020, 7
    %v3022 = vsub.s32 5, %v3021
    %v3023 = vrot.slane %v2945, %v3022
    %v3024 = vlaneseq
    %v3025 = vshrl.u32 %v3024, 7
    %v3026 = vsub.s32 5, %v3025
    %v3027 = vrot.slane %v2946, %v3026
    %v3028 = vlaneseq
    %v3029 = vshrl.u32 %v3028, 7
    %v3030 = vsub.s32 5, %v3029
    %v3031 = vrot.slane %v2947, %v3030
    %v3032 = vlaneseq
    %v3033 = vshrl.u32 %v3032, 7
    %v3034 = vsub.s32 5, %v3033
    %v3035 = vrot.slane %v2948, %v3034
    %v3036 = vlaneseq
    %v3037 = vshrl.u32 %v3036, 7
    %v3038 = vsub.s32 5, %v3037
    %v3039 = vrot.slane %v2949, %v3038
    %v3040 = vlaneseq
    %v3041 = vshrl.u32 %v3040, 7
    %v3042 = vsub.s32 5, %v3041
    %v3043 = vrot.slane %v2950, %v3042
    %v3044 = vmul.f32 %v3010, %v3015
    %v3045 = vmul.f32 %v3010, %v3019
    %v3046 = vmul.f32 %v3010, %v3023
    %v3047 = vmul.f32 %v3010, %v3027
    %v3048 = vmul.f32 %v3010, %v3031
    %v3049 = vmul.f32 %v3010, %v3035
    %v3050 = vmul.f32 %v3010, %v3039
    %v3051 = vmul.f32 %v3010, %v3043
    %v3052 = vadd.f32 %v3000, %v3044
    %v3053 = vadd.f32 %v3001, %v3045
    %v3054 = vadd.f32 %v3002, %v3046
    %v3055 = vadd.f32 %v3003, %v3047
    %v3056 = vadd.f32 %v3004, %v3048
    %v3057 = vadd.f32 %v3005, %v3049
    %v3058 = vadd.f32 %v3006, %v3050
    %v3059 = vadd.f32 %v3007, %v3051
    %3060 = vset.pattern.permute.xlu0 2
    %3061 = vperm.xlu0 %3060, %v17
    %v3062 = vpop.permute.xlu0 %3061
    %v3064 = vlaneseq
    %v3065 = vshrl.u32 %v3064, 7
    %v3066 = vsub.s32 6, %v3065
    %v3067 = vrot.slane %v2943, %v3066
    %v3068 = vlaneseq
    %v3069 = vshrl.u32 %v3068, 7
    %v3070 = vsub.s32 6, %v3069
    %v3071 = vrot.slane %v2944, %v3070
    %v3072 = vlaneseq
    %v3073 = vshrl.u32 %v3072, 7
    %v3074 = vsub.s32 6, %v3073
    %v3075 = vrot.slane %v2945, %v3074
    %v3076 = vlaneseq
    %v3077 = vshrl.u32 %v3076, 7
    %v3078 = vsub.s32 6, %v3077
    %v3079 = vrot.slane %v2946, %v3078
    %v3080 = vlaneseq
    %v3081 = vshrl.u32 %v3080, 7
    %v3082 = vsub.s32 6, %v3081
    %v3083 = vrot.slane %v2947, %v3082
    %v3084 = vlaneseq
    %v3085 = vshrl.u32 %v3084, 7
    %v3086 = vsub.s32 6, %v3085
    %v3087 = vrot.slane %v2948, %v3086
    %v3088 = vlaneseq
    %v3089 = vshrl.u32 %v3088, 7
    %v3090 = vsub.s32 6, %v3089
    %v3091 = vrot.slane %v2949, %v3090
    %v3092 = vlaneseq
    %v3093 = vshrl.u32 %v3092, 7
    %v3094 = vsub.s32 6, %v3093
    %v3095 = vrot.slane %v2950, %v3094
    %v3096 = vmul.f32 %v3062, %v3067
    %v3097 = vmul.f32 %v3062, %v3071
    %v3098 = vmul.f32 %v3062, %v3075
    %v3099 = vmul.f32 %v3062, %v3079
    %v3100 = vmul.f32 %v3062, %v3083
    %v3101 = vmul.f32 %v3062, %v3087
    %v3102 = vmul.f32 %v3062, %v3091
    %v3103 = vmul.f32 %v3062, %v3095
    %v3104 = vadd.f32 %v3052, %v3096
    %v3105 = vadd.f32 %v3053, %v3097
    %v3106 = vadd.f32 %v3054, %v3098
    %v3107 = vadd.f32 %v3055, %v3099
    %v3108 = vadd.f32 %v3056, %v3100
    %v3109 = vadd.f32 %v3057, %v3101
    %v3110 = vadd.f32 %v3058, %v3102
    %v3111 = vadd.f32 %v3059, %v3103
    %3112 = vset.pattern.permute.xlu0 3
    %3113 = vperm.xlu0 %3112, %v17
    %v3114 = vpop.permute.xlu0 %3113
    %v3116 = vlaneseq
    %v3117 = vshrl.u32 %v3116, 7
    %v3118 = vsub.s32 7, %v3117
    %v3119 = vrot.slane %v2943, %v3118
    %v3120 = vlaneseq
    %v3121 = vshrl.u32 %v3120, 7
    %v3122 = vsub.s32 7, %v3121
    %v3123 = vrot.slane %v2944, %v3122
    %v3124 = vlaneseq
    %v3125 = vshrl.u32 %v3124, 7
    %v3126 = vsub.s32 7, %v3125
    %v3127 = vrot.slane %v2945, %v3126
    %v3128 = vlaneseq
    %v3129 = vshrl.u32 %v3128, 7
    %v3130 = vsub.s32 7, %v3129
    %v3131 = vrot.slane %v2946, %v3130
    %v3132 = vlaneseq
    %v3133 = vshrl.u32 %v3132, 7
    %v3134 = vsub.s32 7, %v3133
    %v3135 = vrot.slane %v2947, %v3134
    %v3136 = vlaneseq
    %v3137 = vshrl.u32 %v3136, 7
    %v3138 = vsub.s32 7, %v3137
    %v3139 = vrot.slane %v2948, %v3138
    %v3140 = vlaneseq
    %v3141 = vshrl.u32 %v3140, 7
    %v3142 = vsub.s32 7, %v3141
    %v3143 = vrot.slane %v2949, %v3142
    %v3144 = vlaneseq
    %v3145 = vshrl.u32 %v3144, 7
    %v3146 = vsub.s32 7, %v3145
    %v3147 = vrot.slane %v2950, %v3146
    %v3148 = vmul.f32 %v3114, %v3119
    %v3149 = vmul.f32 %v3114, %v3123
    %v3150 = vmul.f32 %v3114, %v3127
    %v3151 = vmul.f32 %v3114, %v3131
    %v3152 = vmul.f32 %v3114, %v3135
    %v3153 = vmul.f32 %v3114, %v3139
    %v3154 = vmul.f32 %v3114, %v3143
    %v3155 = vmul.f32 %v3114, %v3147
    %v3156 = vadd.f32 %v3104, %v3148
    %v3157 = vadd.f32 %v3105, %v3149
    %v3158 = vadd.f32 %v3106, %v3150
    %v3159 = vadd.f32 %v3107, %v3151
    %v3160 = vadd.f32 %v3108, %v3152
    %v3161 = vadd.f32 %v3109, %v3153
    %v3162 = vadd.f32 %v3110, %v3154
    %v3163 = vadd.f32 %v3111, %v3155
    %v3172 = vcombine.low %v3156, %v3157
    %v3173 = vcombine.low %v3158, %v3159
    %v3175 = vunpack.c.l.s4 1983009808
    %v3176 = vunpack.c.0.s8 %v3175
    %v3177 = vlaneseq
    %v3178 = vshrl.u32 %v3177, 7
    %v3179 = vsub.s32 %v3176, %v3178
    %v3180 = vrot.slane %v3172, %v3179
    %v3182 = vunpack.c.l.s4 1983009808
    %v3183 = vunpack.c.0.s8 %v3182
    %v3184 = vlaneseq
    %v3185 = vshrl.u32 %v3184, 7
    %v3186 = vsub.s32 %v3183, %v3185
    %v3187 = vrot.slane %v3173, %v3186
    %v3188 = vcombine.low %v3180, %v3187
    %v3189 = vcombine.low %v3160, %v3161
    %v3190 = vcombine.low %v3162, %v3163
    %v3192 = vunpack.c.l.s4 1983009808
    %v3193 = vunpack.c.0.s8 %v3192
    %v3194 = vlaneseq
    %v3195 = vshrl.u32 %v3194, 7
    %v3196 = vsub.s32 %v3193, %v3195
    %v3197 = vrot.slane %v3189, %v3196
    %v3199 = vunpack.c.l.s4 1983009808
    %v3200 = vunpack.c.0.s8 %v3199
    %v3201 = vlaneseq
    %v3202 = vshrl.u32 %v3201, 7
    %v3203 = vsub.s32 %v3200, %v3202
    %v3204 = vrot.slane %v3190, %v3203
    %v3205 = vcombine.low %v3197, %v3204
    %3208 = vst [vmem:[#allocation2] sm:$0xff] %v3188
    %3209 = vst [vmem:[#allocation2 + $0x8] sm:$0xff] %v3205
    // Predicated region
    $region10: #{_mlp_forward_jit.1} parent=1 // pred_check
      _
    $region11: #{_mlp_forward_jit.1} parent=1 // pred_check_branch
      %3211 = sbr.rel (0) target = $region13
    $region12: #{_mlp_forward_jit.1} parent=1 // pred_region
      %s3213 = ssub.s32 256, 256
      %3214 = vsyncadd [#allocation3], %s3213
      %s3216 = sshll.u32 [#allocation2], 4
      %s3217 = int_to_ptr.vmem [resolvable:$true] %s3216
      %3219 = dma.vmem_to_hbm [thread:$0]  %s3217, 256, %s2, [#allocation3]
    $region13: #{_mlp_forward_jit.1} parent=1 // pred_fallthru
      _
    // Predicated region
    $region14: #{_mlp_forward_jit.1} parent=1 // pred_check
      _
    $region15: #{_mlp_forward_jit.1} parent=1 // pred_check_branch
      %3221 = sbr.rel (0) target = $region17
    $region16: #{_mlp_forward_jit.1} parent=1 // pred_region
      %3222 = dma.done [#allocation3], 256
    $region17: #{_mlp_forward_jit.1} parent=1 // pred_fallthru
      _
    %3223 = vsyncpa [#allocation3], 1

</llo_original>
